<compile_context>
chip_gen: v7x
topology: tpu7x:2x2x1
jax: 0.10.0
libtpu: 0.0.40
codegen_flags: <defaults>
</compile_context>

<pallas_src>
import math
import functools

import jax
import jax.numpy as jnp
from jax.experimental import pallas as pl
from jax.experimental.pallas import tpu as pltpu

# ----------------------------- small "bert" config ---------------------------
BATCH = 2
SEQ = 8
HIDDEN = 32
NUM_HEADS = 4
INTERMEDIATE = 64
NUM_LAYERS = 2
LN_EPS = 1e-12  # BERT LayerNorm eps


# ------------------------------ kernel helpers --------------------------------
def _erf_poly(x):
    # Abramowitz & Stegun 7.1.26 rational approximation of erf (|err| < 1.5e-7).
    # Used so the exact (erf-based) BERT GELU lowers with only exp/mul ops.
    a1, a2, a3, a4, a5 = (0.254829592, -0.284496736, 1.421413741,
                          -1.453152027, 1.061405429)
    p = 0.3275911
    sgn = jnp.where(x >= 0.0, 1.0, -1.0)
    ax = jnp.abs(x)
    t = 1.0 / (1.0 + p * ax)
    poly = ((((a5 * t + a4) * t + a3) * t + a2) * t + a1) * t
    y = 1.0 - poly * jnp.exp(-ax * ax)
    return sgn * y


def _gelu_exact(x):
    # HF BERT hidden_act="gelu" (exact erf-based GELU).
    return 0.5 * x * (1.0 + _erf_poly(x * (1.0 / math.sqrt(2.0))))


def _layer_norm(x, gamma, beta, eps=LN_EPS):
    mu = jnp.mean(x, axis=-1, keepdims=True)
    xc = x - mu
    var = jnp.mean(xc * xc, axis=-1, keepdims=True)
    return xc * jax.lax.rsqrt(var + eps) * gamma + beta


# ------------------------------ the Pallas kernel ------------------------------
def bert_stack_kernel(x_ref, w_qkvo_ref, b_qkvo_ref, w_in_ref, b_in_ref,
                      w_out_ref, vec_h_ref, mask_ref, out_ref, *,
                      num_layers, num_heads, batch, seq):
    M, H = x_ref.shape                      # M = B * S, H = hidden
    B, S, nh = batch, seq, num_heads
    dh = H // nh
    G = B * nh                              # einsum batch axis = (batch, head)
    scale = 1.0 / math.sqrt(dh)

    # Hoisted once for the whole stack: per-head lane mask (1, nh, 1, H),
    # mask[0, h, 0, d] = 1 iff hidden index d belongs to head h.
    head_mask = mask_ref[...]
    # Attention scale folded into the q-side mask (layer-independent, so it is
    # paid once here instead of once per layer on the (G,S,S) score tensor).
    q_mask = head_mask * scale

    h = x_ref[...].astype(jnp.float32)      # (M, H), stays in VMEM/vregs

    for l in range(num_layers):             # static unroll over layers
        # ---- per-layer packed parameters (single lane-dense weight loads) ----
        wqkvo = w_qkvo_ref[l]               # (H, 4H): [Wq | Wk | Wv | Wo]
        bqkvo = b_qkvo_ref[l]               # (1, 4H): [bq | bk | bv | bo]
        w_i = w_in_ref[l]                   # (H, I)
        b_i = b_in_ref[l]                   # (1, I)
        w_2 = w_out_ref[l]                  # (I, H)
        vecs = vec_h_ref[l]                 # (5, H): [b2, g1, be1, g2, be2]
        b_2, g1, be1, g2, be2 = (vecs[0:1], vecs[1:2], vecs[2:3],
                                 vecs[3:4], vecs[4:5])

        # ---- fused QKV projection: one (M,H)x(H,3H) MXU matmul + one bias add ----
        qkv = jnp.dot(h, wqkvo[:, :3 * H],
                      preferred_element_type=jnp.float32) + bqkvo[:, :3 * H]
        q = qkv[:, 0 * H:1 * H]
        k = qkv[:, 1 * H:2 * H]
        v = qkv[:, 2 * H:3 * H]

        # ---- head-batched self-attention (no mask: encoder(x) has none) ----
        # Heads are separated by masking q/v per head; contraction over the full
        # hidden dim then yields exact per-head dot products.  Reshapes only
        # split/merge leading dims (lane dim stays H, sublane stays S=8).
        q4 = (q.reshape(B, 1, S, H) * q_mask).reshape(G, S, H)   # scale folded in
        k4 = jnp.broadcast_to(k.reshape(B, 1, S, H), (B, nh, S, H)).reshape(G, S, H)
        v4 = (v.reshape(B, 1, S, H) * head_mask).reshape(G, S, H)

        s = jnp.einsum('gqd,gkd->gqk', q4, k4,
                       preferred_element_type=jnp.float32)             # (G,S,S)
        s = s - jnp.max(s, axis=-1, keepdims=True)
        p = jnp.exp(s)
        p = p * pl.reciprocal(jnp.sum(p, axis=-1, keepdims=True), approx=True)
        ctx4 = jnp.einsum('gqk,gkd->gqd', p, v4,
                          preferred_element_type=jnp.float32)          # (G,S,H)
        # v was masked per head, so summing over heads reconstructs the
        # concatenated multi-head context directly (no lane concatenate).
        ctx = ctx4.reshape(B, nh, S, H).sum(axis=1).reshape(M, H)

        # ---- attention output projection + residual + LayerNorm ----
        attn = jnp.dot(ctx, wqkvo[:, 3 * H:],
                       preferred_element_type=jnp.float32) + bqkvo[:, 3 * H:]
        h1 = _layer_norm(attn + h, g1, be1)

        # ---- feed-forward: GELU(h1 Wi + bi) W2 + b2, residual + LayerNorm ----
        inter = _gelu_exact(
            jnp.dot(h1, w_i, preferred_element_type=jnp.float32) + b_i)
        ff = jnp.dot(inter, w_2, preferred_element_type=jnp.float32) + b_2
        h = _layer_norm(ff + h1, g2, be2)

    out_ref[...] = h.astype(out_ref.dtype)


# ------------------------------ packing + wrapper -------------------------------
def pack_params(layer_params):
    """Stack per-layer params into a few lane-dense, layer-stacked buffers."""
    w_qkvo = jnp.stack([jnp.concatenate([p["wq"], p["wk"], p["wv"], p["wo"]],
                                        axis=1) for p in layer_params])   # (L,H,4H)
    b_qkvo = jnp.stack([jnp.concatenate([p["bq"], p["bk"], p["bv"], p["bo"]],
                                        axis=1) for p in layer_params])   # (L,1,4H)
    w_in = jnp.stack([p["wi"] for p in layer_params])                     # (L,H,I)
    b_in = jnp.stack([p["bi"] for p in layer_params])                     # (L,1,I)
    w_out = jnp.stack([p["w2"] for p in layer_params])                    # (L,I,H)
    vec_h = jnp.stack([jnp.concatenate([p["b2"], p["g1"], p["be1"],
                                        p["g2"], p["be2"]], axis=0)
                       for p in layer_params])                            # (L,5,H)
    return w_qkvo, b_qkvo, w_in, b_in, w_out, vec_h


def bert_top_seq(x, layer_params, *, num_heads):
    """Equivalent of BertTopSeq.forward: run x through the full encoder stack."""
    B, S, H = x.shape
    L = len(layer_params)
    dh = H // num_heads

    w_qkvo, b_qkvo, w_in, b_in, w_out, vec_h = pack_params(layer_params)
    x2d = x.reshape(B * S, H)

    # per-head lane mask, built once outside the kernel
    head_mask = (jnp.arange(H)[None, :] // dh ==
                 jnp.arange(num_heads)[:, None]).astype(x.dtype)
    head_mask = head_mask.reshape(1, num_heads, 1, H)

    operands = (x2d, w_qkvo, b_qkvo, w_in, b_in, w_out, vec_h, head_mask)

    def full_spec(a):
        # whole array resident in VMEM for the single grid step
        return pl.BlockSpec(a.shape, lambda *_: (0,) * a.ndim)

    kernel = functools.partial(bert_stack_kernel, num_layers=L,
                               num_heads=num_heads, batch=B, seq=S)

    out2d = pl.pallas_call(
        kernel,
        out_shape=jax.ShapeDtypeStruct((B * S, H), x.dtype),
        grid=(1,),
        in_specs=[full_spec(a) for a in operands],
        out_specs=pl.BlockSpec((B * S, H), lambda i: (0, 0)),
        compiler_params=pltpu.CompilerParams(
            dimension_semantics=("arbitrary",)),
    )(*operands)
    return out2d.reshape(B, S, H)


# ------------------------------ parameter init ---------------------------------
def init_layer_params(key, hidden, intermediate):
    ks = jax.random.split(key, 6)

    def w(k, shape):
        return jax.random.normal(k, shape, jnp.float32) * 0.02

    zeros_h = jnp.zeros((1, hidden), jnp.float32)
    return dict(
        wq=w(ks[0], (hidden, hidden)), bq=zeros_h,
        wk=w(ks[1], (hidden, hidden)), bk=zeros_h,
        wv=w(ks[2], (hidden, hidden)), bv=zeros_h,
        wo=w(ks[3], (hidden, hidden)), bo=zeros_h,
        g1=jnp.ones((1, hidden), jnp.float32), be1=zeros_h,
        wi=w(ks[4], (hidden, intermediate)),
        bi=jnp.zeros((1, intermediate), jnp.float32),
        w2=w(ks[5], (intermediate, hidden)), b2=zeros_h,
        g2=jnp.ones((1, hidden), jnp.float32), be2=zeros_h,
    )


# ------------------------------ pure-JAX reference ------------------------------
def ref_layer(x, p, num_heads):
    B, S, H = x.shape
    dh = H // num_heads
    q = (x @ p["wq"] + p["bq"]).reshape(B, S, num_heads, dh).transpose(0, 2, 1, 3)
    k = (x @ p["wk"] + p["bk"]).reshape(B, S, num_heads, dh).transpose(0, 2, 1, 3)
    v = (x @ p["wv"] + p["bv"]).reshape(B, S, num_heads, dh).transpose(0, 2, 1, 3)
    s = jnp.einsum("bhqd,bhkd->bhqk", q, k) / math.sqrt(dh)
    a = jax.nn.softmax(s, axis=-1)
    ctx = jnp.einsum("bhqk,bhkd->bhqd", a, v).transpose(0, 2, 1, 3).reshape(B, S, H)
    attn = ctx @ p["wo"] + p["bo"]
    h1 = _layer_norm(attn + x, p["g1"], p["be1"])
    inter = _gelu_exact(h1 @ p["wi"] + p["bi"])
    ff = inter @ p["w2"] + p["b2"]
    return _layer_norm(ff + h1, p["g2"], p["be2"])


def ref_bert_top_seq(x, layer_params, num_heads):
    h = x
    for p in layer_params:
        h = ref_layer(h, p, num_heads)
    return h


# ------------------------------------ main --------------------------------------
if __name__ == "__main__":
    key = jax.random.PRNGKey(0)
    k_x, k_p = jax.random.split(key)

    x = jax.random.normal(k_x, (BATCH, SEQ, HIDDEN), jnp.float32)
    layer_params = [
        init_layer_params(jax.random.fold_in(k_p, i), HIDDEN, INTERMEDIATE)
        for i in range(NUM_LAYERS)
    ]

    out = bert_top_seq(x, layer_params, num_heads=NUM_HEADS)
    out = jax.block_until_ready(out)

    ref = ref_bert_top_seq(x, layer_params, NUM_HEADS)
    assert out.shape == (BATCH, SEQ, HIDDEN)
    # Tolerance covers the only intentional divergence vs. the reference:
    # the EUP approximate reciprocal used for the softmax denominator
    # (observed error is orders of magnitude smaller; real bugs give O(0.1+)).
    assert jnp.max(jnp.abs(out - ref)) < 2e-3, "mismatch vs pure-JAX reference"

    print("KERNEL_OK")
</pallas_src>

<mosaic_0001>
module attributes {stable_mosaic.version = 11 : i64} {
  func.func @bert_stack_kernel(%arg0: i32, %arg1: memref<16x32xf32, #tpu.memory_space<vmem>>, %arg2: memref<2x32x128xf32, #tpu.memory_space<vmem>>, %arg3: memref<2x1x128xf32, #tpu.memory_space<vmem>>, %arg4: memref<2x32x64xf32, #tpu.memory_space<vmem>>, %arg5: memref<2x1x64xf32, #tpu.memory_space<vmem>>, %arg6: memref<2x64x32xf32, #tpu.memory_space<vmem>>, %arg7: memref<2x5x32xf32, #tpu.memory_space<vmem>>, %arg8: memref<1x4x1x32xf32, #tpu.memory_space<vmem>>, %arg9: memref<16x32xf32, #tpu.memory_space<vmem>>) attributes {dimension_semantics = [#tpu.dimension_semantics<arbitrary>], iteration_bounds = array<i64: 1>, scalar_prefetch = 0 : i64, scratch_operands = 0 : i64, tpu.core_type = #tpu.core_type<tc>, window_params = [{pipeline_mode = #tpu.pipeline_mode<synchronous>, transform_indices = @transform_0, window_bounds = array<i64: 16, 32>}, {pipeline_mode = #tpu.pipeline_mode<synchronous>, transform_indices = @transform_1, window_bounds = array<i64: 2, 32, 128>}, {pipeline_mode = #tpu.pipeline_mode<synchronous>, transform_indices = @transform_2, window_bounds = array<i64: 2, 1, 128>}, {pipeline_mode = #tpu.pipeline_mode<synchronous>, transform_indices = @transform_3, window_bounds = array<i64: 2, 32, 64>}, {pipeline_mode = #tpu.pipeline_mode<synchronous>, transform_indices = @transform_4, window_bounds = array<i64: 2, 1, 64>}, {pipeline_mode = #tpu.pipeline_mode<synchronous>, transform_indices = @transform_5, window_bounds = array<i64: 2, 64, 32>}, {pipeline_mode = #tpu.pipeline_mode<synchronous>, transform_indices = @transform_6, window_bounds = array<i64: 2, 5, 32>}, {pipeline_mode = #tpu.pipeline_mode<synchronous>, transform_indices = @transform_7, window_bounds = array<i64: 1, 4, 1, 32>}, {pipeline_mode = #tpu.pipeline_mode<synchronous>, transform_indices = @transform_8, window_bounds = array<i64: 16, 32>}]} {
    %c0 = arith.constant 0 : index
    %c0_0 = arith.constant 0 : index
    %c0_1 = arith.constant 0 : index
    %c0_2 = arith.constant 0 : index
    %0 = vector.load %arg8[%c0, %c0_0, %c0_1, %c0_2] : memref<1x4x1x32xf32, #tpu.memory_space<vmem>>, vector<1x4x1x32xf32>
    %cst = arith.constant 0.353553385 : f32
    %1 = vector.broadcast %cst : f32 to vector<1x4x1x32xf32>
    %2 = arith.mulf %0, %1 : vector<1x4x1x32xf32>
    %c0_3 = arith.constant 0 : index
    %c0_4 = arith.constant 0 : index
    %3 = vector.load %arg1[%c0_3, %c0_4] : memref<16x32xf32, #tpu.memory_space<vmem>>, vector<16x32xf32>
    %c0_5 = arith.constant 0 : index
    %c0_6 = arith.constant 0 : index
    %c0_7 = arith.constant 0 : index
    %4 = vector.load %arg2[%c0_5, %c0_6, %c0_7] : memref<2x32x128xf32, #tpu.memory_space<vmem>>, vector<1x32x128xf32>
    %5 = vector.shape_cast %4 : vector<1x32x128xf32> to vector<32x128xf32>
    %c0_8 = arith.constant 0 : index
    %c0_9 = arith.constant 0 : index
    %c0_10 = arith.constant 0 : index
    %6 = vector.load %arg3[%c0_8, %c0_9, %c0_10] : memref<2x1x128xf32, #tpu.memory_space<vmem>>, vector<1x1x128xf32>
    %7 = vector.shape_cast %6 : vector<1x1x128xf32> to vector<1x128xf32>
    %c0_11 = arith.constant 0 : index
    %c0_12 = arith.constant 0 : index
    %c0_13 = arith.constant 0 : index
    %8 = vector.load %arg4[%c0_11, %c0_12, %c0_13] : memref<2x32x64xf32, #tpu.memory_space<vmem>>, vector<1x32x64xf32>
    %9 = vector.shape_cast %8 : vector<1x32x64xf32> to vector<32x64xf32>
    %c0_14 = arith.constant 0 : index
    %c0_15 = arith.constant 0 : index
    %c0_16 = arith.constant 0 : index
    %10 = vector.load %arg5[%c0_14, %c0_15, %c0_16] : memref<2x1x64xf32, #tpu.memory_space<vmem>>, vector<1x1x64xf32>
    %11 = vector.shape_cast %10 : vector<1x1x64xf32> to vector<1x64xf32>
    %c0_17 = arith.constant 0 : index
    %c0_18 = arith.constant 0 : index
    %c0_19 = arith.constant 0 : index
    %12 = vector.load %arg6[%c0_17, %c0_18, %c0_19] : memref<2x64x32xf32, #tpu.memory_space<vmem>>, vector<1x64x32xf32>
    %13 = vector.shape_cast %12 : vector<1x64x32xf32> to vector<64x32xf32>
    %c0_20 = arith.constant 0 : index
    %c0_21 = arith.constant 0 : index
    %c0_22 = arith.constant 0 : index
    %14 = vector.load %arg7[%c0_20, %c0_21, %c0_22] : memref<2x5x32xf32, #tpu.memory_space<vmem>>, vector<1x5x32xf32>
    %15 = vector.shape_cast %14 : vector<1x5x32xf32> to vector<5x32xf32>
    %16 = vector.extract_strided_slice %15 {offsets = [0, 0], sizes = [1, 32], strides = [1, 1]} : vector<5x32xf32> to vector<1x32xf32>
    %17 = vector.extract_strided_slice %15 {offsets = [1, 0], sizes = [1, 32], strides = [1, 1]} : vector<5x32xf32> to vector<1x32xf32>
    %18 = vector.extract_strided_slice %15 {offsets = [2, 0], sizes = [1, 32], strides = [1, 1]} : vector<5x32xf32> to vector<1x32xf32>
    %19 = vector.extract_strided_slice %15 {offsets = [3, 0], sizes = [1, 32], strides = [1, 1]} : vector<5x32xf32> to vector<1x32xf32>
    %20 = vector.extract_strided_slice %15 {offsets = [4, 0], sizes = [1, 32], strides = [1, 1]} : vector<5x32xf32> to vector<1x32xf32>
    %21 = vector.extract_strided_slice %5 {offsets = [0, 0], sizes = [32, 96], strides = [1, 1]} : vector<32x128xf32> to vector<32x96xf32>
    %cst_23 = arith.constant dense<0.000000e+00> : vector<16x96xf32>
    %22 = tpu.matmul %3, %21, %cst_23 {dimension_numbers = #tpu.dot_dimension_numbers<[1], [0], [0], [1], [0, 0, 1, 1], [], []>} : vector<16x32xf32>, vector<32x96xf32>, vector<16x96xf32> -> vector<16x96xf32>
    %23 = vector.extract_strided_slice %7 {offsets = [0, 0], sizes = [1, 96], strides = [1, 1]} : vector<1x128xf32> to vector<1x96xf32>
    %24 = vector.broadcast %23 : vector<1x96xf32> to vector<16x96xf32>
    %25 = arith.addf %22, %24 : vector<16x96xf32>
    %26 = vector.extract_strided_slice %25 {offsets = [0, 0], sizes = [16, 32], strides = [1, 1]} : vector<16x96xf32> to vector<16x32xf32>
    %27 = vector.extract_strided_slice %25 {offsets = [0, 32], sizes = [16, 32], strides = [1, 1]} : vector<16x96xf32> to vector<16x32xf32>
    %28 = vector.extract_strided_slice %25 {offsets = [0, 64], sizes = [16, 32], strides = [1, 1]} : vector<16x96xf32> to vector<16x32xf32>
    %29 = vector.shape_cast %26 : vector<16x32xf32> to vector<2x1x8x32xf32>
    %30 = vector.broadcast %29 : vector<2x1x8x32xf32> to vector<2x4x8x32xf32>
    %31 = vector.broadcast %2 : vector<1x4x1x32xf32> to vector<2x4x8x32xf32>
    %32 = arith.mulf %30, %31 : vector<2x4x8x32xf32>
    %33 = vector.shape_cast %32 : vector<2x4x8x32xf32> to vector<8x8x32xf32>
    %34 = vector.shape_cast %27 : vector<16x32xf32> to vector<2x1x8x32xf32>
    %35 = vector.shape_cast %34 : vector<2x1x8x32xf32> to vector<2x1x8x32xf32>
    %36 = vector.broadcast %35 : vector<2x1x8x32xf32> to vector<2x4x8x32xf32>
    %37 = vector.shape_cast %36 : vector<2x4x8x32xf32> to vector<8x8x32xf32>
    %38 = vector.shape_cast %28 : vector<16x32xf32> to vector<2x1x8x32xf32>
    %39 = vector.broadcast %38 : vector<2x1x8x32xf32> to vector<2x4x8x32xf32>
    %40 = vector.broadcast %0 : vector<1x4x1x32xf32> to vector<2x4x8x32xf32>
    %41 = arith.mulf %39, %40 : vector<2x4x8x32xf32>
    %42 = vector.shape_cast %41 : vector<2x4x8x32xf32> to vector<8x8x32xf32>
    "tpu.trace_start"() <{level = 10 : i32, message = "gqd,gkd->gqk"}> : () -> ()
    %cst_24 = arith.constant dense<0.000000e+00> : vector<8x8x8xf32>
    %43 = tpu.matmul %33, %37, %cst_24 {dimension_numbers = #tpu.dot_dimension_numbers<[2], [2], [1], [1], [0, 0, 0, 1, 1, 1], [0], [0]>} : vector<8x8x32xf32>, vector<8x8x32xf32>, vector<8x8x8xf32> -> vector<8x8x8xf32>
    "tpu.trace_stop"() : () -> ()
    %cst_25 = arith.constant dense<0xFF800000> : vector<8x8xf32>
    %44 = vector.multi_reduction <maximumf>, %43, %cst_25 [2] : vector<8x8x8xf32> to vector<8x8xf32>
    %45 = vector.shape_cast %44 : vector<8x8xf32> to vector<8x8x1xf32>
    %46 = vector.broadcast %45 : vector<8x8x1xf32> to vector<8x8x8xf32>
    %47 = arith.subf %43, %46 : vector<8x8x8xf32>
    %48 = math.exp %47 : vector<8x8x8xf32>
    %cst_26 = arith.constant dense<0.000000e+00> : vector<8x8xf32>
    %49 = vector.multi_reduction <add>, %48, %cst_26 [2] : vector<8x8x8xf32> to vector<8x8xf32>
    %50 = vector.shape_cast %49 : vector<8x8xf32> to vector<8x8x1xf32>
    %51 = tpu.reciprocal %50 {approx = true} : vector<8x8x1xf32> -> vector<8x8x1xf32>
    %52 = vector.broadcast %51 : vector<8x8x1xf32> to vector<8x8x8xf32>
    %53 = arith.mulf %48, %52 : vector<8x8x8xf32>
    "tpu.trace_start"() <{level = 10 : i32, message = "gqk,gkd->gqd"}> : () -> ()
    %cst_27 = arith.constant dense<0.000000e+00> : vector<8x8x32xf32>
    %54 = tpu.matmul %53, %42, %cst_27 {dimension_numbers = #tpu.dot_dimension_numbers<[2], [1], [1], [2], [0, 0, 0, 1, 1, 2], [0], [0]>} : vector<8x8x8xf32>, vector<8x8x32xf32>, vector<8x8x32xf32> -> vector<8x8x32xf32>
    "tpu.trace_stop"() : () -> ()
    %55 = vector.shape_cast %54 : vector<8x8x32xf32> to vector<2x4x8x32xf32>
    %cst_28 = arith.constant dense<0.000000e+00> : vector<2x8x32xf32>
    %56 = vector.multi_reduction <add>, %55, %cst_28 [1] : vector<2x4x8x32xf32> to vector<2x8x32xf32>
    %57 = vector.shape_cast %56 : vector<2x8x32xf32> to vector<16x32xf32>
    %58 = vector.extract_strided_slice %5 {offsets = [0, 96], sizes = [32, 32], strides = [1, 1]} : vector<32x128xf32> to vector<32x32xf32>
    %cst_29 = arith.constant dense<0.000000e+00> : vector<16x32xf32>
    %59 = tpu.matmul %57, %58, %cst_29 {dimension_numbers = #tpu.dot_dimension_numbers<[1], [0], [0], [1], [0, 0, 1, 1], [], []>} : vector<16x32xf32>, vector<32x32xf32>, vector<16x32xf32> -> vector<16x32xf32>
    %60 = vector.extract_strided_slice %7 {offsets = [0, 96], sizes = [1, 32], strides = [1, 1]} : vector<1x128xf32> to vector<1x32xf32>
    %61 = vector.broadcast %60 : vector<1x32xf32> to vector<16x32xf32>
    %62 = arith.addf %59, %61 : vector<16x32xf32>
    %63 = arith.addf %62, %3 : vector<16x32xf32>
    %cst_30 = arith.constant dense<0.000000e+00> : vector<16xf32>
    %64 = vector.multi_reduction <add>, %63, %cst_30 [1] : vector<16x32xf32> to vector<16xf32>
    %65 = vector.shape_cast %64 : vector<16xf32> to vector<16x1xf32>
    %cst_31 = arith.constant 3.200000e+01 : f32
    %66 = vector.broadcast %cst_31 : f32 to vector<16x1xf32>
    %67 = arith.divf %65, %66 : vector<16x1xf32>
    %68 = vector.broadcast %67 : vector<16x1xf32> to vector<16x32xf32>
    %69 = arith.subf %63, %68 : vector<16x32xf32>
    %70 = arith.mulf %69, %69 : vector<16x32xf32>
    %cst_32 = arith.constant dense<0.000000e+00> : vector<16xf32>
    %71 = vector.multi_reduction <add>, %70, %cst_32 [1] : vector<16x32xf32> to vector<16xf32>
    %72 = vector.shape_cast %71 : vector<16xf32> to vector<16x1xf32>
    %cst_33 = arith.constant 3.200000e+01 : f32
    %73 = vector.broadcast %cst_33 : f32 to vector<16x1xf32>
    %74 = arith.divf %72, %73 : vector<16x1xf32>
    %cst_34 = arith.constant 9.99999996E-13 : f32
    %75 = vector.broadcast %cst_34 : f32 to vector<16x1xf32>
    %76 = arith.addf %74, %75 : vector<16x1xf32>
    %77 = math.rsqrt %76 : vector<16x1xf32>
    %78 = vector.broadcast %77 : vector<16x1xf32> to vector<16x32xf32>
    %79 = arith.mulf %69, %78 : vector<16x32xf32>
    %80 = vector.broadcast %17 : vector<1x32xf32> to vector<16x32xf32>
    %81 = arith.mulf %79, %80 : vector<16x32xf32>
    %82 = vector.broadcast %18 : vector<1x32xf32> to vector<16x32xf32>
    %83 = arith.addf %81, %82 : vector<16x32xf32>
    %cst_35 = arith.constant dense<0.000000e+00> : vector<16x64xf32>
    %84 = tpu.matmul %83, %9, %cst_35 {dimension_numbers = #tpu.dot_dimension_numbers<[1], [0], [0], [1], [0, 0, 1, 1], [], []>} : vector<16x32xf32>, vector<32x64xf32>, vector<16x64xf32> -> vector<16x64xf32>
    %85 = vector.broadcast %11 : vector<1x64xf32> to vector<16x64xf32>
    %86 = arith.addf %84, %85 : vector<16x64xf32>
    %cst_36 = arith.constant 5.000000e-01 : f32
    %87 = vector.broadcast %cst_36 : f32 to vector<16x64xf32>
    %88 = arith.mulf %87, %86 : vector<16x64xf32>
    %cst_37 = arith.constant 0.707106769 : f32
    %89 = vector.broadcast %cst_37 : f32 to vector<16x64xf32>
    %90 = arith.mulf %86, %89 : vector<16x64xf32>
    %cst_38 = arith.constant 0.000000e+00 : f32
    %91 = vector.broadcast %cst_38 : f32 to vector<16x64xf32>
    %92 = arith.cmpf oge, %90, %91 : vector<16x64xf32>
    %cst_39 = arith.constant 1.000000e+00 : f32
    %cst_40 = arith.constant -1.000000e+00 : f32
    %93 = vector.broadcast %cst_39 : f32 to vector<16x64xf32>
    %94 = vector.broadcast %cst_40 : f32 to vector<16x64xf32>
    %95 = arith.select %92, %93, %94 : vector<16x64xi1>, vector<16x64xf32>
    %96 = math.absf %90 : vector<16x64xf32>
    %cst_41 = arith.constant 0.327591091 : f32
    %97 = vector.broadcast %cst_41 : f32 to vector<16x64xf32>
    %98 = arith.mulf %97, %96 : vector<16x64xf32>
    %cst_42 = arith.constant 1.000000e+00 : f32
    %99 = vector.broadcast %cst_42 : f32 to vector<16x64xf32>
    %100 = arith.addf %99, %98 : vector<16x64xf32>
    %cst_43 = arith.constant 1.000000e+00 : f32
    %101 = vector.broadcast %cst_43 : f32 to vector<16x64xf32>
    %102 = arith.divf %101, %100 : vector<16x64xf32>
    %cst_44 = arith.constant 1.06140542 : f32
    %103 = vector.broadcast %cst_44 : f32 to vector<16x64xf32>
    %104 = arith.mulf %103, %102 : vector<16x64xf32>
    %cst_45 = arith.constant -1.45315206 : f32
    %105 = vector.broadcast %cst_45 : f32 to vector<16x64xf32>
    %106 = arith.addf %104, %105 : vector<16x64xf32>
    %107 = arith.mulf %106, %102 : vector<16x64xf32>
    %cst_46 = arith.constant 1.42141378 : f32
    %108 = vector.broadcast %cst_46 : f32 to vector<16x64xf32>
    %109 = arith.addf %107, %108 : vector<16x64xf32>
    %110 = arith.mulf %109, %102 : vector<16x64xf32>
    %cst_47 = arith.constant -0.284496725 : f32
    %111 = vector.broadcast %cst_47 : f32 to vector<16x64xf32>
    %112 = arith.addf %110, %111 : vector<16x64xf32>
    %113 = arith.mulf %112, %102 : vector<16x64xf32>
    %cst_48 = arith.constant 0.254829586 : f32
    %114 = vector.broadcast %cst_48 : f32 to vector<16x64xf32>
    %115 = arith.addf %113, %114 : vector<16x64xf32>
    %116 = arith.mulf %115, %102 : vector<16x64xf32>
    %cst_49 = arith.constant 0.000000e+00 : f32
    %117 = vector.broadcast %cst_49 : f32 to vector<16x64xf32>
    %118 = arith.subf %117, %96 : vector<16x64xf32>
    %119 = arith.mulf %118, %96 : vector<16x64xf32>
    %120 = math.exp %119 : vector<16x64xf32>
    %121 = arith.mulf %116, %120 : vector<16x64xf32>
    %cst_50 = arith.constant 1.000000e+00 : f32
    %122 = vector.broadcast %cst_50 : f32 to vector<16x64xf32>
    %123 = arith.subf %122, %121 : vector<16x64xf32>
    %124 = arith.mulf %95, %123 : vector<16x64xf32>
    %cst_51 = arith.constant 1.000000e+00 : f32
    %125 = vector.broadcast %cst_51 : f32 to vector<16x64xf32>
    %126 = arith.addf %125, %124 : vector<16x64xf32>
    %127 = arith.mulf %88, %126 : vector<16x64xf32>
    %cst_52 = arith.constant dense<0.000000e+00> : vector<16x32xf32>
    %128 = tpu.matmul %127, %13, %cst_52 {dimension_numbers = #tpu.dot_dimension_numbers<[1], [0], [0], [1], [0, 0, 1, 1], [], []>} : vector<16x64xf32>, vector<64x32xf32>, vector<16x32xf32> -> vector<16x32xf32>
    %129 = vector.broadcast %16 : vector<1x32xf32> to vector<16x32xf32>
    %130 = arith.addf %128, %129 : vector<16x32xf32>
    %131 = arith.addf %130, %83 : vector<16x32xf32>
    %cst_53 = arith.constant dense<0.000000e+00> : vector<16xf32>
    %132 = vector.multi_reduction <add>, %131, %cst_53 [1] : vector<16x32xf32> to vector<16xf32>
    %133 = vector.shape_cast %132 : vector<16xf32> to vector<16x1xf32>
    %cst_54 = arith.constant 3.200000e+01 : f32
    %134 = vector.broadcast %cst_54 : f32 to vector<16x1xf32>
    %135 = arith.divf %133, %134 : vector<16x1xf32>
    %136 = vector.broadcast %135 : vector<16x1xf32> to vector<16x32xf32>
    %137 = arith.subf %131, %136 : vector<16x32xf32>
    %138 = arith.mulf %137, %137 : vector<16x32xf32>
    %cst_55 = arith.constant dense<0.000000e+00> : vector<16xf32>
    %139 = vector.multi_reduction <add>, %138, %cst_55 [1] : vector<16x32xf32> to vector<16xf32>
    %140 = vector.shape_cast %139 : vector<16xf32> to vector<16x1xf32>
    %cst_56 = arith.constant 3.200000e+01 : f32
    %141 = vector.broadcast %cst_56 : f32 to vector<16x1xf32>
    %142 = arith.divf %140, %141 : vector<16x1xf32>
    %cst_57 = arith.constant 9.99999996E-13 : f32
    %143 = vector.broadcast %cst_57 : f32 to vector<16x1xf32>
    %144 = arith.addf %142, %143 : vector<16x1xf32>
    %145 = math.rsqrt %144 : vector<16x1xf32>
    %146 = vector.broadcast %145 : vector<16x1xf32> to vector<16x32xf32>
    %147 = arith.mulf %137, %146 : vector<16x32xf32>
    %148 = vector.broadcast %19 : vector<1x32xf32> to vector<16x32xf32>
    %149 = arith.mulf %147, %148 : vector<16x32xf32>
    %150 = vector.broadcast %20 : vector<1x32xf32> to vector<16x32xf32>
    %151 = arith.addf %149, %150 : vector<16x32xf32>
    %c1 = arith.constant 1 : index
    %c0_58 = arith.constant 0 : index
    %c0_59 = arith.constant 0 : index
    %152 = vector.load %arg2[%c1, %c0_58, %c0_59] : memref<2x32x128xf32, #tpu.memory_space<vmem>>, vector<1x32x128xf32>
    %153 = vector.shape_cast %152 : vector<1x32x128xf32> to vector<32x128xf32>
    %c1_60 = arith.constant 1 : index
    %c0_61 = arith.constant 0 : index
    %c0_62 = arith.constant 0 : index
    %154 = vector.load %arg3[%c1_60, %c0_61, %c0_62] : memref<2x1x128xf32, #tpu.memory_space<vmem>>, vector<1x1x128xf32>
    %155 = vector.shape_cast %154 : vector<1x1x128xf32> to vector<1x128xf32>
    %c1_63 = arith.constant 1 : index
    %c0_64 = arith.constant 0 : index
    %c0_65 = arith.constant 0 : index
    %156 = vector.load %arg4[%c1_63, %c0_64, %c0_65] : memref<2x32x64xf32, #tpu.memory_space<vmem>>, vector<1x32x64xf32>
    %157 = vector.shape_cast %156 : vector<1x32x64xf32> to vector<32x64xf32>
    %c1_66 = arith.constant 1 : index
    %c0_67 = arith.constant 0 : index
    %c0_68 = arith.constant 0 : index
    %158 = vector.load %arg5[%c1_66, %c0_67, %c0_68] : memref<2x1x64xf32, #tpu.memory_space<vmem>>, vector<1x1x64xf32>
    %159 = vector.shape_cast %158 : vector<1x1x64xf32> to vector<1x64xf32>
    %c1_69 = arith.constant 1 : index
    %c0_70 = arith.constant 0 : index
    %c0_71 = arith.constant 0 : index
    %160 = vector.load %arg6[%c1_69, %c0_70, %c0_71] : memref<2x64x32xf32, #tpu.memory_space<vmem>>, vector<1x64x32xf32>
    %161 = vector.shape_cast %160 : vector<1x64x32xf32> to vector<64x32xf32>
    %c1_72 = arith.constant 1 : index
    %c0_73 = arith.constant 0 : index
    %c0_74 = arith.constant 0 : index
    %162 = vector.load %arg7[%c1_72, %c0_73, %c0_74] : memref<2x5x32xf32, #tpu.memory_space<vmem>>, vector<1x5x32xf32>
    %163 = vector.shape_cast %162 : vector<1x5x32xf32> to vector<5x32xf32>
    %164 = vector.extract_strided_slice %163 {offsets = [0, 0], sizes = [1, 32], strides = [1, 1]} : vector<5x32xf32> to vector<1x32xf32>
    %165 = vector.extract_strided_slice %163 {offsets = [1, 0], sizes = [1, 32], strides = [1, 1]} : vector<5x32xf32> to vector<1x32xf32>
    %166 = vector.extract_strided_slice %163 {offsets = [2, 0], sizes = [1, 32], strides = [1, 1]} : vector<5x32xf32> to vector<1x32xf32>
    %167 = vector.extract_strided_slice %163 {offsets = [3, 0], sizes = [1, 32], strides = [1, 1]} : vector<5x32xf32> to vector<1x32xf32>
    %168 = vector.extract_strided_slice %163 {offsets = [4, 0], sizes = [1, 32], strides = [1, 1]} : vector<5x32xf32> to vector<1x32xf32>
    %169 = vector.extract_strided_slice %153 {offsets = [0, 0], sizes = [32, 96], strides = [1, 1]} : vector<32x128xf32> to vector<32x96xf32>
    %cst_75 = arith.constant dense<0.000000e+00> : vector<16x96xf32>
    %170 = tpu.matmul %151, %169, %cst_75 {dimension_numbers = #tpu.dot_dimension_numbers<[1], [0], [0], [1], [0, 0, 1, 1], [], []>} : vector<16x32xf32>, vector<32x96xf32>, vector<16x96xf32> -> vector<16x96xf32>
    %171 = vector.extract_strided_slice %155 {offsets = [0, 0], sizes = [1, 96], strides = [1, 1]} : vector<1x128xf32> to vector<1x96xf32>
    %172 = vector.broadcast %171 : vector<1x96xf32> to vector<16x96xf32>
    %173 = arith.addf %170, %172 : vector<16x96xf32>
    %174 = vector.extract_strided_slice %173 {offsets = [0, 0], sizes = [16, 32], strides = [1, 1]} : vector<16x96xf32> to vector<16x32xf32>
    %175 = vector.extract_strided_slice %173 {offsets = [0, 32], sizes = [16, 32], strides = [1, 1]} : vector<16x96xf32> to vector<16x32xf32>
    %176 = vector.extract_strided_slice %173 {offsets = [0, 64], sizes = [16, 32], strides = [1, 1]} : vector<16x96xf32> to vector<16x32xf32>
    %177 = vector.shape_cast %174 : vector<16x32xf32> to vector<2x1x8x32xf32>
    %178 = vector.broadcast %177 : vector<2x1x8x32xf32> to vector<2x4x8x32xf32>
    %179 = vector.broadcast %2 : vector<1x4x1x32xf32> to vector<2x4x8x32xf32>
    %180 = arith.mulf %178, %179 : vector<2x4x8x32xf32>
    %181 = vector.shape_cast %180 : vector<2x4x8x32xf32> to vector<8x8x32xf32>
    %182 = vector.shape_cast %175 : vector<16x32xf32> to vector<2x1x8x32xf32>
    %183 = vector.shape_cast %182 : vector<2x1x8x32xf32> to vector<2x1x8x32xf32>
    %184 = vector.broadcast %183 : vector<2x1x8x32xf32> to vector<2x4x8x32xf32>
    %185 = vector.shape_cast %184 : vector<2x4x8x32xf32> to vector<8x8x32xf32>
    %186 = vector.shape_cast %176 : vector<16x32xf32> to vector<2x1x8x32xf32>
    %187 = vector.broadcast %186 : vector<2x1x8x32xf32> to vector<2x4x8x32xf32>
    %188 = vector.broadcast %0 : vector<1x4x1x32xf32> to vector<2x4x8x32xf32>
    %189 = arith.mulf %187, %188 : vector<2x4x8x32xf32>
    %190 = vector.shape_cast %189 : vector<2x4x8x32xf32> to vector<8x8x32xf32>
    "tpu.trace_start"() <{level = 10 : i32, message = "gqd,gkd->gqk"}> : () -> ()
    %cst_76 = arith.constant dense<0.000000e+00> : vector<8x8x8xf32>
    %191 = tpu.matmul %181, %185, %cst_76 {dimension_numbers = #tpu.dot_dimension_numbers<[2], [2], [1], [1], [0, 0, 0, 1, 1, 1], [0], [0]>} : vector<8x8x32xf32>, vector<8x8x32xf32>, vector<8x8x8xf32> -> vector<8x8x8xf32>
    "tpu.trace_stop"() : () -> ()
    %cst_77 = arith.constant dense<0xFF800000> : vector<8x8xf32>
    %192 = vector.multi_reduction <maximumf>, %191, %cst_77 [2] : vector<8x8x8xf32> to vector<8x8xf32>
    %193 = vector.shape_cast %192 : vector<8x8xf32> to vector<8x8x1xf32>
    %194 = vector.broadcast %193 : vector<8x8x1xf32> to vector<8x8x8xf32>
    %195 = arith.subf %191, %194 : vector<8x8x8xf32>
    %196 = math.exp %195 : vector<8x8x8xf32>
    %cst_78 = arith.constant dense<0.000000e+00> : vector<8x8xf32>
    %197 = vector.multi_reduction <add>, %196, %cst_78 [2] : vector<8x8x8xf32> to vector<8x8xf32>
    %198 = vector.shape_cast %197 : vector<8x8xf32> to vector<8x8x1xf32>
    %199 = tpu.reciprocal %198 {approx = true} : vector<8x8x1xf32> -> vector<8x8x1xf32>
    %200 = vector.broadcast %199 : vector<8x8x1xf32> to vector<8x8x8xf32>
    %201 = arith.mulf %196, %200 : vector<8x8x8xf32>
    "tpu.trace_start"() <{level = 10 : i32, message = "gqk,gkd->gqd"}> : () -> ()
    %cst_79 = arith.constant dense<0.000000e+00> : vector<8x8x32xf32>
    %202 = tpu.matmul %201, %190, %cst_79 {dimension_numbers = #tpu.dot_dimension_numbers<[2], [1], [1], [2], [0, 0, 0, 1, 1, 2], [0], [0]>} : vector<8x8x8xf32>, vector<8x8x32xf32>, vector<8x8x32xf32> -> vector<8x8x32xf32>
    "tpu.trace_stop"() : () -> ()
    %203 = vector.shape_cast %202 : vector<8x8x32xf32> to vector<2x4x8x32xf32>
    %cst_80 = arith.constant dense<0.000000e+00> : vector<2x8x32xf32>
    %204 = vector.multi_reduction <add>, %203, %cst_80 [1] : vector<2x4x8x32xf32> to vector<2x8x32xf32>
    %205 = vector.shape_cast %204 : vector<2x8x32xf32> to vector<16x32xf32>
    %206 = vector.extract_strided_slice %153 {offsets = [0, 96], sizes = [32, 32], strides = [1, 1]} : vector<32x128xf32> to vector<32x32xf32>
    %cst_81 = arith.constant dense<0.000000e+00> : vector<16x32xf32>
    %207 = tpu.matmul %205, %206, %cst_81 {dimension_numbers = #tpu.dot_dimension_numbers<[1], [0], [0], [1], [0, 0, 1, 1], [], []>} : vector<16x32xf32>, vector<32x32xf32>, vector<16x32xf32> -> vector<16x32xf32>
    %208 = vector.extract_strided_slice %155 {offsets = [0, 96], sizes = [1, 32], strides = [1, 1]} : vector<1x128xf32> to vector<1x32xf32>
    %209 = vector.broadcast %208 : vector<1x32xf32> to vector<16x32xf32>
    %210 = arith.addf %207, %209 : vector<16x32xf32>
    %211 = arith.addf %210, %151 : vector<16x32xf32>
    %cst_82 = arith.constant dense<0.000000e+00> : vector<16xf32>
    %212 = vector.multi_reduction <add>, %211, %cst_82 [1] : vector<16x32xf32> to vector<16xf32>
    %213 = vector.shape_cast %212 : vector<16xf32> to vector<16x1xf32>
    %cst_83 = arith.constant 3.200000e+01 : f32
    %214 = vector.broadcast %cst_83 : f32 to vector<16x1xf32>
    %215 = arith.divf %213, %214 : vector<16x1xf32>
    %216 = vector.broadcast %215 : vector<16x1xf32> to vector<16x32xf32>
    %217 = arith.subf %211, %216 : vector<16x32xf32>
    %218 = arith.mulf %217, %217 : vector<16x32xf32>
    %cst_84 = arith.constant dense<0.000000e+00> : vector<16xf32>
    %219 = vector.multi_reduction <add>, %218, %cst_84 [1] : vector<16x32xf32> to vector<16xf32>
    %220 = vector.shape_cast %219 : vector<16xf32> to vector<16x1xf32>
    %cst_85 = arith.constant 3.200000e+01 : f32
    %221 = vector.broadcast %cst_85 : f32 to vector<16x1xf32>
    %222 = arith.divf %220, %221 : vector<16x1xf32>
    %cst_86 = arith.constant 9.99999996E-13 : f32
    %223 = vector.broadcast %cst_86 : f32 to vector<16x1xf32>
    %224 = arith.addf %222, %223 : vector<16x1xf32>
    %225 = math.rsqrt %224 : vector<16x1xf32>
    %226 = vector.broadcast %225 : vector<16x1xf32> to vector<16x32xf32>
    %227 = arith.mulf %217, %226 : vector<16x32xf32>
    %228 = vector.broadcast %165 : vector<1x32xf32> to vector<16x32xf32>
    %229 = arith.mulf %227, %228 : vector<16x32xf32>
    %230 = vector.broadcast %166 : vector<1x32xf32> to vector<16x32xf32>
    %231 = arith.addf %229, %230 : vector<16x32xf32>
    %cst_87 = arith.constant dense<0.000000e+00> : vector<16x64xf32>
    %232 = tpu.matmul %231, %157, %cst_87 {dimension_numbers = #tpu.dot_dimension_numbers<[1], [0], [0], [1], [0, 0, 1, 1], [], []>} : vector<16x32xf32>, vector<32x64xf32>, vector<16x64xf32> -> vector<16x64xf32>
    %233 = vector.broadcast %159 : vector<1x64xf32> to vector<16x64xf32>
    %234 = arith.addf %232, %233 : vector<16x64xf32>
    %cst_88 = arith.constant 5.000000e-01 : f32
    %235 = vector.broadcast %cst_88 : f32 to vector<16x64xf32>
    %236 = arith.mulf %235, %234 : vector<16x64xf32>
    %cst_89 = arith.constant 0.707106769 : f32
    %237 = vector.broadcast %cst_89 : f32 to vector<16x64xf32>
    %238 = arith.mulf %234, %237 : vector<16x64xf32>
    %cst_90 = arith.constant 0.000000e+00 : f32
    %239 = vector.broadcast %cst_90 : f32 to vector<16x64xf32>
    %240 = arith.cmpf oge, %238, %239 : vector<16x64xf32>
    %cst_91 = arith.constant 1.000000e+00 : f32
    %cst_92 = arith.constant -1.000000e+00 : f32
    %241 = vector.broadcast %cst_91 : f32 to vector<16x64xf32>
    %242 = vector.broadcast %cst_92 : f32 to vector<16x64xf32>
    %243 = arith.select %240, %241, %242 : vector<16x64xi1>, vector<16x64xf32>
    %244 = math.absf %238 : vector<16x64xf32>
    %cst_93 = arith.constant 0.327591091 : f32
    %245 = vector.broadcast %cst_93 : f32 to vector<16x64xf32>
    %246 = arith.mulf %245, %244 : vector<16x64xf32>
    %cst_94 = arith.constant 1.000000e+00 : f32
    %247 = vector.broadcast %cst_94 : f32 to vector<16x64xf32>
    %248 = arith.addf %247, %246 : vector<16x64xf32>
    %cst_95 = arith.constant 1.000000e+00 : f32
    %249 = vector.broadcast %cst_95 : f32 to vector<16x64xf32>
    %250 = arith.divf %249, %248 : vector<16x64xf32>
    %cst_96 = arith.constant 1.06140542 : f32
    %251 = vector.broadcast %cst_96 : f32 to vector<16x64xf32>
    %252 = arith.mulf %251, %250 : vector<16x64xf32>
    %cst_97 = arith.constant -1.45315206 : f32
    %253 = vector.broadcast %cst_97 : f32 to vector<16x64xf32>
    %254 = arith.addf %252, %253 : vector<16x64xf32>
    %255 = arith.mulf %254, %250 : vector<16x64xf32>
    %cst_98 = arith.constant 1.42141378 : f32
    %256 = vector.broadcast %cst_98 : f32 to vector<16x64xf32>
    %257 = arith.addf %255, %256 : vector<16x64xf32>
    %258 = arith.mulf %257, %250 : vector<16x64xf32>
    %cst_99 = arith.constant -0.284496725 : f32
    %259 = vector.broadcast %cst_99 : f32 to vector<16x64xf32>
    %260 = arith.addf %258, %259 : vector<16x64xf32>
    %261 = arith.mulf %260, %250 : vector<16x64xf32>
    %cst_100 = arith.constant 0.254829586 : f32
    %262 = vector.broadcast %cst_100 : f32 to vector<16x64xf32>
    %263 = arith.addf %261, %262 : vector<16x64xf32>
    %264 = arith.mulf %263, %250 : vector<16x64xf32>
    %cst_101 = arith.constant 0.000000e+00 : f32
    %265 = vector.broadcast %cst_101 : f32 to vector<16x64xf32>
    %266 = arith.subf %265, %244 : vector<16x64xf32>
    %267 = arith.mulf %266, %244 : vector<16x64xf32>
    %268 = math.exp %267 : vector<16x64xf32>
    %269 = arith.mulf %264, %268 : vector<16x64xf32>
    %cst_102 = arith.constant 1.000000e+00 : f32
    %270 = vector.broadcast %cst_102 : f32 to vector<16x64xf32>
    %271 = arith.subf %270, %269 : vector<16x64xf32>
    %272 = arith.mulf %243, %271 : vector<16x64xf32>
    %cst_103 = arith.constant 1.000000e+00 : f32
    %273 = vector.broadcast %cst_103 : f32 to vector<16x64xf32>
    %274 = arith.addf %273, %272 : vector<16x64xf32>
    %275 = arith.mulf %236, %274 : vector<16x64xf32>
    %cst_104 = arith.constant dense<0.000000e+00> : vector<16x32xf32>
    %276 = tpu.matmul %275, %161, %cst_104 {dimension_numbers = #tpu.dot_dimension_numbers<[1], [0], [0], [1], [0, 0, 1, 1], [], []>} : vector<16x64xf32>, vector<64x32xf32>, vector<16x32xf32> -> vector<16x32xf32>
    %277 = vector.broadcast %164 : vector<1x32xf32> to vector<16x32xf32>
    %278 = arith.addf %276, %277 : vector<16x32xf32>
    %279 = arith.addf %278, %231 : vector<16x32xf32>
    %cst_105 = arith.constant dense<0.000000e+00> : vector<16xf32>
    %280 = vector.multi_reduction <add>, %279, %cst_105 [1] : vector<16x32xf32> to vector<16xf32>
    %281 = vector.shape_cast %280 : vector<16xf32> to vector<16x1xf32>
    %cst_106 = arith.constant 3.200000e+01 : f32
    %282 = vector.broadcast %cst_106 : f32 to vector<16x1xf32>
    %283 = arith.divf %281, %282 : vector<16x1xf32>
    %284 = vector.broadcast %283 : vector<16x1xf32> to vector<16x32xf32>
    %285 = arith.subf %279, %284 : vector<16x32xf32>
    %286 = arith.mulf %285, %285 : vector<16x32xf32>
    %cst_107 = arith.constant dense<0.000000e+00> : vector<16xf32>
    %287 = vector.multi_reduction <add>, %286, %cst_107 [1] : vector<16x32xf32> to vector<16xf32>
    %288 = vector.shape_cast %287 : vector<16xf32> to vector<16x1xf32>
    %cst_108 = arith.constant 3.200000e+01 : f32
    %289 = vector.broadcast %cst_108 : f32 to vector<16x1xf32>
    %290 = arith.divf %288, %289 : vector<16x1xf32>
    %cst_109 = arith.constant 9.99999996E-13 : f32
    %291 = vector.broadcast %cst_109 : f32 to vector<16x1xf32>
    %292 = arith.addf %290, %291 : vector<16x1xf32>
    %293 = math.rsqrt %292 : vector<16x1xf32>
    %294 = vector.broadcast %293 : vector<16x1xf32> to vector<16x32xf32>
    %295 = arith.mulf %285, %294 : vector<16x32xf32>
    %296 = vector.broadcast %167 : vector<1x32xf32> to vector<16x32xf32>
    %297 = arith.mulf %295, %296 : vector<16x32xf32>
    %298 = vector.broadcast %168 : vector<1x32xf32> to vector<16x32xf32>
    %299 = arith.addf %297, %298 : vector<16x32xf32>
    %c0_110 = arith.constant 0 : index
    %c0_111 = arith.constant 0 : index
    %300 = vector.load %arg9[%c0_110, %c0_111] : memref<16x32xf32, #tpu.memory_space<vmem>>, vector<16x32xf32>
    tpu.vector_store %arg9[%c0_110, %c0_111], %299 {strides = array<i32>} : memref<16x32xf32, #tpu.memory_space<vmem>>, vector<16x32xf32>,
    return
  }
  func.func @transform_0(%arg0: i32) -> (i32, i32) {
    %c0_i32 = arith.constant 0 : i32
    %c0_i32_0 = arith.constant 0 : i32
    %c0_i32_1 = arith.constant 0 : i32
    return %c0_i32, %c0_i32_0 : i32, i32
  }
  func.func @transform_1(%arg0: i32) -> (i32, i32, i32) {
    %c0_i32 = arith.constant 0 : i32
    %c0_i32_0 = arith.constant 0 : i32
    %c0_i32_1 = arith.constant 0 : i32
    %c0_i32_2 = arith.constant 0 : i32
    return %c0_i32, %c0_i32_0, %c0_i32_1 : i32, i32, i32
  }
  func.func @transform_2(%arg0: i32) -> (i32, i32, i32) {
    %c0_i32 = arith.constant 0 : i32
    %c0_i32_0 = arith.constant 0 : i32
    %c0_i32_1 = arith.constant 0 : i32
    %c0_i32_2 = arith.constant 0 : i32
    return %c0_i32, %c0_i32_0, %c0_i32_1 : i32, i32, i32
  }
  func.func @transform_3(%arg0: i32) -> (i32, i32, i32) {
    %c0_i32 = arith.constant 0 : i32
    %c0_i32_0 = arith.constant 0 : i32
    %c0_i32_1 = arith.constant 0 : i32
    %c0_i32_2 = arith.constant 0 : i32
    return %c0_i32, %c0_i32_0, %c0_i32_1 : i32, i32, i32
  }
  func.func @transform_4(%arg0: i32) -> (i32, i32, i32) {
    %c0_i32 = arith.constant 0 : i32
    %c0_i32_0 = arith.constant 0 : i32
    %c0_i32_1 = arith.constant 0 : i32
    %c0_i32_2 = arith.constant 0 : i32
    return %c0_i32, %c0_i32_0, %c0_i32_1 : i32, i32, i32
  }
  func.func @transform_5(%arg0: i32) -> (i32, i32, i32) {
    %c0_i32 = arith.constant 0 : i32
    %c0_i32_0 = arith.constant 0 : i32
    %c0_i32_1 = arith.constant 0 : i32
    %c0_i32_2 = arith.constant 0 : i32
    return %c0_i32, %c0_i32_0, %c0_i32_1 : i32, i32, i32
  }
  func.func @transform_6(%arg0: i32) -> (i32, i32, i32) {
    %c0_i32 = arith.constant 0 : i32
    %c0_i32_0 = arith.constant 0 : i32
    %c0_i32_1 = arith.constant 0 : i32
    %c0_i32_2 = arith.constant 0 : i32
    return %c0_i32, %c0_i32_0, %c0_i32_1 : i32, i32, i32
  }
  func.func @transform_7(%arg0: i32) -> (i32, i32, i32, i32) {
    %c0_i32 = arith.constant 0 : i32
    %c0_i32_0 = arith.constant 0 : i32
    %c0_i32_1 = arith.constant 0 : i32
    %c0_i32_2 = arith.constant 0 : i32
    %c0_i32_3 = arith.constant 0 : i32
    return %c0_i32, %c0_i32_0, %c0_i32_1, %c0_i32_2 : i32, i32, i32, i32
  }
  func.func @transform_8(%arg0: i32) -> (i32, i32) {
    %c0_i32 = arith.constant 0 : i32
    %c0_i32_0 = arith.constant 0 : i32
    %c0_i32_1 = arith.constant 0 : i32
    return %c0_i32, %c0_i32_0 : i32, i32
  }
}

</mosaic_0001>

<llo_original>
// kernel: tpu_custom_call.1
$region0: #{tpu_custom_call.1}
  #allocation0 [shape = 'u32[]', space=smem, size = 0x4, offset = 0x4, fixed_abs, tag = 'smem constant byte address 0x4 - core index']
  #allocation1 [shape = 'u32[144,128]{1,0:T(1,128)}', space=vmem, size = 0x12000, scoped, tag = 'internal scratch']
  %s0 = inlined_call_operand.vmem [shape: f32[16,32], index: 0, kind: input, shape index: {}]
  %s1 = inlined_call_operand.vmem [shape: f32[2,32,128], index: 1, kind: input, shape index: {}]
  %s2 = inlined_call_operand.vmem [shape: f32[2,1,128], index: 2, kind: input, shape index: {}]
  %s3 = inlined_call_operand.vmem [shape: f32[2,32,64], index: 3, kind: input, shape index: {}]
  %s4 = inlined_call_operand.vmem [shape: f32[2,1,64], index: 4, kind: input, shape index: {}]
  %s5 = inlined_call_operand.vmem [shape: f32[2,64,32], index: 5, kind: input, shape index: {}]
  %s6 = inlined_call_operand.vmem [shape: f32[2,5,32], index: 6, kind: input, shape index: {}]
  %s7 = inlined_call_operand.vmem [shape: f32[1,4,1,32], index: 7, kind: input, shape index: {}]
  %s8 = inlined_call_operand.hbm [shape: f32[16,32], index: 8, kind: output, shape index: {}]
  %s9 = sld [smem:[#allocation0]]
  $region42: #{tpu_custom_call.1} parent=0
    _
  %s11 = ssub.s32 1, %s9
  %s12 = scalar_select 0, %s11, %s9
  $region1: #{tpu_custom_call.1} parent=0
    #allocation2 [shape = 'u8[8192]{0}', space=vmem, size = 0x2000, scoped, tag = 'output window, operand 0, single buffered']
    #allocation3 [shape = 's32[1]{0}', space=sflag, size = 0x4, scoped, tag = 'scoped memory for tpu_custom_call.1']
    %13 = vsyncpa [#allocation3], 0
    // Predicated region
    $region2: #{tpu_custom_call.1} parent=1 // pred_check
      _
    $region3: #{tpu_custom_call.1} parent=1 // pred_check_branch
      %15 = sbr.rel (0) target = $region5
    $region4: #{tpu_custom_call.1} parent=1 // pred_region
      _
    $region5: #{tpu_custom_call.1} parent=1 // pred_fallthru
      _
    // Predicated region
    $region6: #{tpu_custom_call.1} parent=1 // pred_check
      _
    $region7: #{tpu_custom_call.1} parent=1 // pred_check_branch
      %17 = sbr.rel (0) target = $region9
    $region8: #{tpu_custom_call.1} parent=1 // pred_region
      _
    $region9: #{tpu_custom_call.1} parent=1 // pred_fallthru
      _
    // Predicated region
    $region10: #{tpu_custom_call.1} parent=1 // pred_check
      _
    $region11: #{tpu_custom_call.1} parent=1 // pred_check_branch
      %19 = sbr.rel (0) target = $region13
    $region12: #{tpu_custom_call.1} parent=1 // pred_region
      _
    $region13: #{tpu_custom_call.1} parent=1 // pred_fallthru
      _
    // Predicated region
    $region14: #{tpu_custom_call.1} parent=1 // pred_check
      _
    $region15: #{tpu_custom_call.1} parent=1 // pred_check_branch
      %21 = sbr.rel (0) target = $region17
    $region16: #{tpu_custom_call.1} parent=1 // pred_region
      _
    $region17: #{tpu_custom_call.1} parent=1 // pred_fallthru
      _
    // Predicated region
    $region18: #{tpu_custom_call.1} parent=1 // pred_check
      _
    $region19: #{tpu_custom_call.1} parent=1 // pred_check_branch
      %23 = sbr.rel (0) target = $region21
    $region20: #{tpu_custom_call.1} parent=1 // pred_region
      _
    $region21: #{tpu_custom_call.1} parent=1 // pred_fallthru
      _
    // Predicated region
    $region22: #{tpu_custom_call.1} parent=1 // pred_check
      _
    $region23: #{tpu_custom_call.1} parent=1 // pred_check_branch
      %25 = sbr.rel (0) target = $region25
    $region24: #{tpu_custom_call.1} parent=1 // pred_region
      _
    $region25: #{tpu_custom_call.1} parent=1 // pred_fallthru
      _
    // Predicated region
    $region26: #{tpu_custom_call.1} parent=1 // pred_check
      _
    $region27: #{tpu_custom_call.1} parent=1 // pred_check_branch
      %27 = sbr.rel (0) target = $region29
    $region28: #{tpu_custom_call.1} parent=1 // pred_region
      _
    $region29: #{tpu_custom_call.1} parent=1 // pred_fallthru
      _
    // Predicated region
    $region30: #{tpu_custom_call.1} parent=1 // pred_check
      _
    $region31: #{tpu_custom_call.1} parent=1 // pred_check_branch
      %29 = sbr.rel (0) target = $region33
    $region32: #{tpu_custom_call.1} parent=1 // pred_region
      _
    $region33: #{tpu_custom_call.1} parent=1 // pred_fallthru
      _
    %v30 = vld [vmem:[%s7] sm:$0x1]
    %v31 = vld [vmem:[%s7 + $0x1] sm:$0x1]
    %v32 = vld [vmem:[%s7 + $0x2] sm:$0x1]
    %v33 = vld [vmem:[%s7 + $0x3] sm:$0x1]
    %v34 = vmul.f32 %v30, 0.35355338
    %v35 = vmul.f32 %v31, 0.35355338
    %v36 = vmul.f32 %v32, 0.35355338
    %v37 = vmul.f32 %v33, 0.35355338
    %v38 = vld [vmem:[%s0] sm:$0xff]
    %v39 = vld [vmem:[%s0 + $0x8] sm:$0xff]
    %v40 = vld [vmem:[%s1] sm:$0xff]
    %v41 = vld [vmem:[%s1 + $0x8] sm:$0xff]
    %v42 = vld [vmem:[%s1 + $0x10] sm:$0xff]
    %v43 = vld [vmem:[%s1 + $0x18] sm:$0xff]
    %v44 = vld [vmem:[%s2] sm:$0x1]
    %v45 = vld [vmem:[%s3] sm:$0xff]
    %v46 = vld [vmem:[%s3 + $0x8] sm:$0xff]
    %v47 = vld [vmem:[%s3 + $0x10] sm:$0xff]
    %v48 = vld [vmem:[%s3 + $0x18] sm:$0xff]
    %v49 = vld [vmem:[%s4] sm:$0x1]
    %v50 = vld [vmem:[%s5] sm:$0xff]
    %v51 = vld [vmem:[%s5 + $0x8] sm:$0xff]
    %v52 = vld [vmem:[%s5 + $0x10] sm:$0xff]
    %v53 = vld [vmem:[%s5 + $0x18] sm:$0xff]
    %v54 = vld [vmem:[%s5 + $0x20] sm:$0xff]
    %v55 = vld [vmem:[%s5 + $0x28] sm:$0xff]
    %v56 = vld [vmem:[%s5 + $0x30] sm:$0xff]
    %v57 = vld [vmem:[%s5 + $0x38] sm:$0xff]
    %v58 = vld [vmem:[%s6] sm:$0x1f]
    %v60 = vlaneseq
    %v61 = vshrl.u32 %v60, 7
    %v62 = vsub.s32 0, %v61
    %v63 = vrot.slane %v44, %v62
    %vm65 = vcmask 261120
    %v67 = vsel %vm65, %v38, 0
    %v70 = vsel %vm65, %v39, 0
    %72 = vmatprep.subr.mxu0 0.0
    %73 = vmatpush1.msra.mxu0 %v40
    %74 = vmatprep.subr.mxu0 0.0
    %75 = vmatpush1.msra.mxu0 %v41
    %76 = vmatprep.subr.mxu0 0.0
    %77 = vmatpush1.msra.mxu0 %v42
    %78 = vmatprep.subr.mxu0 0.0
    %79 = vmatpush1.msra.mxu0 %v43
    %80 = vmatprep.subr.mxu0 0.0
    %81 = vmatpush1.msra.mxu0 0.0
    %82 = vmatprep.subr.mxu0 0.0
    %83 = vmatpush1.msra.mxu0 0.0
    %84 = vmatprep.subr.mxu0 0.0
    %85 = vmatpush1.msra.mxu0 0.0
    %86 = vmatprep.subr.mxu0 0.0
    %87 = vmatpush1.msra.mxu0 0.0
    %88 = vmatprep.subr.mxu0 0.0
    %89 = vmatpush1.msra.mxu0 0.0
    %90 = vmatprep.subr.mxu0 0.0
    %91 = vmatpush1.msra.mxu0 0.0
    %92 = vmatprep.subr.mxu0 0.0
    %93 = vmatpush1.msra.mxu0 0.0
    %94 = vmatprep.subr.mxu0 0.0
    %95 = vmatpush1.msra.mxu0 0.0
    %96 = vmatprep.subr.mxu0 0.0
    %97 = vmatpush1.msra.mxu0 0.0
    %98 = vmatprep.subr.mxu0 0.0
    %99 = vmatpush1.msra.mxu0 0.0
    %100 = vmatprep.subr.mxu0 0.0
    %101 = vmatpush1.msra.mxu0 0.0
    %102 = vmatprep.subr.mxu0 0.0
    %103 = vmatpush1.msra.mxu0 0.0
    %104 = vmatprep.subr.mxu0 0.0
    %105 = vmatpush1.msra.mxu0 0.0
    %106 = vmatprep.subr.mxu0 0.0
    %107 = vmatpush1.msra.mxu0 0.0
    %108 = vmatprep.subr.mxu0 0.0
    %109 = vmatpush1.msra.mxu0 0.0
    %110 = vmatprep.subr.mxu0 0.0
    %111 = vmatpush1.msra.mxu0 0.0
    %112 = vmatprep.subr.mxu0 0.0
    %113 = vmatpush1.msra.mxu0 0.0
    %114 = vmatprep.subr.mxu0 0.0
    %115 = vmatpush1.msra.mxu0 0.0
    %116 = vmatprep.subr.mxu0 0.0
    %117 = vmatpush1.msra.mxu0 0.0
    %118 = vmatprep.subr.mxu0 0.0
    %119 = vmatpush1.msra.mxu0 0.0
    %120 = vmatprep.subr.mxu0 0.0
    %121 = vmatpush1.msra.mxu0 0.0
    %122 = vmatprep.subr.mxu0 0.0
    %123 = vmatpush1.msra.mxu0 0.0
    %124 = vmatprep.subr.mxu0 0.0
    %125 = vmatpush1.msra.mxu0 0.0
    %126 = vmatprep.subr.mxu0 0.0
    %127 = vmatpush1.msra.mxu0 0.0
    %128 = vmatprep.subr.mxu0 0.0
    %129 = vmatpush1.msra.mxu0 0.0
    %130 = vmatprep.subr.mxu0 0.0
    %131 = vmatpush1.msra.mxu0 0.0
    %132 = vmatprep.subr.mxu0 0.0
    %133 = vmatpush1.msra.mxu0 0.0
    %134 = vmatprep.subr.mxu0 0.0
    %135 = vmatpush1.msra.mxu0 0.0
    %136 = vmatprep.mubr.f32.mxu0 0.0
    %137 = vmatmul.mubr.f32.gmra.mrb[0].mxu0 %v67
    %v138 = vpop.f32.mrb[0].mxu0
    %v139 = vadd.f32 %v63, %v138
    %v140 = vpop.f32.mrb[0].mxu0
    %141 = vmatprep.mubr.f32.mxu0 0.0
    %142 = vmatmul.mubr.f32.gmra.mrb[0].mxu0 %v70
    %v143 = vpop.f32.mrb[0].mxu0
    %v144 = vadd.f32 %v63, %v143
    %v145 = vpop.f32.mrb[0].mxu0
    %146 = vdwg.mxu0
    %v151 = vlaneseq
    %v152 = vshrl.u32 %v151, 7
    %v153 = vsub.s32 0, %v152
    %v154 = vrot.slane %v34, %v153
    %v155 = vlaneseq
    %v156 = vshrl.u32 %v155, 7
    %v157 = vsub.s32 0, %v156
    %v158 = vrot.slane %v35, %v157
    %v159 = vlaneseq
    %v160 = vshrl.u32 %v159, 7
    %v161 = vsub.s32 0, %v160
    %v162 = vrot.slane %v36, %v161
    %v163 = vlaneseq
    %v164 = vshrl.u32 %v163, 7
    %v165 = vsub.s32 0, %v164
    %v166 = vrot.slane %v37, %v165
    %v171 = vmul.f32 %v139, %v154
    %v172 = vmul.f32 %v139, %v158
    %v173 = vmul.f32 %v139, %v162
    %v174 = vmul.f32 %v139, %v166
    %v175 = vmul.f32 %v144, %v154
    %v176 = vmul.f32 %v144, %v158
    %v177 = vmul.f32 %v144, %v162
    %v178 = vmul.f32 %v144, %v166
    %v183 = vlaneseq
    %v184 = vshrl.u32 %v183, 7
    %v185 = vsub.s32 0, %v184
    %v186 = vrot.slane %v30, %v185
    %v187 = vlaneseq
    %v188 = vshrl.u32 %v187, 7
    %v189 = vsub.s32 0, %v188
    %v190 = vrot.slane %v31, %v189
    %v191 = vlaneseq
    %v192 = vshrl.u32 %v191, 7
    %v193 = vsub.s32 0, %v192
    %v194 = vrot.slane %v32, %v193
    %v195 = vlaneseq
    %v196 = vshrl.u32 %v195, 7
    %v197 = vsub.s32 0, %v196
    %v198 = vrot.slane %v33, %v197
    %199 = vrot.lane.b32.xlu0 %v186, 64
    %v200 = vpop.permute.xlu0 %199
    %201 = vrot.lane.b32.xlu0 %v190, 64
    %v202 = vpop.permute.xlu0 %201
    %203 = vrot.lane.b32.xlu0 %v194, 64
    %v204 = vpop.permute.xlu0 %203
    %205 = vrot.lane.b32.xlu0 %v198, 64
    %v206 = vpop.permute.xlu0 %205
    %v211 = vmul.f32 %v139, %v200
    %v212 = vmul.f32 %v139, %v202
    %v213 = vmul.f32 %v139, %v204
    %v214 = vmul.f32 %v139, %v206
    %v215 = vmul.f32 %v144, %v200
    %v216 = vmul.f32 %v144, %v202
    %v217 = vmul.f32 %v144, %v204
    %v218 = vmul.f32 %v144, %v206
    %220 = vrot.lane.b32.xlu0 %v139, 96
    %v221 = vpop.permute.xlu0 %220
    %v223 = vsel %vm65, %v171, 0
    %v225 = vsel %vm65, %v221, 0
    %227 = vmatprep.subr.mxu0 0.0
    %228 = vmatpush1.xpose.msra.mxu0 %v225
    %229 = vmatprep.subr.mxu0 0.0
    %230 = vmatpush1.xpose.msra.mxu0 0.0
    %231 = vmatprep.subr.mxu0 0.0
    %232 = vmatpush1.xpose.msra.mxu0 0.0
    %233 = vmatprep.subr.mxu0 0.0
    %234 = vmatpush1.xpose.msra.mxu0 0.0
    %235 = vmatprep.subr.mxu0 0.0
    %236 = vmatpush1.xpose.msra.mxu0 0.0
    %237 = vmatprep.subr.mxu0 0.0
    %238 = vmatpush1.xpose.msra.mxu0 0.0
    %239 = vmatprep.subr.mxu0 0.0
    %240 = vmatpush1.xpose.msra.mxu0 0.0
    %241 = vmatprep.subr.mxu0 0.0
    %242 = vmatpush1.xpose.msra.mxu0 0.0
    %243 = vmatprep.subr.mxu0 0.0
    %244 = vmatpush1.xpose.msra.mxu0 0.0
    %245 = vmatprep.subr.mxu0 0.0
    %246 = vmatpush1.xpose.msra.mxu0 0.0
    %247 = vmatprep.subr.mxu0 0.0
    %248 = vmatpush1.xpose.msra.mxu0 0.0
    %249 = vmatprep.subr.mxu0 0.0
    %250 = vmatpush1.xpose.msra.mxu0 0.0
    %251 = vmatprep.subr.mxu0 0.0
    %252 = vmatpush1.xpose.msra.mxu0 0.0
    %253 = vmatprep.subr.mxu0 0.0
    %254 = vmatpush1.xpose.msra.mxu0 0.0
    %255 = vmatprep.subr.mxu0 0.0
    %256 = vmatpush1.xpose.msra.mxu0 0.0
    %257 = vmatprep.subr.mxu0 0.0
    %258 = vmatpush1.xpose.msra.mxu0 0.0
    %259 = vmatprep.subr.mxu0 0.0
    %260 = vmatpush1.xpose.msra.mxu0 0.0
    %261 = vmatprep.subr.mxu0 0.0
    %262 = vmatpush1.xpose.msra.mxu0 0.0
    %263 = vmatprep.subr.mxu0 0.0
    %264 = vmatpush1.xpose.msra.mxu0 0.0
    %265 = vmatprep.subr.mxu0 0.0
    %266 = vmatpush1.xpose.msra.mxu0 0.0
    %267 = vmatprep.subr.mxu0 0.0
    %268 = vmatpush1.xpose.msra.mxu0 0.0
    %269 = vmatprep.subr.mxu0 0.0
    %270 = vmatpush1.xpose.msra.mxu0 0.0
    %271 = vmatprep.subr.mxu0 0.0
    %272 = vmatpush1.xpose.msra.mxu0 0.0
    %273 = vmatprep.subr.mxu0 0.0
    %274 = vmatpush1.xpose.msra.mxu0 0.0
    %275 = vmatprep.subr.mxu0 0.0
    %276 = vmatpush1.xpose.msra.mxu0 0.0
    %277 = vmatprep.subr.mxu0 0.0
    %278 = vmatpush1.xpose.msra.mxu0 0.0
    %279 = vmatprep.subr.mxu0 0.0
    %280 = vmatpush1.xpose.msra.mxu0 0.0
    %281 = vmatprep.subr.mxu0 0.0
    %282 = vmatpush1.xpose.msra.mxu0 0.0
    %283 = vmatprep.subr.mxu0 0.0
    %284 = vmatpush1.xpose.msra.mxu0 0.0
    %285 = vmatprep.subr.mxu0 0.0
    %286 = vmatpush1.xpose.msra.mxu0 0.0
    %287 = vmatprep.subr.mxu0 0.0
    %288 = vmatpush1.xpose.msra.mxu0 0.0
    %289 = vmatprep.subr.mxu0 0.0
    %290 = vmatpush1.xpose.msra.mxu0 0.0
    %291 = vmatprep.mubr.f32.mxu0 0.0
    %292 = vmatmul.mubr.f32.gmra.mrb[0].mxu0 %v223
    %v293 = vpop.f32.mrb[0].mxu0
    %v294 = vadd.f32 0.0, %v293
    %v295 = vpop.f32.mrb[0].mxu0
    %296 = vdwg.mxu0
    %v298 = vsel %vm65, %v172, 0
    %300 = vmatprep.subr.mxu0 0.0
    %301 = vmatpush1.xpose.msra.mxu0 %v225
    %302 = vmatprep.subr.mxu0 0.0
    %303 = vmatpush1.xpose.msra.mxu0 0.0
    %304 = vmatprep.subr.mxu0 0.0
    %305 = vmatpush1.xpose.msra.mxu0 0.0
    %306 = vmatprep.subr.mxu0 0.0
    %307 = vmatpush1.xpose.msra.mxu0 0.0
    %308 = vmatprep.subr.mxu0 0.0
    %309 = vmatpush1.xpose.msra.mxu0 0.0
    %310 = vmatprep.subr.mxu0 0.0
    %311 = vmatpush1.xpose.msra.mxu0 0.0
    %312 = vmatprep.subr.mxu0 0.0
    %313 = vmatpush1.xpose.msra.mxu0 0.0
    %314 = vmatprep.subr.mxu0 0.0
    %315 = vmatpush1.xpose.msra.mxu0 0.0
    %316 = vmatprep.subr.mxu0 0.0
    %317 = vmatpush1.xpose.msra.mxu0 0.0
    %318 = vmatprep.subr.mxu0 0.0
    %319 = vmatpush1.xpose.msra.mxu0 0.0
    %320 = vmatprep.subr.mxu0 0.0
    %321 = vmatpush1.xpose.msra.mxu0 0.0
    %322 = vmatprep.subr.mxu0 0.0
    %323 = vmatpush1.xpose.msra.mxu0 0.0
    %324 = vmatprep.subr.mxu0 0.0
    %325 = vmatpush1.xpose.msra.mxu0 0.0
    %326 = vmatprep.subr.mxu0 0.0
    %327 = vmatpush1.xpose.msra.mxu0 0.0
    %328 = vmatprep.subr.mxu0 0.0
    %329 = vmatpush1.xpose.msra.mxu0 0.0
    %330 = vmatprep.subr.mxu0 0.0
    %331 = vmatpush1.xpose.msra.mxu0 0.0
    %332 = vmatprep.subr.mxu0 0.0
    %333 = vmatpush1.xpose.msra.mxu0 0.0
    %334 = vmatprep.subr.mxu0 0.0
    %335 = vmatpush1.xpose.msra.mxu0 0.0
    %336 = vmatprep.subr.mxu0 0.0
    %337 = vmatpush1.xpose.msra.mxu0 0.0
    %338 = vmatprep.subr.mxu0 0.0
    %339 = vmatpush1.xpose.msra.mxu0 0.0
    %340 = vmatprep.subr.mxu0 0.0
    %341 = vmatpush1.xpose.msra.mxu0 0.0
    %342 = vmatprep.subr.mxu0 0.0
    %343 = vmatpush1.xpose.msra.mxu0 0.0
    %344 = vmatprep.subr.mxu0 0.0
    %345 = vmatpush1.xpose.msra.mxu0 0.0
    %346 = vmatprep.subr.mxu0 0.0
    %347 = vmatpush1.xpose.msra.mxu0 0.0
    %348 = vmatprep.subr.mxu0 0.0
    %349 = vmatpush1.xpose.msra.mxu0 0.0
    %350 = vmatprep.subr.mxu0 0.0
    %351 = vmatpush1.xpose.msra.mxu0 0.0
    %352 = vmatprep.subr.mxu0 0.0
    %353 = vmatpush1.xpose.msra.mxu0 0.0
    %354 = vmatprep.subr.mxu0 0.0
    %355 = vmatpush1.xpose.msra.mxu0 0.0
    %356 = vmatprep.subr.mxu0 0.0
    %357 = vmatpush1.xpose.msra.mxu0 0.0
    %358 = vmatprep.subr.mxu0 0.0
    %359 = vmatpush1.xpose.msra.mxu0 0.0
    %360 = vmatprep.subr.mxu0 0.0
    %361 = vmatpush1.xpose.msra.mxu0 0.0
    %362 = vmatprep.subr.mxu0 0.0
    %363 = vmatpush1.xpose.msra.mxu0 0.0
    %364 = vmatprep.mubr.f32.mxu0 0.0
    %365 = vmatmul.mubr.f32.gmra.mrb[0].mxu0 %v298
    %v366 = vpop.f32.mrb[0].mxu0
    %v367 = vadd.f32 0.0, %v366
    %v368 = vpop.f32.mrb[0].mxu0
    %369 = vdwg.mxu0
    %v371 = vsel %vm65, %v173, 0
    %373 = vmatprep.subr.mxu0 0.0
    %374 = vmatpush1.xpose.msra.mxu0 %v225
    %375 = vmatprep.subr.mxu0 0.0
    %376 = vmatpush1.xpose.msra.mxu0 0.0
    %377 = vmatprep.subr.mxu0 0.0
    %378 = vmatpush1.xpose.msra.mxu0 0.0
    %379 = vmatprep.subr.mxu0 0.0
    %380 = vmatpush1.xpose.msra.mxu0 0.0
    %381 = vmatprep.subr.mxu0 0.0
    %382 = vmatpush1.xpose.msra.mxu0 0.0
    %383 = vmatprep.subr.mxu0 0.0
    %384 = vmatpush1.xpose.msra.mxu0 0.0
    %385 = vmatprep.subr.mxu0 0.0
    %386 = vmatpush1.xpose.msra.mxu0 0.0
    %387 = vmatprep.subr.mxu0 0.0
    %388 = vmatpush1.xpose.msra.mxu0 0.0
    %389 = vmatprep.subr.mxu0 0.0
    %390 = vmatpush1.xpose.msra.mxu0 0.0
    %391 = vmatprep.subr.mxu0 0.0
    %392 = vmatpush1.xpose.msra.mxu0 0.0
    %393 = vmatprep.subr.mxu0 0.0
    %394 = vmatpush1.xpose.msra.mxu0 0.0
    %395 = vmatprep.subr.mxu0 0.0
    %396 = vmatpush1.xpose.msra.mxu0 0.0
    %397 = vmatprep.subr.mxu0 0.0
    %398 = vmatpush1.xpose.msra.mxu0 0.0
    %399 = vmatprep.subr.mxu0 0.0
    %400 = vmatpush1.xpose.msra.mxu0 0.0
    %401 = vmatprep.subr.mxu0 0.0
    %402 = vmatpush1.xpose.msra.mxu0 0.0
    %403 = vmatprep.subr.mxu0 0.0
    %404 = vmatpush1.xpose.msra.mxu0 0.0
    %405 = vmatprep.subr.mxu0 0.0
    %406 = vmatpush1.xpose.msra.mxu0 0.0
    %407 = vmatprep.subr.mxu0 0.0
    %408 = vmatpush1.xpose.msra.mxu0 0.0
    %409 = vmatprep.subr.mxu0 0.0
    %410 = vmatpush1.xpose.msra.mxu0 0.0
    %411 = vmatprep.subr.mxu0 0.0
    %412 = vmatpush1.xpose.msra.mxu0 0.0
    %413 = vmatprep.subr.mxu0 0.0
    %414 = vmatpush1.xpose.msra.mxu0 0.0
    %415 = vmatprep.subr.mxu0 0.0
    %416 = vmatpush1.xpose.msra.mxu0 0.0
    %417 = vmatprep.subr.mxu0 0.0
    %418 = vmatpush1.xpose.msra.mxu0 0.0
    %419 = vmatprep.subr.mxu0 0.0
    %420 = vmatpush1.xpose.msra.mxu0 0.0
    %421 = vmatprep.subr.mxu0 0.0
    %422 = vmatpush1.xpose.msra.mxu0 0.0
    %423 = vmatprep.subr.mxu0 0.0
    %424 = vmatpush1.xpose.msra.mxu0 0.0
    %425 = vmatprep.subr.mxu0 0.0
    %426 = vmatpush1.xpose.msra.mxu0 0.0
    %427 = vmatprep.subr.mxu0 0.0
    %428 = vmatpush1.xpose.msra.mxu0 0.0
    %429 = vmatprep.subr.mxu0 0.0
    %430 = vmatpush1.xpose.msra.mxu0 0.0
    %431 = vmatprep.subr.mxu0 0.0
    %432 = vmatpush1.xpose.msra.mxu0 0.0
    %433 = vmatprep.subr.mxu0 0.0
    %434 = vmatpush1.xpose.msra.mxu0 0.0
    %435 = vmatprep.subr.mxu0 0.0
    %436 = vmatpush1.xpose.msra.mxu0 0.0
    %437 = vmatprep.mubr.f32.mxu0 0.0
    %438 = vmatmul.mubr.f32.gmra.mrb[0].mxu0 %v371
    %v439 = vpop.f32.mrb[0].mxu0
    %v440 = vadd.f32 0.0, %v439
    %v441 = vpop.f32.mrb[0].mxu0
    %442 = vdwg.mxu0
    %v444 = vsel %vm65, %v174, 0
    %446 = vmatprep.subr.mxu0 0.0
    %447 = vmatpush1.xpose.msra.mxu0 %v225
    %448 = vmatprep.subr.mxu0 0.0
    %449 = vmatpush1.xpose.msra.mxu0 0.0
    %450 = vmatprep.subr.mxu0 0.0
    %451 = vmatpush1.xpose.msra.mxu0 0.0
    %452 = vmatprep.subr.mxu0 0.0
    %453 = vmatpush1.xpose.msra.mxu0 0.0
    %454 = vmatprep.subr.mxu0 0.0
    %455 = vmatpush1.xpose.msra.mxu0 0.0
    %456 = vmatprep.subr.mxu0 0.0
    %457 = vmatpush1.xpose.msra.mxu0 0.0
    %458 = vmatprep.subr.mxu0 0.0
    %459 = vmatpush1.xpose.msra.mxu0 0.0
    %460 = vmatprep.subr.mxu0 0.0
    %461 = vmatpush1.xpose.msra.mxu0 0.0
    %462 = vmatprep.subr.mxu0 0.0
    %463 = vmatpush1.xpose.msra.mxu0 0.0
    %464 = vmatprep.subr.mxu0 0.0
    %465 = vmatpush1.xpose.msra.mxu0 0.0
    %466 = vmatprep.subr.mxu0 0.0
    %467 = vmatpush1.xpose.msra.mxu0 0.0
    %468 = vmatprep.subr.mxu0 0.0
    %469 = vmatpush1.xpose.msra.mxu0 0.0
    %470 = vmatprep.subr.mxu0 0.0
    %471 = vmatpush1.xpose.msra.mxu0 0.0
    %472 = vmatprep.subr.mxu0 0.0
    %473 = vmatpush1.xpose.msra.mxu0 0.0
    %474 = vmatprep.subr.mxu0 0.0
    %475 = vmatpush1.xpose.msra.mxu0 0.0
    %476 = vmatprep.subr.mxu0 0.0
    %477 = vmatpush1.xpose.msra.mxu0 0.0
    %478 = vmatprep.subr.mxu0 0.0
    %479 = vmatpush1.xpose.msra.mxu0 0.0
    %480 = vmatprep.subr.mxu0 0.0
    %481 = vmatpush1.xpose.msra.mxu0 0.0
    %482 = vmatprep.subr.mxu0 0.0
    %483 = vmatpush1.xpose.msra.mxu0 0.0
    %484 = vmatprep.subr.mxu0 0.0
    %485 = vmatpush1.xpose.msra.mxu0 0.0
    %486 = vmatprep.subr.mxu0 0.0
    %487 = vmatpush1.xpose.msra.mxu0 0.0
    %488 = vmatprep.subr.mxu0 0.0
    %489 = vmatpush1.xpose.msra.mxu0 0.0
    %490 = vmatprep.subr.mxu0 0.0
    %491 = vmatpush1.xpose.msra.mxu0 0.0
    %492 = vmatprep.subr.mxu0 0.0
    %493 = vmatpush1.xpose.msra.mxu0 0.0
    %494 = vmatprep.subr.mxu0 0.0
    %495 = vmatpush1.xpose.msra.mxu0 0.0
    %496 = vmatprep.subr.mxu0 0.0
    %497 = vmatpush1.xpose.msra.mxu0 0.0
    %498 = vmatprep.subr.mxu0 0.0
    %499 = vmatpush1.xpose.msra.mxu0 0.0
    %500 = vmatprep.subr.mxu0 0.0
    %501 = vmatpush1.xpose.msra.mxu0 0.0
    %502 = vmatprep.subr.mxu0 0.0
    %503 = vmatpush1.xpose.msra.mxu0 0.0
    %504 = vmatprep.subr.mxu0 0.0
    %505 = vmatpush1.xpose.msra.mxu0 0.0
    %506 = vmatprep.subr.mxu0 0.0
    %507 = vmatpush1.xpose.msra.mxu0 0.0
    %508 = vmatprep.subr.mxu0 0.0
    %509 = vmatpush1.xpose.msra.mxu0 0.0
    %510 = vmatprep.mubr.f32.mxu0 0.0
    %511 = vmatmul.mubr.f32.gmra.mrb[0].mxu0 %v444
    %v512 = vpop.f32.mrb[0].mxu0
    %v513 = vadd.f32 0.0, %v512
    %v514 = vpop.f32.mrb[0].mxu0
    %515 = vdwg.mxu0
    %517 = vrot.lane.b32.xlu0 %v144, 96
    %v518 = vpop.permute.xlu0 %517
    %v520 = vsel %vm65, %v175, 0
    %v522 = vsel %vm65, %v518, 0
    %524 = vmatprep.subr.mxu0 0.0
    %525 = vmatpush1.xpose.msra.mxu0 %v522
    %526 = vmatprep.subr.mxu0 0.0
    %527 = vmatpush1.xpose.msra.mxu0 0.0
    %528 = vmatprep.subr.mxu0 0.0
    %529 = vmatpush1.xpose.msra.mxu0 0.0
    %530 = vmatprep.subr.mxu0 0.0
    %531 = vmatpush1.xpose.msra.mxu0 0.0
    %532 = vmatprep.subr.mxu0 0.0
    %533 = vmatpush1.xpose.msra.mxu0 0.0
    %534 = vmatprep.subr.mxu0 0.0
    %535 = vmatpush1.xpose.msra.mxu0 0.0
    %536 = vmatprep.subr.mxu0 0.0
    %537 = vmatpush1.xpose.msra.mxu0 0.0
    %538 = vmatprep.subr.mxu0 0.0
    %539 = vmatpush1.xpose.msra.mxu0 0.0
    %540 = vmatprep.subr.mxu0 0.0
    %541 = vmatpush1.xpose.msra.mxu0 0.0
    %542 = vmatprep.subr.mxu0 0.0
    %543 = vmatpush1.xpose.msra.mxu0 0.0
    %544 = vmatprep.subr.mxu0 0.0
    %545 = vmatpush1.xpose.msra.mxu0 0.0
    %546 = vmatprep.subr.mxu0 0.0
    %547 = vmatpush1.xpose.msra.mxu0 0.0
    %548 = vmatprep.subr.mxu0 0.0
    %549 = vmatpush1.xpose.msra.mxu0 0.0
    %550 = vmatprep.subr.mxu0 0.0
    %551 = vmatpush1.xpose.msra.mxu0 0.0
    %552 = vmatprep.subr.mxu0 0.0
    %553 = vmatpush1.xpose.msra.mxu0 0.0
    %554 = vmatprep.subr.mxu0 0.0
    %555 = vmatpush1.xpose.msra.mxu0 0.0
    %556 = vmatprep.subr.mxu0 0.0
    %557 = vmatpush1.xpose.msra.mxu0 0.0
    %558 = vmatprep.subr.mxu0 0.0
    %559 = vmatpush1.xpose.msra.mxu0 0.0
    %560 = vmatprep.subr.mxu0 0.0
    %561 = vmatpush1.xpose.msra.mxu0 0.0
    %562 = vmatprep.subr.mxu0 0.0
    %563 = vmatpush1.xpose.msra.mxu0 0.0
    %564 = vmatprep.subr.mxu0 0.0
    %565 = vmatpush1.xpose.msra.mxu0 0.0
    %566 = vmatprep.subr.mxu0 0.0
    %567 = vmatpush1.xpose.msra.mxu0 0.0
    %568 = vmatprep.subr.mxu0 0.0
    %569 = vmatpush1.xpose.msra.mxu0 0.0
    %570 = vmatprep.subr.mxu0 0.0
    %571 = vmatpush1.xpose.msra.mxu0 0.0
    %572 = vmatprep.subr.mxu0 0.0
    %573 = vmatpush1.xpose.msra.mxu0 0.0
    %574 = vmatprep.subr.mxu0 0.0
    %575 = vmatpush1.xpose.msra.mxu0 0.0
    %576 = vmatprep.subr.mxu0 0.0
    %577 = vmatpush1.xpose.msra.mxu0 0.0
    %578 = vmatprep.subr.mxu0 0.0
    %579 = vmatpush1.xpose.msra.mxu0 0.0
    %580 = vmatprep.subr.mxu0 0.0
    %581 = vmatpush1.xpose.msra.mxu0 0.0
    %582 = vmatprep.subr.mxu0 0.0
    %583 = vmatpush1.xpose.msra.mxu0 0.0
    %584 = vmatprep.subr.mxu0 0.0
    %585 = vmatpush1.xpose.msra.mxu0 0.0
    %586 = vmatprep.subr.mxu0 0.0
    %587 = vmatpush1.xpose.msra.mxu0 0.0
    %588 = vmatprep.mubr.f32.mxu0 0.0
    %589 = vmatmul.mubr.f32.gmra.mrb[0].mxu0 %v520
    %v590 = vpop.f32.mrb[0].mxu0
    %v591 = vadd.f32 0.0, %v590
    %v592 = vpop.f32.mrb[0].mxu0
    %593 = vdwg.mxu0
    %v595 = vsel %vm65, %v176, 0
    %597 = vmatprep.subr.mxu0 0.0
    %598 = vmatpush1.xpose.msra.mxu0 %v522
    %599 = vmatprep.subr.mxu0 0.0
    %600 = vmatpush1.xpose.msra.mxu0 0.0
    %601 = vmatprep.subr.mxu0 0.0
    %602 = vmatpush1.xpose.msra.mxu0 0.0
    %603 = vmatprep.subr.mxu0 0.0
    %604 = vmatpush1.xpose.msra.mxu0 0.0
    %605 = vmatprep.subr.mxu0 0.0
    %606 = vmatpush1.xpose.msra.mxu0 0.0
    %607 = vmatprep.subr.mxu0 0.0
    %608 = vmatpush1.xpose.msra.mxu0 0.0
    %609 = vmatprep.subr.mxu0 0.0
    %610 = vmatpush1.xpose.msra.mxu0 0.0
    %611 = vmatprep.subr.mxu0 0.0
    %612 = vmatpush1.xpose.msra.mxu0 0.0
    %613 = vmatprep.subr.mxu0 0.0
    %614 = vmatpush1.xpose.msra.mxu0 0.0
    %615 = vmatprep.subr.mxu0 0.0
    %616 = vmatpush1.xpose.msra.mxu0 0.0
    %617 = vmatprep.subr.mxu0 0.0
    %618 = vmatpush1.xpose.msra.mxu0 0.0
    %619 = vmatprep.subr.mxu0 0.0
    %620 = vmatpush1.xpose.msra.mxu0 0.0
    %621 = vmatprep.subr.mxu0 0.0
    %622 = vmatpush1.xpose.msra.mxu0 0.0
    %623 = vmatprep.subr.mxu0 0.0
    %624 = vmatpush1.xpose.msra.mxu0 0.0
    %625 = vmatprep.subr.mxu0 0.0
    %626 = vmatpush1.xpose.msra.mxu0 0.0
    %627 = vmatprep.subr.mxu0 0.0
    %628 = vmatpush1.xpose.msra.mxu0 0.0
    %629 = vmatprep.subr.mxu0 0.0
    %630 = vmatpush1.xpose.msra.mxu0 0.0
    %631 = vmatprep.subr.mxu0 0.0
    %632 = vmatpush1.xpose.msra.mxu0 0.0
    %633 = vmatprep.subr.mxu0 0.0
    %634 = vmatpush1.xpose.msra.mxu0 0.0
    %635 = vmatprep.subr.mxu0 0.0
    %636 = vmatpush1.xpose.msra.mxu0 0.0
    %637 = vmatprep.subr.mxu0 0.0
    %638 = vmatpush1.xpose.msra.mxu0 0.0
    %639 = vmatprep.subr.mxu0 0.0
    %640 = vmatpush1.xpose.msra.mxu0 0.0
    %641 = vmatprep.subr.mxu0 0.0
    %642 = vmatpush1.xpose.msra.mxu0 0.0
    %643 = vmatprep.subr.mxu0 0.0
    %644 = vmatpush1.xpose.msra.mxu0 0.0
    %645 = vmatprep.subr.mxu0 0.0
    %646 = vmatpush1.xpose.msra.mxu0 0.0
    %647 = vmatprep.subr.mxu0 0.0
    %648 = vmatpush1.xpose.msra.mxu0 0.0
    %649 = vmatprep.subr.mxu0 0.0
    %650 = vmatpush1.xpose.msra.mxu0 0.0
    %651 = vmatprep.subr.mxu0 0.0
    %652 = vmatpush1.xpose.msra.mxu0 0.0
    %653 = vmatprep.subr.mxu0 0.0
    %654 = vmatpush1.xpose.msra.mxu0 0.0
    %655 = vmatprep.subr.mxu0 0.0
    %656 = vmatpush1.xpose.msra.mxu0 0.0
    %657 = vmatprep.subr.mxu0 0.0
    %658 = vmatpush1.xpose.msra.mxu0 0.0
    %659 = vmatprep.subr.mxu0 0.0
    %660 = vmatpush1.xpose.msra.mxu0 0.0
    %661 = vmatprep.mubr.f32.mxu0 0.0
    %662 = vmatmul.mubr.f32.gmra.mrb[0].mxu0 %v595
    %v663 = vpop.f32.mrb[0].mxu0
    %v664 = vadd.f32 0.0, %v663
    %v665 = vpop.f32.mrb[0].mxu0
    %666 = vdwg.mxu0
    %v668 = vsel %vm65, %v177, 0
    %670 = vmatprep.subr.mxu0 0.0
    %671 = vmatpush1.xpose.msra.mxu0 %v522
    %672 = vmatprep.subr.mxu0 0.0
    %673 = vmatpush1.xpose.msra.mxu0 0.0
    %674 = vmatprep.subr.mxu0 0.0
    %675 = vmatpush1.xpose.msra.mxu0 0.0
    %676 = vmatprep.subr.mxu0 0.0
    %677 = vmatpush1.xpose.msra.mxu0 0.0
    %678 = vmatprep.subr.mxu0 0.0
    %679 = vmatpush1.xpose.msra.mxu0 0.0
    %680 = vmatprep.subr.mxu0 0.0
    %681 = vmatpush1.xpose.msra.mxu0 0.0
    %682 = vmatprep.subr.mxu0 0.0
    %683 = vmatpush1.xpose.msra.mxu0 0.0
    %684 = vmatprep.subr.mxu0 0.0
    %685 = vmatpush1.xpose.msra.mxu0 0.0
    %686 = vmatprep.subr.mxu0 0.0
    %687 = vmatpush1.xpose.msra.mxu0 0.0
    %688 = vmatprep.subr.mxu0 0.0
    %689 = vmatpush1.xpose.msra.mxu0 0.0
    %690 = vmatprep.subr.mxu0 0.0
    %691 = vmatpush1.xpose.msra.mxu0 0.0
    %692 = vmatprep.subr.mxu0 0.0
    %693 = vmatpush1.xpose.msra.mxu0 0.0
    %694 = vmatprep.subr.mxu0 0.0
    %695 = vmatpush1.xpose.msra.mxu0 0.0
    %696 = vmatprep.subr.mxu0 0.0
    %697 = vmatpush1.xpose.msra.mxu0 0.0
    %698 = vmatprep.subr.mxu0 0.0
    %699 = vmatpush1.xpose.msra.mxu0 0.0
    %700 = vmatprep.subr.mxu0 0.0
    %701 = vmatpush1.xpose.msra.mxu0 0.0
    %702 = vmatprep.subr.mxu0 0.0
    %703 = vmatpush1.xpose.msra.mxu0 0.0
    %704 = vmatprep.subr.mxu0 0.0
    %705 = vmatpush1.xpose.msra.mxu0 0.0
    %706 = vmatprep.subr.mxu0 0.0
    %707 = vmatpush1.xpose.msra.mxu0 0.0
    %708 = vmatprep.subr.mxu0 0.0
    %709 = vmatpush1.xpose.msra.mxu0 0.0
    %710 = vmatprep.subr.mxu0 0.0
    %711 = vmatpush1.xpose.msra.mxu0 0.0
    %712 = vmatprep.subr.mxu0 0.0
    %713 = vmatpush1.xpose.msra.mxu0 0.0
    %714 = vmatprep.subr.mxu0 0.0
    %715 = vmatpush1.xpose.msra.mxu0 0.0
    %716 = vmatprep.subr.mxu0 0.0
    %717 = vmatpush1.xpose.msra.mxu0 0.0
    %718 = vmatprep.subr.mxu0 0.0
    %719 = vmatpush1.xpose.msra.mxu0 0.0
    %720 = vmatprep.subr.mxu0 0.0
    %721 = vmatpush1.xpose.msra.mxu0 0.0
    %722 = vmatprep.subr.mxu0 0.0
    %723 = vmatpush1.xpose.msra.mxu0 0.0
    %724 = vmatprep.subr.mxu0 0.0
    %725 = vmatpush1.xpose.msra.mxu0 0.0
    %726 = vmatprep.subr.mxu0 0.0
    %727 = vmatpush1.xpose.msra.mxu0 0.0
    %728 = vmatprep.subr.mxu0 0.0
    %729 = vmatpush1.xpose.msra.mxu0 0.0
    %730 = vmatprep.subr.mxu0 0.0
    %731 = vmatpush1.xpose.msra.mxu0 0.0
    %732 = vmatprep.subr.mxu0 0.0
    %733 = vmatpush1.xpose.msra.mxu0 0.0
    %734 = vmatprep.mubr.f32.mxu0 0.0
    %735 = vmatmul.mubr.f32.gmra.mrb[0].mxu0 %v668
    %v736 = vpop.f32.mrb[0].mxu0
    %v737 = vadd.f32 0.0, %v736
    %v738 = vpop.f32.mrb[0].mxu0
    %739 = vdwg.mxu0
    %v741 = vsel %vm65, %v178, 0
    %743 = vmatprep.subr.mxu0 0.0
    %744 = vmatpush1.xpose.msra.mxu0 %v522
    %745 = vmatprep.subr.mxu0 0.0
    %746 = vmatpush1.xpose.msra.mxu0 0.0
    %747 = vmatprep.subr.mxu0 0.0
    %748 = vmatpush1.xpose.msra.mxu0 0.0
    %749 = vmatprep.subr.mxu0 0.0
    %750 = vmatpush1.xpose.msra.mxu0 0.0
    %751 = vmatprep.subr.mxu0 0.0
    %752 = vmatpush1.xpose.msra.mxu0 0.0
    %753 = vmatprep.subr.mxu0 0.0
    %754 = vmatpush1.xpose.msra.mxu0 0.0
    %755 = vmatprep.subr.mxu0 0.0
    %756 = vmatpush1.xpose.msra.mxu0 0.0
    %757 = vmatprep.subr.mxu0 0.0
    %758 = vmatpush1.xpose.msra.mxu0 0.0
    %759 = vmatprep.subr.mxu0 0.0
    %760 = vmatpush1.xpose.msra.mxu0 0.0
    %761 = vmatprep.subr.mxu0 0.0
    %762 = vmatpush1.xpose.msra.mxu0 0.0
    %763 = vmatprep.subr.mxu0 0.0
    %764 = vmatpush1.xpose.msra.mxu0 0.0
    %765 = vmatprep.subr.mxu0 0.0
    %766 = vmatpush1.xpose.msra.mxu0 0.0
    %767 = vmatprep.subr.mxu0 0.0
    %768 = vmatpush1.xpose.msra.mxu0 0.0
    %769 = vmatprep.subr.mxu0 0.0
    %770 = vmatpush1.xpose.msra.mxu0 0.0
    %771 = vmatprep.subr.mxu0 0.0
    %772 = vmatpush1.xpose.msra.mxu0 0.0
    %773 = vmatprep.subr.mxu0 0.0
    %774 = vmatpush1.xpose.msra.mxu0 0.0
    %775 = vmatprep.subr.mxu0 0.0
    %776 = vmatpush1.xpose.msra.mxu0 0.0
    %777 = vmatprep.subr.mxu0 0.0
    %778 = vmatpush1.xpose.msra.mxu0 0.0
    %779 = vmatprep.subr.mxu0 0.0
    %780 = vmatpush1.xpose.msra.mxu0 0.0
    %781 = vmatprep.subr.mxu0 0.0
    %782 = vmatpush1.xpose.msra.mxu0 0.0
    %783 = vmatprep.subr.mxu0 0.0
    %784 = vmatpush1.xpose.msra.mxu0 0.0
    %785 = vmatprep.subr.mxu0 0.0
    %786 = vmatpush1.xpose.msra.mxu0 0.0
    %787 = vmatprep.subr.mxu0 0.0
    %788 = vmatpush1.xpose.msra.mxu0 0.0
    %789 = vmatprep.subr.mxu0 0.0
    %790 = vmatpush1.xpose.msra.mxu0 0.0
    %791 = vmatprep.subr.mxu0 0.0
    %792 = vmatpush1.xpose.msra.mxu0 0.0
    %793 = vmatprep.subr.mxu0 0.0
    %794 = vmatpush1.xpose.msra.mxu0 0.0
    %795 = vmatprep.subr.mxu0 0.0
    %796 = vmatpush1.xpose.msra.mxu0 0.0
    %797 = vmatprep.subr.mxu0 0.0
    %798 = vmatpush1.xpose.msra.mxu0 0.0
    %799 = vmatprep.subr.mxu0 0.0
    %800 = vmatpush1.xpose.msra.mxu0 0.0
    %801 = vmatprep.subr.mxu0 0.0
    %802 = vmatpush1.xpose.msra.mxu0 0.0
    %803 = vmatprep.subr.mxu0 0.0
    %804 = vmatpush1.xpose.msra.mxu0 0.0
    %805 = vmatprep.subr.mxu0 0.0
    %806 = vmatpush1.xpose.msra.mxu0 0.0
    %807 = vmatprep.mubr.f32.mxu0 0.0
    %808 = vmatmul.mubr.f32.gmra.mrb[0].mxu0 %v741
    %v809 = vpop.f32.mrb[0].mxu0
    %v810 = vadd.f32 0.0, %v809
    %v811 = vpop.f32.mrb[0].mxu0
    %812 = vdwg.mxu0
    %vm813 = vcmask 64512
    %v814 = vsel %vm813, %v294, -inf
    %815 = vmax.xlane.f32.xlu0 %v814
    %v816 = vpop.xlane.xlu0 %815
    %v817 = vsel %vm813, %v367, -inf
    %818 = vmax.xlane.f32.xlu0 %v817
    %v819 = vpop.xlane.xlu0 %818
    %v820 = vsel %vm813, %v440, -inf
    %821 = vmax.xlane.f32.xlu0 %v820
    %v822 = vpop.xlane.xlu0 %821
    %v823 = vsel %vm813, %v513, -inf
    %824 = vmax.xlane.f32.xlu0 %v823
    %v825 = vpop.xlane.xlu0 %824
    %v826 = vsel %vm813, %v591, -inf
    %827 = vmax.xlane.f32.xlu0 %v826
    %v828 = vpop.xlane.xlu0 %827
    %v829 = vsel %vm813, %v664, -inf
    %830 = vmax.xlane.f32.xlu0 %v829
    %v831 = vpop.xlane.xlu0 %830
    %v832 = vsel %vm813, %v737, -inf
    %833 = vmax.xlane.f32.xlu0 %v832
    %v834 = vpop.xlane.xlu0 %833
    %v835 = vsel %vm813, %v810, -inf
    %836 = vmax.xlane.f32.xlu0 %v835
    %v837 = vpop.xlane.xlu0 %836
    %v838 = vsub.f32 %v294, %v816
    %v839 = vsub.f32 %v367, %v819
    %v840 = vsub.f32 %v440, %v822
    %v841 = vsub.f32 %v513, %v825
    %v842 = vsub.f32 %v591, %v828
    %v843 = vsub.f32 %v664, %v831
    %v844 = vsub.f32 %v737, %v834
    %v845 = vsub.f32 %v810, %v837
    %v846 = vmul.f32 %v838, 1.442695
    %v847 = vpow.pop %v846
    %v848 = vmul.f32 %v839, 1.442695
    %v849 = vpow.pop %v848
    %v850 = vmul.f32 %v840, 1.442695
    %v851 = vpow.pop %v850
    %v852 = vmul.f32 %v841, 1.442695
    %v853 = vpow.pop %v852
    %v854 = vmul.f32 %v842, 1.442695
    %v855 = vpow.pop %v854
    %v856 = vmul.f32 %v843, 1.442695
    %v857 = vpow.pop %v856
    %v858 = vmul.f32 %v844, 1.442695
    %v859 = vpow.pop %v858
    %v860 = vmul.f32 %v845, 1.442695
    %v861 = vpow.pop %v860
    %v862 = vsel %vm813, %v847, 0.0
    %863 = vadd.xlane.f32.xlu0 %v862
    %v864 = vpop.xlane.xlu0 %863
    %v865 = vsel %vm813, %v849, 0.0
    %866 = vadd.xlane.f32.xlu0 %v865
    %v867 = vpop.xlane.xlu0 %866
    %v868 = vsel %vm813, %v851, 0.0
    %869 = vadd.xlane.f32.xlu0 %v868
    %v870 = vpop.xlane.xlu0 %869
    %v871 = vsel %vm813, %v853, 0.0
    %872 = vadd.xlane.f32.xlu0 %v871
    %v873 = vpop.xlane.xlu0 %872
    %v874 = vsel %vm813, %v855, 0.0
    %875 = vadd.xlane.f32.xlu0 %v874
    %v876 = vpop.xlane.xlu0 %875
    %v877 = vsel %vm813, %v857, 0.0
    %878 = vadd.xlane.f32.xlu0 %v877
    %v879 = vpop.xlane.xlu0 %878
    %v880 = vsel %vm813, %v859, 0.0
    %881 = vadd.xlane.f32.xlu0 %v880
    %v882 = vpop.xlane.xlu0 %881
    %v883 = vsel %vm813, %v861, 0.0
    %884 = vadd.xlane.f32.xlu0 %v883
    %v885 = vpop.xlane.xlu0 %884
    %v886 = vrcp.pop %v864
    %v887 = vrcp.pop %v867
    %v888 = vrcp.pop %v870
    %v889 = vrcp.pop %v873
    %v890 = vrcp.pop %v876
    %v891 = vrcp.pop %v879
    %v892 = vrcp.pop %v882
    %v893 = vrcp.pop %v885
    %v894 = vmul.f32 %v847, %v886
    %v895 = vmul.f32 %v849, %v887
    %v896 = vmul.f32 %v851, %v888
    %v897 = vmul.f32 %v853, %v889
    %v898 = vmul.f32 %v855, %v890
    %v899 = vmul.f32 %v857, %v891
    %v900 = vmul.f32 %v859, %v892
    %v901 = vmul.f32 %v861, %v893
    %903 = vrot.lane.b32.xlu0 %v211, 64
    %v904 = vpop.permute.xlu0 %903
    %v907 = vsel %vm813, %v894, 0
    %909 = vmatprep.subr.mxu0 0.0
    %910 = vmatpush1.msra.mxu0 %v904
    %911 = vmatprep.subr.mxu0 0.0
    %912 = vmatpush1.msra.mxu0 0.0
    %913 = vmatprep.subr.mxu0 0.0
    %914 = vmatpush1.msra.mxu0 0.0
    %915 = vmatprep.subr.mxu0 0.0
    %916 = vmatpush1.msra.mxu0 0.0
    %917 = vmatprep.subr.mxu0 0.0
    %918 = vmatpush1.msra.mxu0 0.0
    %919 = vmatprep.subr.mxu0 0.0
    %920 = vmatpush1.msra.mxu0 0.0
    %921 = vmatprep.subr.mxu0 0.0
    %922 = vmatpush1.msra.mxu0 0.0
    %923 = vmatprep.subr.mxu0 0.0
    %924 = vmatpush1.msra.mxu0 0.0
    %925 = vmatprep.subr.mxu0 0.0
    %926 = vmatpush1.msra.mxu0 0.0
    %927 = vmatprep.subr.mxu0 0.0
    %928 = vmatpush1.msra.mxu0 0.0
    %929 = vmatprep.subr.mxu0 0.0
    %930 = vmatpush1.msra.mxu0 0.0
    %931 = vmatprep.subr.mxu0 0.0
    %932 = vmatpush1.msra.mxu0 0.0
    %933 = vmatprep.subr.mxu0 0.0
    %934 = vmatpush1.msra.mxu0 0.0
    %935 = vmatprep.subr.mxu0 0.0
    %936 = vmatpush1.msra.mxu0 0.0
    %937 = vmatprep.subr.mxu0 0.0
    %938 = vmatpush1.msra.mxu0 0.0
    %939 = vmatprep.subr.mxu0 0.0
    %940 = vmatpush1.msra.mxu0 0.0
    %941 = vmatprep.subr.mxu0 0.0
    %942 = vmatpush1.msra.mxu0 0.0
    %943 = vmatprep.subr.mxu0 0.0
    %944 = vmatpush1.msra.mxu0 0.0
    %945 = vmatprep.subr.mxu0 0.0
    %946 = vmatpush1.msra.mxu0 0.0
    %947 = vmatprep.subr.mxu0 0.0
    %948 = vmatpush1.msra.mxu0 0.0
    %949 = vmatprep.subr.mxu0 0.0
    %950 = vmatpush1.msra.mxu0 0.0
    %951 = vmatprep.subr.mxu0 0.0
    %952 = vmatpush1.msra.mxu0 0.0
    %953 = vmatprep.subr.mxu0 0.0
    %954 = vmatpush1.msra.mxu0 0.0
    %955 = vmatprep.subr.mxu0 0.0
    %956 = vmatpush1.msra.mxu0 0.0
    %957 = vmatprep.subr.mxu0 0.0
    %958 = vmatpush1.msra.mxu0 0.0
    %959 = vmatprep.subr.mxu0 0.0
    %960 = vmatpush1.msra.mxu0 0.0
    %961 = vmatprep.subr.mxu0 0.0
    %962 = vmatpush1.msra.mxu0 0.0
    %963 = vmatprep.subr.mxu0 0.0
    %964 = vmatpush1.msra.mxu0 0.0
    %965 = vmatprep.subr.mxu0 0.0
    %966 = vmatpush1.msra.mxu0 0.0
    %967 = vmatprep.subr.mxu0 0.0
    %968 = vmatpush1.msra.mxu0 0.0
    %969 = vmatprep.subr.mxu0 0.0
    %970 = vmatpush1.msra.mxu0 0.0
    %971 = vmatprep.subr.mxu0 0.0
    %972 = vmatpush1.msra.mxu0 0.0
    %973 = vmatprep.mubr.f32.mxu0 0.0
    %974 = vmatmul.mubr.f32.gmra.mrb[0].mxu0 %v907
    %v975 = vpop.f32.mrb[0].mxu0
    %v976 = vadd.f32 0.0, %v975
    %v977 = vpop.f32.mrb[0].mxu0
    %978 = vdwg.mxu0
    %980 = vrot.lane.b32.xlu0 %v212, 64
    %v981 = vpop.permute.xlu0 %980
    %v984 = vsel %vm813, %v895, 0
    %986 = vmatprep.subr.mxu0 0.0
    %987 = vmatpush1.msra.mxu0 %v981
    %988 = vmatprep.subr.mxu0 0.0
    %989 = vmatpush1.msra.mxu0 0.0
    %990 = vmatprep.subr.mxu0 0.0
    %991 = vmatpush1.msra.mxu0 0.0
    %992 = vmatprep.subr.mxu0 0.0
    %993 = vmatpush1.msra.mxu0 0.0
    %994 = vmatprep.subr.mxu0 0.0
    %995 = vmatpush1.msra.mxu0 0.0
    %996 = vmatprep.subr.mxu0 0.0
    %997 = vmatpush1.msra.mxu0 0.0
    %998 = vmatprep.subr.mxu0 0.0
    %999 = vmatpush1.msra.mxu0 0.0
    %1000 = vmatprep.subr.mxu0 0.0
    %1001 = vmatpush1.msra.mxu0 0.0
    %1002 = vmatprep.subr.mxu0 0.0
    %1003 = vmatpush1.msra.mxu0 0.0
    %1004 = vmatprep.subr.mxu0 0.0
    %1005 = vmatpush1.msra.mxu0 0.0
    %1006 = vmatprep.subr.mxu0 0.0
    %1007 = vmatpush1.msra.mxu0 0.0
    %1008 = vmatprep.subr.mxu0 0.0
    %1009 = vmatpush1.msra.mxu0 0.0
    %1010 = vmatprep.subr.mxu0 0.0
    %1011 = vmatpush1.msra.mxu0 0.0
    %1012 = vmatprep.subr.mxu0 0.0
    %1013 = vmatpush1.msra.mxu0 0.0
    %1014 = vmatprep.subr.mxu0 0.0
    %1015 = vmatpush1.msra.mxu0 0.0
    %1016 = vmatprep.subr.mxu0 0.0
    %1017 = vmatpush1.msra.mxu0 0.0
    %1018 = vmatprep.subr.mxu0 0.0
    %1019 = vmatpush1.msra.mxu0 0.0
    %1020 = vmatprep.subr.mxu0 0.0
    %1021 = vmatpush1.msra.mxu0 0.0
    %1022 = vmatprep.subr.mxu0 0.0
    %1023 = vmatpush1.msra.mxu0 0.0
    %1024 = vmatprep.subr.mxu0 0.0
    %1025 = vmatpush1.msra.mxu0 0.0
    %1026 = vmatprep.subr.mxu0 0.0
    %1027 = vmatpush1.msra.mxu0 0.0
    %1028 = vmatprep.subr.mxu0 0.0
    %1029 = vmatpush1.msra.mxu0 0.0
    %1030 = vmatprep.subr.mxu0 0.0
    %1031 = vmatpush1.msra.mxu0 0.0
    %1032 = vmatprep.subr.mxu0 0.0
    %1033 = vmatpush1.msra.mxu0 0.0
    %1034 = vmatprep.subr.mxu0 0.0
    %1035 = vmatpush1.msra.mxu0 0.0
    %1036 = vmatprep.subr.mxu0 0.0
    %1037 = vmatpush1.msra.mxu0 0.0
    %1038 = vmatprep.subr.mxu0 0.0
    %1039 = vmatpush1.msra.mxu0 0.0
    %1040 = vmatprep.subr.mxu0 0.0
    %1041 = vmatpush1.msra.mxu0 0.0
    %1042 = vmatprep.subr.mxu0 0.0
    %1043 = vmatpush1.msra.mxu0 0.0
    %1044 = vmatprep.subr.mxu0 0.0
    %1045 = vmatpush1.msra.mxu0 0.0
    %1046 = vmatprep.subr.mxu0 0.0
    %1047 = vmatpush1.msra.mxu0 0.0
    %1048 = vmatprep.subr.mxu0 0.0
    %1049 = vmatpush1.msra.mxu0 0.0
    %1050 = vmatprep.mubr.f32.mxu0 0.0
    %1051 = vmatmul.mubr.f32.gmra.mrb[0].mxu0 %v984
    %v1052 = vpop.f32.mrb[0].mxu0
    %v1053 = vadd.f32 0.0, %v1052
    %v1054 = vpop.f32.mrb[0].mxu0
    %1055 = vdwg.mxu0
    %1057 = vrot.lane.b32.xlu0 %v213, 64
    %v1058 = vpop.permute.xlu0 %1057
    %v1061 = vsel %vm813, %v896, 0
    %1063 = vmatprep.subr.mxu0 0.0
    %1064 = vmatpush1.msra.mxu0 %v1058
    %1065 = vmatprep.subr.mxu0 0.0
    %1066 = vmatpush1.msra.mxu0 0.0
    %1067 = vmatprep.subr.mxu0 0.0
    %1068 = vmatpush1.msra.mxu0 0.0
    %1069 = vmatprep.subr.mxu0 0.0
    %1070 = vmatpush1.msra.mxu0 0.0
    %1071 = vmatprep.subr.mxu0 0.0
    %1072 = vmatpush1.msra.mxu0 0.0
    %1073 = vmatprep.subr.mxu0 0.0
    %1074 = vmatpush1.msra.mxu0 0.0
    %1075 = vmatprep.subr.mxu0 0.0
    %1076 = vmatpush1.msra.mxu0 0.0
    %1077 = vmatprep.subr.mxu0 0.0
    %1078 = vmatpush1.msra.mxu0 0.0
    %1079 = vmatprep.subr.mxu0 0.0
    %1080 = vmatpush1.msra.mxu0 0.0
    %1081 = vmatprep.subr.mxu0 0.0
    %1082 = vmatpush1.msra.mxu0 0.0
    %1083 = vmatprep.subr.mxu0 0.0
    %1084 = vmatpush1.msra.mxu0 0.0
    %1085 = vmatprep.subr.mxu0 0.0
    %1086 = vmatpush1.msra.mxu0 0.0
    %1087 = vmatprep.subr.mxu0 0.0
    %1088 = vmatpush1.msra.mxu0 0.0
    %1089 = vmatprep.subr.mxu0 0.0
    %1090 = vmatpush1.msra.mxu0 0.0
    %1091 = vmatprep.subr.mxu0 0.0
    %1092 = vmatpush1.msra.mxu0 0.0
    %1093 = vmatprep.subr.mxu0 0.0
    %1094 = vmatpush1.msra.mxu0 0.0
    %1095 = vmatprep.subr.mxu0 0.0
    %1096 = vmatpush1.msra.mxu0 0.0
    %1097 = vmatprep.subr.mxu0 0.0
    %1098 = vmatpush1.msra.mxu0 0.0
    %1099 = vmatprep.subr.mxu0 0.0
    %1100 = vmatpush1.msra.mxu0 0.0
    %1101 = vmatprep.subr.mxu0 0.0
    %1102 = vmatpush1.msra.mxu0 0.0
    %1103 = vmatprep.subr.mxu0 0.0
    %1104 = vmatpush1.msra.mxu0 0.0
    %1105 = vmatprep.subr.mxu0 0.0
    %1106 = vmatpush1.msra.mxu0 0.0
    %1107 = vmatprep.subr.mxu0 0.0
    %1108 = vmatpush1.msra.mxu0 0.0
    %1109 = vmatprep.subr.mxu0 0.0
    %1110 = vmatpush1.msra.mxu0 0.0
    %1111 = vmatprep.subr.mxu0 0.0
    %1112 = vmatpush1.msra.mxu0 0.0
    %1113 = vmatprep.subr.mxu0 0.0
    %1114 = vmatpush1.msra.mxu0 0.0
    %1115 = vmatprep.subr.mxu0 0.0
    %1116 = vmatpush1.msra.mxu0 0.0
    %1117 = vmatprep.subr.mxu0 0.0
    %1118 = vmatpush1.msra.mxu0 0.0
    %1119 = vmatprep.subr.mxu0 0.0
    %1120 = vmatpush1.msra.mxu0 0.0
    %1121 = vmatprep.subr.mxu0 0.0
    %1122 = vmatpush1.msra.mxu0 0.0
    %1123 = vmatprep.subr.mxu0 0.0
    %1124 = vmatpush1.msra.mxu0 0.0
    %1125 = vmatprep.subr.mxu0 0.0
    %1126 = vmatpush1.msra.mxu0 0.0
    %1127 = vmatprep.mubr.f32.mxu0 0.0
    %1128 = vmatmul.mubr.f32.gmra.mrb[0].mxu0 %v1061
    %v1129 = vpop.f32.mrb[0].mxu0
    %v1130 = vadd.f32 0.0, %v1129
    %v1131 = vpop.f32.mrb[0].mxu0
    %1132 = vdwg.mxu0
    %1134 = vrot.lane.b32.xlu0 %v214, 64
    %v1135 = vpop.permute.xlu0 %1134
    %v1138 = vsel %vm813, %v897, 0
    %1140 = vmatprep.subr.mxu0 0.0
    %1141 = vmatpush1.msra.mxu0 %v1135
    %1142 = vmatprep.subr.mxu0 0.0
    %1143 = vmatpush1.msra.mxu0 0.0
    %1144 = vmatprep.subr.mxu0 0.0
    %1145 = vmatpush1.msra.mxu0 0.0
    %1146 = vmatprep.subr.mxu0 0.0
    %1147 = vmatpush1.msra.mxu0 0.0
    %1148 = vmatprep.subr.mxu0 0.0
    %1149 = vmatpush1.msra.mxu0 0.0
    %1150 = vmatprep.subr.mxu0 0.0
    %1151 = vmatpush1.msra.mxu0 0.0
    %1152 = vmatprep.subr.mxu0 0.0
    %1153 = vmatpush1.msra.mxu0 0.0
    %1154 = vmatprep.subr.mxu0 0.0
    %1155 = vmatpush1.msra.mxu0 0.0
    %1156 = vmatprep.subr.mxu0 0.0
    %1157 = vmatpush1.msra.mxu0 0.0
    %1158 = vmatprep.subr.mxu0 0.0
    %1159 = vmatpush1.msra.mxu0 0.0
    %1160 = vmatprep.subr.mxu0 0.0
    %1161 = vmatpush1.msra.mxu0 0.0
    %1162 = vmatprep.subr.mxu0 0.0
    %1163 = vmatpush1.msra.mxu0 0.0
    %1164 = vmatprep.subr.mxu0 0.0
    %1165 = vmatpush1.msra.mxu0 0.0
    %1166 = vmatprep.subr.mxu0 0.0
    %1167 = vmatpush1.msra.mxu0 0.0
    %1168 = vmatprep.subr.mxu0 0.0
    %1169 = vmatpush1.msra.mxu0 0.0
    %1170 = vmatprep.subr.mxu0 0.0
    %1171 = vmatpush1.msra.mxu0 0.0
    %1172 = vmatprep.subr.mxu0 0.0
    %1173 = vmatpush1.msra.mxu0 0.0
    %1174 = vmatprep.subr.mxu0 0.0
    %1175 = vmatpush1.msra.mxu0 0.0
    %1176 = vmatprep.subr.mxu0 0.0
    %1177 = vmatpush1.msra.mxu0 0.0
    %1178 = vmatprep.subr.mxu0 0.0
    %1179 = vmatpush1.msra.mxu0 0.0
    %1180 = vmatprep.subr.mxu0 0.0
    %1181 = vmatpush1.msra.mxu0 0.0
    %1182 = vmatprep.subr.mxu0 0.0
    %1183 = vmatpush1.msra.mxu0 0.0
    %1184 = vmatprep.subr.mxu0 0.0
    %1185 = vmatpush1.msra.mxu0 0.0
    %1186 = vmatprep.subr.mxu0 0.0
    %1187 = vmatpush1.msra.mxu0 0.0
    %1188 = vmatprep.subr.mxu0 0.0
    %1189 = vmatpush1.msra.mxu0 0.0
    %1190 = vmatprep.subr.mxu0 0.0
    %1191 = vmatpush1.msra.mxu0 0.0
    %1192 = vmatprep.subr.mxu0 0.0
    %1193 = vmatpush1.msra.mxu0 0.0
    %1194 = vmatprep.subr.mxu0 0.0
    %1195 = vmatpush1.msra.mxu0 0.0
    %1196 = vmatprep.subr.mxu0 0.0
    %1197 = vmatpush1.msra.mxu0 0.0
    %1198 = vmatprep.subr.mxu0 0.0
    %1199 = vmatpush1.msra.mxu0 0.0
    %1200 = vmatprep.subr.mxu0 0.0
    %1201 = vmatpush1.msra.mxu0 0.0
    %1202 = vmatprep.subr.mxu0 0.0
    %1203 = vmatpush1.msra.mxu0 0.0
    %1204 = vmatprep.mubr.f32.mxu0 0.0
    %1205 = vmatmul.mubr.f32.gmra.mrb[0].mxu0 %v1138
    %v1206 = vpop.f32.mrb[0].mxu0
    %v1207 = vadd.f32 0.0, %v1206
    %v1208 = vpop.f32.mrb[0].mxu0
    %1209 = vdwg.mxu0
    %1211 = vrot.lane.b32.xlu0 %v215, 64
    %v1212 = vpop.permute.xlu0 %1211
    %v1215 = vsel %vm813, %v898, 0
    %1217 = vmatprep.subr.mxu0 0.0
    %1218 = vmatpush1.msra.mxu0 %v1212
    %1219 = vmatprep.subr.mxu0 0.0
    %1220 = vmatpush1.msra.mxu0 0.0
    %1221 = vmatprep.subr.mxu0 0.0
    %1222 = vmatpush1.msra.mxu0 0.0
    %1223 = vmatprep.subr.mxu0 0.0
    %1224 = vmatpush1.msra.mxu0 0.0
    %1225 = vmatprep.subr.mxu0 0.0
    %1226 = vmatpush1.msra.mxu0 0.0
    %1227 = vmatprep.subr.mxu0 0.0
    %1228 = vmatpush1.msra.mxu0 0.0
    %1229 = vmatprep.subr.mxu0 0.0
    %1230 = vmatpush1.msra.mxu0 0.0
    %1231 = vmatprep.subr.mxu0 0.0
    %1232 = vmatpush1.msra.mxu0 0.0
    %1233 = vmatprep.subr.mxu0 0.0
    %1234 = vmatpush1.msra.mxu0 0.0
    %1235 = vmatprep.subr.mxu0 0.0
    %1236 = vmatpush1.msra.mxu0 0.0
    %1237 = vmatprep.subr.mxu0 0.0
    %1238 = vmatpush1.msra.mxu0 0.0
    %1239 = vmatprep.subr.mxu0 0.0
    %1240 = vmatpush1.msra.mxu0 0.0
    %1241 = vmatprep.subr.mxu0 0.0
    %1242 = vmatpush1.msra.mxu0 0.0
    %1243 = vmatprep.subr.mxu0 0.0
    %1244 = vmatpush1.msra.mxu0 0.0
    %1245 = vmatprep.subr.mxu0 0.0
    %1246 = vmatpush1.msra.mxu0 0.0
    %1247 = vmatprep.subr.mxu0 0.0
    %1248 = vmatpush1.msra.mxu0 0.0
    %1249 = vmatprep.subr.mxu0 0.0
    %1250 = vmatpush1.msra.mxu0 0.0
    %1251 = vmatprep.subr.mxu0 0.0
    %1252 = vmatpush1.msra.mxu0 0.0
    %1253 = vmatprep.subr.mxu0 0.0
    %1254 = vmatpush1.msra.mxu0 0.0
    %1255 = vmatprep.subr.mxu0 0.0
    %1256 = vmatpush1.msra.mxu0 0.0
    %1257 = vmatprep.subr.mxu0 0.0
    %1258 = vmatpush1.msra.mxu0 0.0
    %1259 = vmatprep.subr.mxu0 0.0
    %1260 = vmatpush1.msra.mxu0 0.0
    %1261 = vmatprep.subr.mxu0 0.0
    %1262 = vmatpush1.msra.mxu0 0.0
    %1263 = vmatprep.subr.mxu0 0.0
    %1264 = vmatpush1.msra.mxu0 0.0
    %1265 = vmatprep.subr.mxu0 0.0
    %1266 = vmatpush1.msra.mxu0 0.0
    %1267 = vmatprep.subr.mxu0 0.0
    %1268 = vmatpush1.msra.mxu0 0.0
    %1269 = vmatprep.subr.mxu0 0.0
    %1270 = vmatpush1.msra.mxu0 0.0
    %1271 = vmatprep.subr.mxu0 0.0
    %1272 = vmatpush1.msra.mxu0 0.0
    %1273 = vmatprep.subr.mxu0 0.0
    %1274 = vmatpush1.msra.mxu0 0.0
    %1275 = vmatprep.subr.mxu0 0.0
    %1276 = vmatpush1.msra.mxu0 0.0
    %1277 = vmatprep.subr.mxu0 0.0
    %1278 = vmatpush1.msra.mxu0 0.0
    %1279 = vmatprep.subr.mxu0 0.0
    %1280 = vmatpush1.msra.mxu0 0.0
    %1281 = vmatprep.mubr.f32.mxu0 0.0
    %1282 = vmatmul.mubr.f32.gmra.mrb[0].mxu0 %v1215
    %v1283 = vpop.f32.mrb[0].mxu0
    %v1284 = vadd.f32 0.0, %v1283
    %v1285 = vpop.f32.mrb[0].mxu0
    %1286 = vdwg.mxu0
    %1288 = vrot.lane.b32.xlu0 %v216, 64
    %v1289 = vpop.permute.xlu0 %1288
    %v1292 = vsel %vm813, %v899, 0
    %1294 = vmatprep.subr.mxu0 0.0
    %1295 = vmatpush1.msra.mxu0 %v1289
    %1296 = vmatprep.subr.mxu0 0.0
    %1297 = vmatpush1.msra.mxu0 0.0
    %1298 = vmatprep.subr.mxu0 0.0
    %1299 = vmatpush1.msra.mxu0 0.0
    %1300 = vmatprep.subr.mxu0 0.0
    %1301 = vmatpush1.msra.mxu0 0.0
    %1302 = vmatprep.subr.mxu0 0.0
    %1303 = vmatpush1.msra.mxu0 0.0
    %1304 = vmatprep.subr.mxu0 0.0
    %1305 = vmatpush1.msra.mxu0 0.0
    %1306 = vmatprep.subr.mxu0 0.0
    %1307 = vmatpush1.msra.mxu0 0.0
    %1308 = vmatprep.subr.mxu0 0.0
    %1309 = vmatpush1.msra.mxu0 0.0
    %1310 = vmatprep.subr.mxu0 0.0
    %1311 = vmatpush1.msra.mxu0 0.0
    %1312 = vmatprep.subr.mxu0 0.0
    %1313 = vmatpush1.msra.mxu0 0.0
    %1314 = vmatprep.subr.mxu0 0.0
    %1315 = vmatpush1.msra.mxu0 0.0
    %1316 = vmatprep.subr.mxu0 0.0
    %1317 = vmatpush1.msra.mxu0 0.0
    %1318 = vmatprep.subr.mxu0 0.0
    %1319 = vmatpush1.msra.mxu0 0.0
    %1320 = vmatprep.subr.mxu0 0.0
    %1321 = vmatpush1.msra.mxu0 0.0
    %1322 = vmatprep.subr.mxu0 0.0
    %1323 = vmatpush1.msra.mxu0 0.0
    %1324 = vmatprep.subr.mxu0 0.0
    %1325 = vmatpush1.msra.mxu0 0.0
    %1326 = vmatprep.subr.mxu0 0.0
    %1327 = vmatpush1.msra.mxu0 0.0
    %1328 = vmatprep.subr.mxu0 0.0
    %1329 = vmatpush1.msra.mxu0 0.0
    %1330 = vmatprep.subr.mxu0 0.0
    %1331 = vmatpush1.msra.mxu0 0.0
    %1332 = vmatprep.subr.mxu0 0.0
    %1333 = vmatpush1.msra.mxu0 0.0
    %1334 = vmatprep.subr.mxu0 0.0
    %1335 = vmatpush1.msra.mxu0 0.0
    %1336 = vmatprep.subr.mxu0 0.0
    %1337 = vmatpush1.msra.mxu0 0.0
    %1338 = vmatprep.subr.mxu0 0.0
    %1339 = vmatpush1.msra.mxu0 0.0
    %1340 = vmatprep.subr.mxu0 0.0
    %1341 = vmatpush1.msra.mxu0 0.0
    %1342 = vmatprep.subr.mxu0 0.0
    %1343 = vmatpush1.msra.mxu0 0.0
    %1344 = vmatprep.subr.mxu0 0.0
    %1345 = vmatpush1.msra.mxu0 0.0
    %1346 = vmatprep.subr.mxu0 0.0
    %1347 = vmatpush1.msra.mxu0 0.0
    %1348 = vmatprep.subr.mxu0 0.0
    %1349 = vmatpush1.msra.mxu0 0.0
    %1350 = vmatprep.subr.mxu0 0.0
    %1351 = vmatpush1.msra.mxu0 0.0
    %1352 = vmatprep.subr.mxu0 0.0
    %1353 = vmatpush1.msra.mxu0 0.0
    %1354 = vmatprep.subr.mxu0 0.0
    %1355 = vmatpush1.msra.mxu0 0.0
    %1356 = vmatprep.subr.mxu0 0.0
    %1357 = vmatpush1.msra.mxu0 0.0
    %1358 = vmatprep.mubr.f32.mxu0 0.0
    %1359 = vmatmul.mubr.f32.gmra.mrb[0].mxu0 %v1292
    %v1360 = vpop.f32.mrb[0].mxu0
    %v1361 = vadd.f32 0.0, %v1360
    %v1362 = vpop.f32.mrb[0].mxu0
    %1363 = vdwg.mxu0
    %1365 = vrot.lane.b32.xlu0 %v217, 64
    %v1366 = vpop.permute.xlu0 %1365
    %v1369 = vsel %vm813, %v900, 0
    %1371 = vmatprep.subr.mxu0 0.0
    %1372 = vmatpush1.msra.mxu0 %v1366
    %1373 = vmatprep.subr.mxu0 0.0
    %1374 = vmatpush1.msra.mxu0 0.0
    %1375 = vmatprep.subr.mxu0 0.0
    %1376 = vmatpush1.msra.mxu0 0.0
    %1377 = vmatprep.subr.mxu0 0.0
    %1378 = vmatpush1.msra.mxu0 0.0
    %1379 = vmatprep.subr.mxu0 0.0
    %1380 = vmatpush1.msra.mxu0 0.0
    %1381 = vmatprep.subr.mxu0 0.0
    %1382 = vmatpush1.msra.mxu0 0.0
    %1383 = vmatprep.subr.mxu0 0.0
    %1384 = vmatpush1.msra.mxu0 0.0
    %1385 = vmatprep.subr.mxu0 0.0
    %1386 = vmatpush1.msra.mxu0 0.0
    %1387 = vmatprep.subr.mxu0 0.0
    %1388 = vmatpush1.msra.mxu0 0.0
    %1389 = vmatprep.subr.mxu0 0.0
    %1390 = vmatpush1.msra.mxu0 0.0
    %1391 = vmatprep.subr.mxu0 0.0
    %1392 = vmatpush1.msra.mxu0 0.0
    %1393 = vmatprep.subr.mxu0 0.0
    %1394 = vmatpush1.msra.mxu0 0.0
    %1395 = vmatprep.subr.mxu0 0.0
    %1396 = vmatpush1.msra.mxu0 0.0
    %1397 = vmatprep.subr.mxu0 0.0
    %1398 = vmatpush1.msra.mxu0 0.0
    %1399 = vmatprep.subr.mxu0 0.0
    %1400 = vmatpush1.msra.mxu0 0.0
    %1401 = vmatprep.subr.mxu0 0.0
    %1402 = vmatpush1.msra.mxu0 0.0
    %1403 = vmatprep.subr.mxu0 0.0
    %1404 = vmatpush1.msra.mxu0 0.0
    %1405 = vmatprep.subr.mxu0 0.0
    %1406 = vmatpush1.msra.mxu0 0.0
    %1407 = vmatprep.subr.mxu0 0.0
    %1408 = vmatpush1.msra.mxu0 0.0
    %1409 = vmatprep.subr.mxu0 0.0
    %1410 = vmatpush1.msra.mxu0 0.0
    %1411 = vmatprep.subr.mxu0 0.0
    %1412 = vmatpush1.msra.mxu0 0.0
    %1413 = vmatprep.subr.mxu0 0.0
    %1414 = vmatpush1.msra.mxu0 0.0
    %1415 = vmatprep.subr.mxu0 0.0
    %1416 = vmatpush1.msra.mxu0 0.0
    %1417 = vmatprep.subr.mxu0 0.0
    %1418 = vmatpush1.msra.mxu0 0.0
    %1419 = vmatprep.subr.mxu0 0.0
    %1420 = vmatpush1.msra.mxu0 0.0
    %1421 = vmatprep.subr.mxu0 0.0
    %1422 = vmatpush1.msra.mxu0 0.0
    %1423 = vmatprep.subr.mxu0 0.0
    %1424 = vmatpush1.msra.mxu0 0.0
    %1425 = vmatprep.subr.mxu0 0.0
    %1426 = vmatpush1.msra.mxu0 0.0
    %1427 = vmatprep.subr.mxu0 0.0
    %1428 = vmatpush1.msra.mxu0 0.0
    %1429 = vmatprep.subr.mxu0 0.0
    %1430 = vmatpush1.msra.mxu0 0.0
    %1431 = vmatprep.subr.mxu0 0.0
    %1432 = vmatpush1.msra.mxu0 0.0
    %1433 = vmatprep.subr.mxu0 0.0
    %1434 = vmatpush1.msra.mxu0 0.0
    %1435 = vmatprep.mubr.f32.mxu0 0.0
    %1436 = vmatmul.mubr.f32.gmra.mrb[0].mxu0 %v1369
    %v1437 = vpop.f32.mrb[0].mxu0
    %v1438 = vadd.f32 0.0, %v1437
    %v1439 = vpop.f32.mrb[0].mxu0
    %1440 = vdwg.mxu0
    %1442 = vrot.lane.b32.xlu0 %v218, 64
    %v1443 = vpop.permute.xlu0 %1442
    %v1446 = vsel %vm813, %v901, 0
    %1448 = vmatprep.subr.mxu0 0.0
    %1449 = vmatpush1.msra.mxu0 %v1443
    %1450 = vmatprep.subr.mxu0 0.0
    %1451 = vmatpush1.msra.mxu0 0.0
    %1452 = vmatprep.subr.mxu0 0.0
    %1453 = vmatpush1.msra.mxu0 0.0
    %1454 = vmatprep.subr.mxu0 0.0
    %1455 = vmatpush1.msra.mxu0 0.0
    %1456 = vmatprep.subr.mxu0 0.0
    %1457 = vmatpush1.msra.mxu0 0.0
    %1458 = vmatprep.subr.mxu0 0.0
    %1459 = vmatpush1.msra.mxu0 0.0
    %1460 = vmatprep.subr.mxu0 0.0
    %1461 = vmatpush1.msra.mxu0 0.0
    %1462 = vmatprep.subr.mxu0 0.0
    %1463 = vmatpush1.msra.mxu0 0.0
    %1464 = vmatprep.subr.mxu0 0.0
    %1465 = vmatpush1.msra.mxu0 0.0
    %1466 = vmatprep.subr.mxu0 0.0
    %1467 = vmatpush1.msra.mxu0 0.0
    %1468 = vmatprep.subr.mxu0 0.0
    %1469 = vmatpush1.msra.mxu0 0.0
    %1470 = vmatprep.subr.mxu0 0.0
    %1471 = vmatpush1.msra.mxu0 0.0
    %1472 = vmatprep.subr.mxu0 0.0
    %1473 = vmatpush1.msra.mxu0 0.0
    %1474 = vmatprep.subr.mxu0 0.0
    %1475 = vmatpush1.msra.mxu0 0.0
    %1476 = vmatprep.subr.mxu0 0.0
    %1477 = vmatpush1.msra.mxu0 0.0
    %1478 = vmatprep.subr.mxu0 0.0
    %1479 = vmatpush1.msra.mxu0 0.0
    %1480 = vmatprep.subr.mxu0 0.0
    %1481 = vmatpush1.msra.mxu0 0.0
    %1482 = vmatprep.subr.mxu0 0.0
    %1483 = vmatpush1.msra.mxu0 0.0
    %1484 = vmatprep.subr.mxu0 0.0
    %1485 = vmatpush1.msra.mxu0 0.0
    %1486 = vmatprep.subr.mxu0 0.0
    %1487 = vmatpush1.msra.mxu0 0.0
    %1488 = vmatprep.subr.mxu0 0.0
    %1489 = vmatpush1.msra.mxu0 0.0
    %1490 = vmatprep.subr.mxu0 0.0
    %1491 = vmatpush1.msra.mxu0 0.0
    %1492 = vmatprep.subr.mxu0 0.0
    %1493 = vmatpush1.msra.mxu0 0.0
    %1494 = vmatprep.subr.mxu0 0.0
    %1495 = vmatpush1.msra.mxu0 0.0
    %1496 = vmatprep.subr.mxu0 0.0
    %1497 = vmatpush1.msra.mxu0 0.0
    %1498 = vmatprep.subr.mxu0 0.0
    %1499 = vmatpush1.msra.mxu0 0.0
    %1500 = vmatprep.subr.mxu0 0.0
    %1501 = vmatpush1.msra.mxu0 0.0
    %1502 = vmatprep.subr.mxu0 0.0
    %1503 = vmatpush1.msra.mxu0 0.0
    %1504 = vmatprep.subr.mxu0 0.0
    %1505 = vmatpush1.msra.mxu0 0.0
    %1506 = vmatprep.subr.mxu0 0.0
    %1507 = vmatpush1.msra.mxu0 0.0
    %1508 = vmatprep.subr.mxu0 0.0
    %1509 = vmatpush1.msra.mxu0 0.0
    %1510 = vmatprep.subr.mxu0 0.0
    %1511 = vmatpush1.msra.mxu0 0.0
    %1512 = vmatprep.mubr.f32.mxu0 0.0
    %1513 = vmatmul.mubr.f32.gmra.mrb[0].mxu0 %v1446
    %v1514 = vpop.f32.mrb[0].mxu0
    %v1515 = vadd.f32 0.0, %v1514
    %v1516 = vpop.f32.mrb[0].mxu0
    %1517 = vdwg.mxu0
    %v1518 = vsel %vm65, %v976, 0.0
    %v1519 = vsel %vm65, %v1053, 0.0
    %v1520 = vadd.f32 %v1518, %v1519
    %v1521 = vsel %vm65, %v1130, 0.0
    %v1522 = vadd.f32 %v1520, %v1521
    %v1523 = vsel %vm65, %v1207, 0.0
    %v1524 = vadd.f32 %v1522, %v1523
    %v1525 = vsel %vm65, %v1284, 0.0
    %v1526 = vsel %vm65, %v1361, 0.0
    %v1527 = vadd.f32 %v1525, %v1526
    %v1528 = vsel %vm65, %v1438, 0.0
    %v1529 = vadd.f32 %v1527, %v1528
    %v1530 = vsel %vm65, %v1515, 0.0
    %v1531 = vadd.f32 %v1529, %v1530
    %1536 = vrot.lane.b32.xlu0 %v40, 32
    %v1537 = vpop.permute.xlu0 %1536
    %1538 = vrot.lane.b32.xlu0 %v41, 32
    %v1539 = vpop.permute.xlu0 %1538
    %1540 = vrot.lane.b32.xlu0 %v42, 32
    %v1541 = vpop.permute.xlu0 %1540
    %1542 = vrot.lane.b32.xlu0 %v43, 32
    %v1543 = vpop.permute.xlu0 %1542
    %1548 = vrot.lane.b32.xlu0 %v63, 32
    %v1549 = vpop.permute.xlu0 %1548
    %v1552 = vsel %vm65, %v1524, 0
    %v1555 = vsel %vm65, %v1531, 0
    %1557 = vmatprep.subr.mxu0 0.0
    %1558 = vmatpush1.msra.mxu0 %v1537
    %1559 = vmatprep.subr.mxu0 0.0
    %1560 = vmatpush1.msra.mxu0 %v1539
    %1561 = vmatprep.subr.mxu0 0.0
    %1562 = vmatpush1.msra.mxu0 %v1541
    %1563 = vmatprep.subr.mxu0 0.0
    %1564 = vmatpush1.msra.mxu0 %v1543
    %1565 = vmatprep.subr.mxu0 0.0
    %1566 = vmatpush1.msra.mxu0 0.0
    %1567 = vmatprep.subr.mxu0 0.0
    %1568 = vmatpush1.msra.mxu0 0.0
    %1569 = vmatprep.subr.mxu0 0.0
    %1570 = vmatpush1.msra.mxu0 0.0
    %1571 = vmatprep.subr.mxu0 0.0
    %1572 = vmatpush1.msra.mxu0 0.0
    %1573 = vmatprep.subr.mxu0 0.0
    %1574 = vmatpush1.msra.mxu0 0.0
    %1575 = vmatprep.subr.mxu0 0.0
    %1576 = vmatpush1.msra.mxu0 0.0
    %1577 = vmatprep.subr.mxu0 0.0
    %1578 = vmatpush1.msra.mxu0 0.0
    %1579 = vmatprep.subr.mxu0 0.0
    %1580 = vmatpush1.msra.mxu0 0.0
    %1581 = vmatprep.subr.mxu0 0.0
    %1582 = vmatpush1.msra.mxu0 0.0
    %1583 = vmatprep.subr.mxu0 0.0
    %1584 = vmatpush1.msra.mxu0 0.0
    %1585 = vmatprep.subr.mxu0 0.0
    %1586 = vmatpush1.msra.mxu0 0.0
    %1587 = vmatprep.subr.mxu0 0.0
    %1588 = vmatpush1.msra.mxu0 0.0
    %1589 = vmatprep.subr.mxu0 0.0
    %1590 = vmatpush1.msra.mxu0 0.0
    %1591 = vmatprep.subr.mxu0 0.0
    %1592 = vmatpush1.msra.mxu0 0.0
    %1593 = vmatprep.subr.mxu0 0.0
    %1594 = vmatpush1.msra.mxu0 0.0
    %1595 = vmatprep.subr.mxu0 0.0
    %1596 = vmatpush1.msra.mxu0 0.0
    %1597 = vmatprep.subr.mxu0 0.0
    %1598 = vmatpush1.msra.mxu0 0.0
    %1599 = vmatprep.subr.mxu0 0.0
    %1600 = vmatpush1.msra.mxu0 0.0
    %1601 = vmatprep.subr.mxu0 0.0
    %1602 = vmatpush1.msra.mxu0 0.0
    %1603 = vmatprep.subr.mxu0 0.0
    %1604 = vmatpush1.msra.mxu0 0.0
    %1605 = vmatprep.subr.mxu0 0.0
    %1606 = vmatpush1.msra.mxu0 0.0
    %1607 = vmatprep.subr.mxu0 0.0
    %1608 = vmatpush1.msra.mxu0 0.0
    %1609 = vmatprep.subr.mxu0 0.0
    %1610 = vmatpush1.msra.mxu0 0.0
    %1611 = vmatprep.subr.mxu0 0.0
    %1612 = vmatpush1.msra.mxu0 0.0
    %1613 = vmatprep.subr.mxu0 0.0
    %1614 = vmatpush1.msra.mxu0 0.0
    %1615 = vmatprep.subr.mxu0 0.0
    %1616 = vmatpush1.msra.mxu0 0.0
    %1617 = vmatprep.subr.mxu0 0.0
    %1618 = vmatpush1.msra.mxu0 0.0
    %1619 = vmatprep.subr.mxu0 0.0
    %1620 = vmatpush1.msra.mxu0 0.0
    %1621 = vmatprep.mubr.f32.mxu0 0.0
    %1622 = vmatmul.mubr.f32.gmra.mrb[0].mxu0 %v1552
    %v1623 = vpop.f32.mrb[0].mxu0
    %v1624 = vadd.f32 %v1549, %v1623
    %v1625 = vpop.f32.mrb[0].mxu0
    %1626 = vmatprep.mubr.f32.mxu0 0.0
    %1627 = vmatmul.mubr.f32.gmra.mrb[0].mxu0 %v1555
    %v1628 = vpop.f32.mrb[0].mxu0
    %v1629 = vadd.f32 %v1549, %v1628
    %v1630 = vpop.f32.mrb[0].mxu0
    %1631 = vdwg.mxu0
    %v1632 = vadd.f32 %v1624, %v38
    %v1633 = vadd.f32 %v1629, %v39
    %v1634 = vsel %vm65, %v1632, 0.0
    %1635 = vadd.xlane.f32.xlu0 %v1634
    %v1636 = vpop.xlane.xlu0 %1635
    %v1637 = vsel %vm65, %v1633, 0.0
    %1638 = vadd.xlane.f32.xlu0 %v1637
    %v1639 = vpop.xlane.xlu0 %1638
    %v1640 = vrcp.pop 32.0
    %v1641 = vmul.f32 %v1636, %v1640
    %v1642 = vmul.f32 %v1639, %v1640
    %v1643 = vsub.f32 %v1632, %v1641
    %v1644 = vsub.f32 %v1633, %v1642
    %v1645 = vmul.f32 %v1643, %v1643
    %v1646 = vmul.f32 %v1644, %v1644
    %v1647 = vsel %vm65, %v1645, 0.0
    %1648 = vadd.xlane.f32.xlu0 %v1647
    %v1649 = vpop.xlane.xlu0 %1648
    %v1650 = vsel %vm65, %v1646, 0.0
    %1651 = vadd.xlane.f32.xlu0 %v1650
    %v1652 = vpop.xlane.xlu0 %1651
    %v1653 = vmul.f32 %v1649, %v1640
    %v1654 = vmul.f32 %v1652, %v1640
    %v1655 = vadd.f32 %v1653, 1e-12
    %v1656 = vadd.f32 %v1654, 1e-12
    %v1657 = vrsqrt.pop %v1655
    %v1658 = vrsqrt.pop %v1656
    %v1659 = vmul.f32 %v1643, %v1657
    %v1660 = vmul.f32 %v1644, %v1658
    %v1661 = vlaneseq
    %v1662 = vshrl.u32 %v1661, 7
    %v1663 = vsub.s32 1, %v1662
    %v1664 = vrot.slane %v58, %v1663
    %v1665 = vmul.f32 %v1659, %v1664
    %v1666 = vmul.f32 %v1660, %v1664
    %v1667 = vlaneseq
    %v1668 = vshrl.u32 %v1667, 7
    %v1669 = vsub.s32 2, %v1668
    %v1670 = vrot.slane %v58, %v1669
    %v1671 = vadd.f32 %v1665, %v1670
    %v1672 = vadd.f32 %v1666, %v1670
    %v1674 = vlaneseq
    %v1675 = vshrl.u32 %v1674, 7
    %v1676 = vsub.s32 0, %v1675
    %v1677 = vrot.slane %v49, %v1676
    %v1680 = vsel %vm65, %v1671, 0
    %v1683 = vsel %vm65, %v1672, 0
    %1685 = vmatprep.subr.mxu0 0.0
    %1686 = vmatpush1.msra.mxu0 %v45
    %1687 = vmatprep.subr.mxu0 0.0
    %1688 = vmatpush1.msra.mxu0 %v46
    %1689 = vmatprep.subr.mxu0 0.0
    %1690 = vmatpush1.msra.mxu0 %v47
    %1691 = vmatprep.subr.mxu0 0.0
    %1692 = vmatpush1.msra.mxu0 %v48
    %1693 = vmatprep.subr.mxu0 0.0
    %1694 = vmatpush1.msra.mxu0 0.0
    %1695 = vmatprep.subr.mxu0 0.0
    %1696 = vmatpush1.msra.mxu0 0.0
    %1697 = vmatprep.subr.mxu0 0.0
    %1698 = vmatpush1.msra.mxu0 0.0
    %1699 = vmatprep.subr.mxu0 0.0
    %1700 = vmatpush1.msra.mxu0 0.0
    %1701 = vmatprep.subr.mxu0 0.0
    %1702 = vmatpush1.msra.mxu0 0.0
    %1703 = vmatprep.subr.mxu0 0.0
    %1704 = vmatpush1.msra.mxu0 0.0
    %1705 = vmatprep.subr.mxu0 0.0
    %1706 = vmatpush1.msra.mxu0 0.0
    %1707 = vmatprep.subr.mxu0 0.0
    %1708 = vmatpush1.msra.mxu0 0.0
    %1709 = vmatprep.subr.mxu0 0.0
    %1710 = vmatpush1.msra.mxu0 0.0
    %1711 = vmatprep.subr.mxu0 0.0
    %1712 = vmatpush1.msra.mxu0 0.0
    %1713 = vmatprep.subr.mxu0 0.0
    %1714 = vmatpush1.msra.mxu0 0.0
    %1715 = vmatprep.subr.mxu0 0.0
    %1716 = vmatpush1.msra.mxu0 0.0
    %1717 = vmatprep.subr.mxu0 0.0
    %1718 = vmatpush1.msra.mxu0 0.0
    %1719 = vmatprep.subr.mxu0 0.0
    %1720 = vmatpush1.msra.mxu0 0.0
    %1721 = vmatprep.subr.mxu0 0.0
    %1722 = vmatpush1.msra.mxu0 0.0
    %1723 = vmatprep.subr.mxu0 0.0
    %1724 = vmatpush1.msra.mxu0 0.0
    %1725 = vmatprep.subr.mxu0 0.0
    %1726 = vmatpush1.msra.mxu0 0.0
    %1727 = vmatprep.subr.mxu0 0.0
    %1728 = vmatpush1.msra.mxu0 0.0
    %1729 = vmatprep.subr.mxu0 0.0
    %1730 = vmatpush1.msra.mxu0 0.0
    %1731 = vmatprep.subr.mxu0 0.0
    %1732 = vmatpush1.msra.mxu0 0.0
    %1733 = vmatprep.subr.mxu0 0.0
    %1734 = vmatpush1.msra.mxu0 0.0
    %1735 = vmatprep.subr.mxu0 0.0
    %1736 = vmatpush1.msra.mxu0 0.0
    %1737 = vmatprep.subr.mxu0 0.0
    %1738 = vmatpush1.msra.mxu0 0.0
    %1739 = vmatprep.subr.mxu0 0.0
    %1740 = vmatpush1.msra.mxu0 0.0
    %1741 = vmatprep.subr.mxu0 0.0
    %1742 = vmatpush1.msra.mxu0 0.0
    %1743 = vmatprep.subr.mxu0 0.0
    %1744 = vmatpush1.msra.mxu0 0.0
    %1745 = vmatprep.subr.mxu0 0.0
    %1746 = vmatpush1.msra.mxu0 0.0
    %1747 = vmatprep.subr.mxu0 0.0
    %1748 = vmatpush1.msra.mxu0 0.0
    %1749 = vmatprep.mubr.f32.mxu0 0.0
    %1750 = vmatmul.mubr.f32.gmra.mrb[0].mxu0 %v1680
    %v1751 = vpop.f32.mrb[0].mxu0
    %v1752 = vadd.f32 %v1677, %v1751
    %v1753 = vpop.f32.mrb[0].mxu0
    %1754 = vmatprep.mubr.f32.mxu0 0.0
    %1755 = vmatmul.mubr.f32.gmra.mrb[0].mxu0 %v1683
    %v1756 = vpop.f32.mrb[0].mxu0
    %v1757 = vadd.f32 %v1677, %v1756
    %v1758 = vpop.f32.mrb[0].mxu0
    %1759 = vdwg.mxu0
    %v1760 = vmul.f32 %v1752, 0.5
    %v1761 = vmul.f32 %v1757, 0.5
    %v1762 = vmul.f32 %v1752, 0.70710677
    %v1763 = vmul.f32 %v1757, 0.70710677
    %vm1764 = vcmp.ge.f32.partialorder %v1762, 0.0
    %vm1765 = vcmp.ge.f32.partialorder %v1763, 0.0
    %v1766 = vsel %vm1764, 1.0, -1.0
    %v1767 = vsel %vm1765, 1.0, -1.0
    %v1768 = vand.u32 2147483647, %v1762
    %v1769 = vand.u32 2147483647, %v1763
    %v1770 = vmul.f32 %v1768, 0.3275911
    %v1771 = vmul.f32 %v1769, 0.3275911
    %v1772 = vadd.f32 %v1770, 1.0
    %v1773 = vadd.f32 %v1771, 1.0
    %v1774 = vrcp.pop %v1772
    %v1775 = vmul.f32 1.0, %v1774
    %v1776 = vrcp.pop %v1773
    %v1777 = vmul.f32 1.0, %v1776
    %v1778 = vmul.f32 %v1775, 1.0614054
    %v1779 = vmul.f32 %v1777, 1.0614054
    %v1780 = vadd.f32 %v1778, -1.4531521
    %v1781 = vadd.f32 %v1779, -1.4531521
    %v1782 = vmul.f32 %v1780, %v1775
    %v1783 = vmul.f32 %v1781, %v1777
    %v1784 = vadd.f32 %v1782, 1.4214138
    %v1785 = vadd.f32 %v1783, 1.4214138
    %v1786 = vmul.f32 %v1784, %v1775
    %v1787 = vmul.f32 %v1785, %v1777
    %v1788 = vadd.f32 %v1786, -0.28449672
    %v1789 = vadd.f32 %v1787, -0.28449672
    %v1790 = vmul.f32 %v1788, %v1775
    %v1791 = vmul.f32 %v1789, %v1777
    %v1792 = vadd.f32 %v1790, 0.2548296
    %v1793 = vadd.f32 %v1791, 0.2548296
    %v1794 = vmul.f32 %v1792, %v1775
    %v1795 = vmul.f32 %v1793, %v1777
    %v1796 = vsub.f32 0.0, %v1768
    %v1797 = vsub.f32 0.0, %v1769
    %v1798 = vmul.f32 %v1796, %v1768
    %v1799 = vmul.f32 %v1797, %v1769
    %v1800 = vmul.f32 %v1798, 1.442695
    %v1801 = vpow.pop %v1800
    %v1802 = vmul.f32 %v1799, 1.442695
    %v1803 = vpow.pop %v1802
    %v1804 = vmul.f32 %v1794, %v1801
    %v1805 = vmul.f32 %v1795, %v1803
    %v1806 = vsub.f32 1.0, %v1804
    %v1807 = vsub.f32 1.0, %v1805
    %v1808 = vmul.f32 %v1766, %v1806
    %v1809 = vmul.f32 %v1767, %v1807
    %v1810 = vadd.f32 %v1808, 1.0
    %v1811 = vadd.f32 %v1809, 1.0
    %v1812 = vmul.f32 %v1760, %v1810
    %v1813 = vmul.f32 %v1761, %v1811
    %v1814 = vlaneseq
    %v1815 = vshrl.u32 %v1814, 7
    %v1816 = vsub.s32 0, %v1815
    %v1817 = vrot.slane %v58, %v1816
    %vm1818 = vcmask 523264
    %v1820 = vsel %vm1818, %v1812, 0
    %v1823 = vsel %vm1818, %v1813, 0
    %1825 = vmatprep.subr.mxu0 0.0
    %1826 = vmatpush1.msra.mxu0 %v50
    %1827 = vmatprep.subr.mxu0 0.0
    %1828 = vmatpush1.msra.mxu0 %v51
    %1829 = vmatprep.subr.mxu0 0.0
    %1830 = vmatpush1.msra.mxu0 %v52
    %1831 = vmatprep.subr.mxu0 0.0
    %1832 = vmatpush1.msra.mxu0 %v53
    %1833 = vmatprep.subr.mxu0 0.0
    %1834 = vmatpush1.msra.mxu0 %v54
    %1835 = vmatprep.subr.mxu0 0.0
    %1836 = vmatpush1.msra.mxu0 %v55
    %1837 = vmatprep.subr.mxu0 0.0
    %1838 = vmatpush1.msra.mxu0 %v56
    %1839 = vmatprep.subr.mxu0 0.0
    %1840 = vmatpush1.msra.mxu0 %v57
    %1841 = vmatprep.subr.mxu0 0.0
    %1842 = vmatpush1.msra.mxu0 0.0
    %1843 = vmatprep.subr.mxu0 0.0
    %1844 = vmatpush1.msra.mxu0 0.0
    %1845 = vmatprep.subr.mxu0 0.0
    %1846 = vmatpush1.msra.mxu0 0.0
    %1847 = vmatprep.subr.mxu0 0.0
    %1848 = vmatpush1.msra.mxu0 0.0
    %1849 = vmatprep.subr.mxu0 0.0
    %1850 = vmatpush1.msra.mxu0 0.0
    %1851 = vmatprep.subr.mxu0 0.0
    %1852 = vmatpush1.msra.mxu0 0.0
    %1853 = vmatprep.subr.mxu0 0.0
    %1854 = vmatpush1.msra.mxu0 0.0
    %1855 = vmatprep.subr.mxu0 0.0
    %1856 = vmatpush1.msra.mxu0 0.0
    %1857 = vmatprep.subr.mxu0 0.0
    %1858 = vmatpush1.msra.mxu0 0.0
    %1859 = vmatprep.subr.mxu0 0.0
    %1860 = vmatpush1.msra.mxu0 0.0
    %1861 = vmatprep.subr.mxu0 0.0
    %1862 = vmatpush1.msra.mxu0 0.0
    %1863 = vmatprep.subr.mxu0 0.0
    %1864 = vmatpush1.msra.mxu0 0.0
    %1865 = vmatprep.subr.mxu0 0.0
    %1866 = vmatpush1.msra.mxu0 0.0
    %1867 = vmatprep.subr.mxu0 0.0
    %1868 = vmatpush1.msra.mxu0 0.0
    %1869 = vmatprep.subr.mxu0 0.0
    %1870 = vmatpush1.msra.mxu0 0.0
    %1871 = vmatprep.subr.mxu0 0.0
    %1872 = vmatpush1.msra.mxu0 0.0
    %1873 = vmatprep.subr.mxu0 0.0
    %1874 = vmatpush1.msra.mxu0 0.0
    %1875 = vmatprep.subr.mxu0 0.0
    %1876 = vmatpush1.msra.mxu0 0.0
    %1877 = vmatprep.subr.mxu0 0.0
    %1878 = vmatpush1.msra.mxu0 0.0
    %1879 = vmatprep.subr.mxu0 0.0
    %1880 = vmatpush1.msra.mxu0 0.0
    %1881 = vmatprep.subr.mxu0 0.0
    %1882 = vmatpush1.msra.mxu0 0.0
    %1883 = vmatprep.subr.mxu0 0.0
    %1884 = vmatpush1.msra.mxu0 0.0
    %1885 = vmatprep.subr.mxu0 0.0
    %1886 = vmatpush1.msra.mxu0 0.0
    %1887 = vmatprep.subr.mxu0 0.0
    %1888 = vmatpush1.msra.mxu0 0.0
    %1889 = vmatprep.mubr.f32.mxu0 0.0
    %1890 = vmatmul.mubr.f32.gmra.mrb[0].mxu0 %v1820
    %v1891 = vpop.f32.mrb[0].mxu0
    %v1892 = vadd.f32 %v1817, %v1891
    %v1893 = vpop.f32.mrb[0].mxu0
    %1894 = vmatprep.mubr.f32.mxu0 0.0
    %1895 = vmatmul.mubr.f32.gmra.mrb[0].mxu0 %v1823
    %v1896 = vpop.f32.mrb[0].mxu0
    %v1897 = vadd.f32 %v1817, %v1896
    %v1898 = vpop.f32.mrb[0].mxu0
    %1899 = vdwg.mxu0
    %v1900 = vadd.f32 %v1892, %v1671
    %v1901 = vadd.f32 %v1897, %v1672
    %v1902 = vsel %vm65, %v1900, 0.0
    %1903 = vadd.xlane.f32.xlu0 %v1902
    %v1904 = vpop.xlane.xlu0 %1903
    %v1905 = vsel %vm65, %v1901, 0.0
    %1906 = vadd.xlane.f32.xlu0 %v1905
    %v1907 = vpop.xlane.xlu0 %1906
    %v1908 = vmul.f32 %v1904, %v1640
    %v1909 = vmul.f32 %v1907, %v1640
    %v1910 = vsub.f32 %v1900, %v1908
    %v1911 = vsub.f32 %v1901, %v1909
    %v1912 = vmul.f32 %v1910, %v1910
    %v1913 = vmul.f32 %v1911, %v1911
    %v1914 = vsel %vm65, %v1912, 0.0
    %1915 = vadd.xlane.f32.xlu0 %v1914
    %v1916 = vpop.xlane.xlu0 %1915
    %v1917 = vsel %vm65, %v1913, 0.0
    %1918 = vadd.xlane.f32.xlu0 %v1917
    %v1919 = vpop.xlane.xlu0 %1918
    %v1920 = vmul.f32 %v1916, %v1640
    %v1921 = vmul.f32 %v1919, %v1640
    %v1922 = vadd.f32 %v1920, 1e-12
    %v1923 = vadd.f32 %v1921, 1e-12
    %v1924 = vrsqrt.pop %v1922
    %v1925 = vrsqrt.pop %v1923
    %v1926 = vmul.f32 %v1910, %v1924
    %v1927 = vmul.f32 %v1911, %v1925
    %v1928 = vlaneseq
    %v1929 = vshrl.u32 %v1928, 7
    %v1930 = vsub.s32 3, %v1929
    %v1931 = vrot.slane %v58, %v1930
    %v1932 = vmul.f32 %v1926, %v1931
    %v1933 = vmul.f32 %v1927, %v1931
    %v1934 = vlaneseq
    %v1935 = vshrl.u32 %v1934, 7
    %v1936 = vsub.s32 4, %v1935
    %v1937 = vrot.slane %v58, %v1936
    %v1938 = vadd.f32 %v1932, %v1937
    %v1939 = vadd.f32 %v1933, %v1937
    %s1940 = scalar_lea.vmem %s1, 32
    %v1941 = vld [vmem:[%s1940] sm:$0xff]
    %v1942 = vld [vmem:[%s1940 + $0x8] sm:$0xff]
    %v1943 = vld [vmem:[%s1940 + $0x10] sm:$0xff]
    %v1944 = vld [vmem:[%s1940 + $0x18] sm:$0xff]
    %s1945 = scalar_lea.vmem %s2, 1
    %v1946 = vld [vmem:[%s1945] sm:$0x1]
    %s1947 = scalar_lea.vmem %s3, 32
    %v1948 = vld [vmem:[%s1947] sm:$0xff]
    %v1949 = vld [vmem:[%s1947 + $0x8] sm:$0xff]
    %v1950 = vld [vmem:[%s1947 + $0x10] sm:$0xff]
    %v1951 = vld [vmem:[%s1947 + $0x18] sm:$0xff]
    %s1952 = scalar_lea.vmem %s4, 1
    %v1953 = vld [vmem:[%s1952] sm:$0x1]
    %s1954 = scalar_lea.vmem %s5, 64
    %v1955 = vld [vmem:[%s1954] sm:$0xff]
    %v1956 = vld [vmem:[%s1954 + $0x8] sm:$0xff]
    %v1957 = vld [vmem:[%s1954 + $0x10] sm:$0xff]
    %v1958 = vld [vmem:[%s1954 + $0x18] sm:$0xff]
    %v1959 = vld [vmem:[%s1954 + $0x20] sm:$0xff]
    %v1960 = vld [vmem:[%s1954 + $0x28] sm:$0xff]
    %v1961 = vld [vmem:[%s1954 + $0x30] sm:$0xff]
    %v1962 = vld [vmem:[%s1954 + $0x38] sm:$0xff]
    %s1963 = scalar_lea.vmem %s6, 8
    %v1964 = vld [vmem:[%s1963] sm:$0x1f]
    %v1966 = vlaneseq
    %v1967 = vshrl.u32 %v1966, 7
    %v1968 = vsub.s32 0, %v1967
    %v1969 = vrot.slane %v1946, %v1968
    %v1972 = vsel %vm65, %v1938, 0
    %v1975 = vsel %vm65, %v1939, 0
    %1977 = vmatprep.subr.mxu0 0.0
    %1978 = vmatpush1.msra.mxu0 %v1941
    %1979 = vmatprep.subr.mxu0 0.0
    %1980 = vmatpush1.msra.mxu0 %v1942
    %1981 = vmatprep.subr.mxu0 0.0
    %1982 = vmatpush1.msra.mxu0 %v1943
    %1983 = vmatprep.subr.mxu0 0.0
    %1984 = vmatpush1.msra.mxu0 %v1944
    %1985 = vmatprep.subr.mxu0 0.0
    %1986 = vmatpush1.msra.mxu0 0.0
    %1987 = vmatprep.subr.mxu0 0.0
    %1988 = vmatpush1.msra.mxu0 0.0
    %1989 = vmatprep.subr.mxu0 0.0
    %1990 = vmatpush1.msra.mxu0 0.0
    %1991 = vmatprep.subr.mxu0 0.0
    %1992 = vmatpush1.msra.mxu0 0.0
    %1993 = vmatprep.subr.mxu0 0.0
    %1994 = vmatpush1.msra.mxu0 0.0
    %1995 = vmatprep.subr.mxu0 0.0
    %1996 = vmatpush1.msra.mxu0 0.0
    %1997 = vmatprep.subr.mxu0 0.0
    %1998 = vmatpush1.msra.mxu0 0.0
    %1999 = vmatprep.subr.mxu0 0.0
    %2000 = vmatpush1.msra.mxu0 0.0
    %2001 = vmatprep.subr.mxu0 0.0
    %2002 = vmatpush1.msra.mxu0 0.0
    %2003 = vmatprep.subr.mxu0 0.0
    %2004 = vmatpush1.msra.mxu0 0.0
    %2005 = vmatprep.subr.mxu0 0.0
    %2006 = vmatpush1.msra.mxu0 0.0
    %2007 = vmatprep.subr.mxu0 0.0
    %2008 = vmatpush1.msra.mxu0 0.0
    %2009 = vmatprep.subr.mxu0 0.0
    %2010 = vmatpush1.msra.mxu0 0.0
    %2011 = vmatprep.subr.mxu0 0.0
    %2012 = vmatpush1.msra.mxu0 0.0
    %2013 = vmatprep.subr.mxu0 0.0
    %2014 = vmatpush1.msra.mxu0 0.0
    %2015 = vmatprep.subr.mxu0 0.0
    %2016 = vmatpush1.msra.mxu0 0.0
    %2017 = vmatprep.subr.mxu0 0.0
    %2018 = vmatpush1.msra.mxu0 0.0
    %2019 = vmatprep.subr.mxu0 0.0
    %2020 = vmatpush1.msra.mxu0 0.0
    %2021 = vmatprep.subr.mxu0 0.0
    %2022 = vmatpush1.msra.mxu0 0.0
    %2023 = vmatprep.subr.mxu0 0.0
    %2024 = vmatpush1.msra.mxu0 0.0
    %2025 = vmatprep.subr.mxu0 0.0
    %2026 = vmatpush1.msra.mxu0 0.0
    %2027 = vmatprep.subr.mxu0 0.0
    %2028 = vmatpush1.msra.mxu0 0.0
    %2029 = vmatprep.subr.mxu0 0.0
    %2030 = vmatpush1.msra.mxu0 0.0
    %2031 = vmatprep.subr.mxu0 0.0
    %2032 = vmatpush1.msra.mxu0 0.0
    %2033 = vmatprep.subr.mxu0 0.0
    %2034 = vmatpush1.msra.mxu0 0.0
    %2035 = vmatprep.subr.mxu0 0.0
    %2036 = vmatpush1.msra.mxu0 0.0
    %2037 = vmatprep.subr.mxu0 0.0
    %2038 = vmatpush1.msra.mxu0 0.0
    %2039 = vmatprep.subr.mxu0 0.0
    %2040 = vmatpush1.msra.mxu0 0.0
    %2041 = vmatprep.mubr.f32.mxu0 0.0
    %2042 = vmatmul.mubr.f32.gmra.mrb[0].mxu0 %v1972
    %v2043 = vpop.f32.mrb[0].mxu0
    %v2044 = vadd.f32 %v1969, %v2043
    %v2045 = vpop.f32.mrb[0].mxu0
    %2046 = vmatprep.mubr.f32.mxu0 0.0
    %2047 = vmatmul.mubr.f32.gmra.mrb[0].mxu0 %v1975
    %v2048 = vpop.f32.mrb[0].mxu0
    %v2049 = vadd.f32 %v1969, %v2048
    %v2050 = vpop.f32.mrb[0].mxu0
    %2051 = vdwg.mxu0
    %v2052 = vmul.f32 %v2044, %v154
    %v2053 = vmul.f32 %v2044, %v158
    %v2054 = vmul.f32 %v2044, %v162
    %v2055 = vmul.f32 %v2044, %v166
    %v2056 = vmul.f32 %v2049, %v154
    %v2057 = vmul.f32 %v2049, %v158
    %v2058 = vmul.f32 %v2049, %v162
    %v2059 = vmul.f32 %v2049, %v166
    %v2060 = vmul.f32 %v2044, %v200
    %v2061 = vmul.f32 %v2044, %v202
    %v2062 = vmul.f32 %v2044, %v204
    %v2063 = vmul.f32 %v2044, %v206
    %v2064 = vmul.f32 %v2049, %v200
    %v2065 = vmul.f32 %v2049, %v202
    %v2066 = vmul.f32 %v2049, %v204
    %v2067 = vmul.f32 %v2049, %v206
    %2069 = vrot.lane.b32.xlu0 %v2044, 96
    %v2070 = vpop.permute.xlu0 %2069
    %v2072 = vsel %vm65, %v2052, 0
    %v2074 = vsel %vm65, %v2070, 0
    %2076 = vmatprep.subr.mxu0 0.0
    %2077 = vmatpush1.xpose.msra.mxu0 %v2074
    %2078 = vmatprep.subr.mxu0 0.0
    %2079 = vmatpush1.xpose.msra.mxu0 0.0
    %2080 = vmatprep.subr.mxu0 0.0
    %2081 = vmatpush1.xpose.msra.mxu0 0.0
    %2082 = vmatprep.subr.mxu0 0.0
    %2083 = vmatpush1.xpose.msra.mxu0 0.0
    %2084 = vmatprep.subr.mxu0 0.0
    %2085 = vmatpush1.xpose.msra.mxu0 0.0
    %2086 = vmatprep.subr.mxu0 0.0
    %2087 = vmatpush1.xpose.msra.mxu0 0.0
    %2088 = vmatprep.subr.mxu0 0.0
    %2089 = vmatpush1.xpose.msra.mxu0 0.0
    %2090 = vmatprep.subr.mxu0 0.0
    %2091 = vmatpush1.xpose.msra.mxu0 0.0
    %2092 = vmatprep.subr.mxu0 0.0
    %2093 = vmatpush1.xpose.msra.mxu0 0.0
    %2094 = vmatprep.subr.mxu0 0.0
    %2095 = vmatpush1.xpose.msra.mxu0 0.0
    %2096 = vmatprep.subr.mxu0 0.0
    %2097 = vmatpush1.xpose.msra.mxu0 0.0
    %2098 = vmatprep.subr.mxu0 0.0
    %2099 = vmatpush1.xpose.msra.mxu0 0.0
    %2100 = vmatprep.subr.mxu0 0.0
    %2101 = vmatpush1.xpose.msra.mxu0 0.0
    %2102 = vmatprep.subr.mxu0 0.0
    %2103 = vmatpush1.xpose.msra.mxu0 0.0
    %2104 = vmatprep.subr.mxu0 0.0
    %2105 = vmatpush1.xpose.msra.mxu0 0.0
    %2106 = vmatprep.subr.mxu0 0.0
    %2107 = vmatpush1.xpose.msra.mxu0 0.0
    %2108 = vmatprep.subr.mxu0 0.0
    %2109 = vmatpush1.xpose.msra.mxu0 0.0
    %2110 = vmatprep.subr.mxu0 0.0
    %2111 = vmatpush1.xpose.msra.mxu0 0.0
    %2112 = vmatprep.subr.mxu0 0.0
    %2113 = vmatpush1.xpose.msra.mxu0 0.0
    %2114 = vmatprep.subr.mxu0 0.0
    %2115 = vmatpush1.xpose.msra.mxu0 0.0
    %2116 = vmatprep.subr.mxu0 0.0
    %2117 = vmatpush1.xpose.msra.mxu0 0.0
    %2118 = vmatprep.subr.mxu0 0.0
    %2119 = vmatpush1.xpose.msra.mxu0 0.0
    %2120 = vmatprep.subr.mxu0 0.0
    %2121 = vmatpush1.xpose.msra.mxu0 0.0
    %2122 = vmatprep.subr.mxu0 0.0
    %2123 = vmatpush1.xpose.msra.mxu0 0.0
    %2124 = vmatprep.subr.mxu0 0.0
    %2125 = vmatpush1.xpose.msra.mxu0 0.0
    %2126 = vmatprep.subr.mxu0 0.0
    %2127 = vmatpush1.xpose.msra.mxu0 0.0
    %2128 = vmatprep.subr.mxu0 0.0
    %2129 = vmatpush1.xpose.msra.mxu0 0.0
    %2130 = vmatprep.subr.mxu0 0.0
    %2131 = vmatpush1.xpose.msra.mxu0 0.0
    %2132 = vmatprep.subr.mxu0 0.0
    %2133 = vmatpush1.xpose.msra.mxu0 0.0
    %2134 = vmatprep.subr.mxu0 0.0
    %2135 = vmatpush1.xpose.msra.mxu0 0.0
    %2136 = vmatprep.subr.mxu0 0.0
    %2137 = vmatpush1.xpose.msra.mxu0 0.0
    %2138 = vmatprep.subr.mxu0 0.0
    %2139 = vmatpush1.xpose.msra.mxu0 0.0
    %2140 = vmatprep.mubr.f32.mxu0 0.0
    %2141 = vmatmul.mubr.f32.gmra.mrb[0].mxu0 %v2072
    %v2142 = vpop.f32.mrb[0].mxu0
    %v2143 = vadd.f32 0.0, %v2142
    %v2144 = vpop.f32.mrb[0].mxu0
    %2145 = vdwg.mxu0
    %v2147 = vsel %vm65, %v2053, 0
    %2149 = vmatprep.subr.mxu0 0.0
    %2150 = vmatpush1.xpose.msra.mxu0 %v2074
    %2151 = vmatprep.subr.mxu0 0.0
    %2152 = vmatpush1.xpose.msra.mxu0 0.0
    %2153 = vmatprep.subr.mxu0 0.0
    %2154 = vmatpush1.xpose.msra.mxu0 0.0
    %2155 = vmatprep.subr.mxu0 0.0
    %2156 = vmatpush1.xpose.msra.mxu0 0.0
    %2157 = vmatprep.subr.mxu0 0.0
    %2158 = vmatpush1.xpose.msra.mxu0 0.0
    %2159 = vmatprep.subr.mxu0 0.0
    %2160 = vmatpush1.xpose.msra.mxu0 0.0
    %2161 = vmatprep.subr.mxu0 0.0
    %2162 = vmatpush1.xpose.msra.mxu0 0.0
    %2163 = vmatprep.subr.mxu0 0.0
    %2164 = vmatpush1.xpose.msra.mxu0 0.0
    %2165 = vmatprep.subr.mxu0 0.0
    %2166 = vmatpush1.xpose.msra.mxu0 0.0
    %2167 = vmatprep.subr.mxu0 0.0
    %2168 = vmatpush1.xpose.msra.mxu0 0.0
    %2169 = vmatprep.subr.mxu0 0.0
    %2170 = vmatpush1.xpose.msra.mxu0 0.0
    %2171 = vmatprep.subr.mxu0 0.0
    %2172 = vmatpush1.xpose.msra.mxu0 0.0
    %2173 = vmatprep.subr.mxu0 0.0
    %2174 = vmatpush1.xpose.msra.mxu0 0.0
    %2175 = vmatprep.subr.mxu0 0.0
    %2176 = vmatpush1.xpose.msra.mxu0 0.0
    %2177 = vmatprep.subr.mxu0 0.0
    %2178 = vmatpush1.xpose.msra.mxu0 0.0
    %2179 = vmatprep.subr.mxu0 0.0
    %2180 = vmatpush1.xpose.msra.mxu0 0.0
    %2181 = vmatprep.subr.mxu0 0.0
    %2182 = vmatpush1.xpose.msra.mxu0 0.0
    %2183 = vmatprep.subr.mxu0 0.0
    %2184 = vmatpush1.xpose.msra.mxu0 0.0
    %2185 = vmatprep.subr.mxu0 0.0
    %2186 = vmatpush1.xpose.msra.mxu0 0.0
    %2187 = vmatprep.subr.mxu0 0.0
    %2188 = vmatpush1.xpose.msra.mxu0 0.0
    %2189 = vmatprep.subr.mxu0 0.0
    %2190 = vmatpush1.xpose.msra.mxu0 0.0
    %2191 = vmatprep.subr.mxu0 0.0
    %2192 = vmatpush1.xpose.msra.mxu0 0.0
    %2193 = vmatprep.subr.mxu0 0.0
    %2194 = vmatpush1.xpose.msra.mxu0 0.0
    %2195 = vmatprep.subr.mxu0 0.0
    %2196 = vmatpush1.xpose.msra.mxu0 0.0
    %2197 = vmatprep.subr.mxu0 0.0
    %2198 = vmatpush1.xpose.msra.mxu0 0.0
    %2199 = vmatprep.subr.mxu0 0.0
    %2200 = vmatpush1.xpose.msra.mxu0 0.0
    %2201 = vmatprep.subr.mxu0 0.0
    %2202 = vmatpush1.xpose.msra.mxu0 0.0
    %2203 = vmatprep.subr.mxu0 0.0
    %2204 = vmatpush1.xpose.msra.mxu0 0.0
    %2205 = vmatprep.subr.mxu0 0.0
    %2206 = vmatpush1.xpose.msra.mxu0 0.0
    %2207 = vmatprep.subr.mxu0 0.0
    %2208 = vmatpush1.xpose.msra.mxu0 0.0
    %2209 = vmatprep.subr.mxu0 0.0
    %2210 = vmatpush1.xpose.msra.mxu0 0.0
    %2211 = vmatprep.subr.mxu0 0.0
    %2212 = vmatpush1.xpose.msra.mxu0 0.0
    %2213 = vmatprep.mubr.f32.mxu0 0.0
    %2214 = vmatmul.mubr.f32.gmra.mrb[0].mxu0 %v2147
    %v2215 = vpop.f32.mrb[0].mxu0
    %v2216 = vadd.f32 0.0, %v2215
    %v2217 = vpop.f32.mrb[0].mxu0
    %2218 = vdwg.mxu0
    %v2220 = vsel %vm65, %v2054, 0
    %2222 = vmatprep.subr.mxu0 0.0
    %2223 = vmatpush1.xpose.msra.mxu0 %v2074
    %2224 = vmatprep.subr.mxu0 0.0
    %2225 = vmatpush1.xpose.msra.mxu0 0.0
    %2226 = vmatprep.subr.mxu0 0.0
    %2227 = vmatpush1.xpose.msra.mxu0 0.0
    %2228 = vmatprep.subr.mxu0 0.0
    %2229 = vmatpush1.xpose.msra.mxu0 0.0
    %2230 = vmatprep.subr.mxu0 0.0
    %2231 = vmatpush1.xpose.msra.mxu0 0.0
    %2232 = vmatprep.subr.mxu0 0.0
    %2233 = vmatpush1.xpose.msra.mxu0 0.0
    %2234 = vmatprep.subr.mxu0 0.0
    %2235 = vmatpush1.xpose.msra.mxu0 0.0
    %2236 = vmatprep.subr.mxu0 0.0
    %2237 = vmatpush1.xpose.msra.mxu0 0.0
    %2238 = vmatprep.subr.mxu0 0.0
    %2239 = vmatpush1.xpose.msra.mxu0 0.0
    %2240 = vmatprep.subr.mxu0 0.0
    %2241 = vmatpush1.xpose.msra.mxu0 0.0
    %2242 = vmatprep.subr.mxu0 0.0
    %2243 = vmatpush1.xpose.msra.mxu0 0.0
    %2244 = vmatprep.subr.mxu0 0.0
    %2245 = vmatpush1.xpose.msra.mxu0 0.0
    %2246 = vmatprep.subr.mxu0 0.0
    %2247 = vmatpush1.xpose.msra.mxu0 0.0
    %2248 = vmatprep.subr.mxu0 0.0
    %2249 = vmatpush1.xpose.msra.mxu0 0.0
    %2250 = vmatprep.subr.mxu0 0.0
    %2251 = vmatpush1.xpose.msra.mxu0 0.0
    %2252 = vmatprep.subr.mxu0 0.0
    %2253 = vmatpush1.xpose.msra.mxu0 0.0
    %2254 = vmatprep.subr.mxu0 0.0
    %2255 = vmatpush1.xpose.msra.mxu0 0.0
    %2256 = vmatprep.subr.mxu0 0.0
    %2257 = vmatpush1.xpose.msra.mxu0 0.0
    %2258 = vmatprep.subr.mxu0 0.0
    %2259 = vmatpush1.xpose.msra.mxu0 0.0
    %2260 = vmatprep.subr.mxu0 0.0
    %2261 = vmatpush1.xpose.msra.mxu0 0.0
    %2262 = vmatprep.subr.mxu0 0.0
    %2263 = vmatpush1.xpose.msra.mxu0 0.0
    %2264 = vmatprep.subr.mxu0 0.0
    %2265 = vmatpush1.xpose.msra.mxu0 0.0
    %2266 = vmatprep.subr.mxu0 0.0
    %2267 = vmatpush1.xpose.msra.mxu0 0.0
    %2268 = vmatprep.subr.mxu0 0.0
    %2269 = vmatpush1.xpose.msra.mxu0 0.0
    %2270 = vmatprep.subr.mxu0 0.0
    %2271 = vmatpush1.xpose.msra.mxu0 0.0
    %2272 = vmatprep.subr.mxu0 0.0
    %2273 = vmatpush1.xpose.msra.mxu0 0.0
    %2274 = vmatprep.subr.mxu0 0.0
    %2275 = vmatpush1.xpose.msra.mxu0 0.0
    %2276 = vmatprep.subr.mxu0 0.0
    %2277 = vmatpush1.xpose.msra.mxu0 0.0
    %2278 = vmatprep.subr.mxu0 0.0
    %2279 = vmatpush1.xpose.msra.mxu0 0.0
    %2280 = vmatprep.subr.mxu0 0.0
    %2281 = vmatpush1.xpose.msra.mxu0 0.0
    %2282 = vmatprep.subr.mxu0 0.0
    %2283 = vmatpush1.xpose.msra.mxu0 0.0
    %2284 = vmatprep.subr.mxu0 0.0
    %2285 = vmatpush1.xpose.msra.mxu0 0.0
    %2286 = vmatprep.mubr.f32.mxu0 0.0
    %2287 = vmatmul.mubr.f32.gmra.mrb[0].mxu0 %v2220
    %v2288 = vpop.f32.mrb[0].mxu0
    %v2289 = vadd.f32 0.0, %v2288
    %v2290 = vpop.f32.mrb[0].mxu0
    %2291 = vdwg.mxu0
    %v2293 = vsel %vm65, %v2055, 0
    %2295 = vmatprep.subr.mxu0 0.0
    %2296 = vmatpush1.xpose.msra.mxu0 %v2074
    %2297 = vmatprep.subr.mxu0 0.0
    %2298 = vmatpush1.xpose.msra.mxu0 0.0
    %2299 = vmatprep.subr.mxu0 0.0
    %2300 = vmatpush1.xpose.msra.mxu0 0.0
    %2301 = vmatprep.subr.mxu0 0.0
    %2302 = vmatpush1.xpose.msra.mxu0 0.0
    %2303 = vmatprep.subr.mxu0 0.0
    %2304 = vmatpush1.xpose.msra.mxu0 0.0
    %2305 = vmatprep.subr.mxu0 0.0
    %2306 = vmatpush1.xpose.msra.mxu0 0.0
    %2307 = vmatprep.subr.mxu0 0.0
    %2308 = vmatpush1.xpose.msra.mxu0 0.0
    %2309 = vmatprep.subr.mxu0 0.0
    %2310 = vmatpush1.xpose.msra.mxu0 0.0
    %2311 = vmatprep.subr.mxu0 0.0
    %2312 = vmatpush1.xpose.msra.mxu0 0.0
    %2313 = vmatprep.subr.mxu0 0.0
    %2314 = vmatpush1.xpose.msra.mxu0 0.0
    %2315 = vmatprep.subr.mxu0 0.0
    %2316 = vmatpush1.xpose.msra.mxu0 0.0
    %2317 = vmatprep.subr.mxu0 0.0
    %2318 = vmatpush1.xpose.msra.mxu0 0.0
    %2319 = vmatprep.subr.mxu0 0.0
    %2320 = vmatpush1.xpose.msra.mxu0 0.0
    %2321 = vmatprep.subr.mxu0 0.0
    %2322 = vmatpush1.xpose.msra.mxu0 0.0
    %2323 = vmatprep.subr.mxu0 0.0
    %2324 = vmatpush1.xpose.msra.mxu0 0.0
    %2325 = vmatprep.subr.mxu0 0.0
    %2326 = vmatpush1.xpose.msra.mxu0 0.0
    %2327 = vmatprep.subr.mxu0 0.0
    %2328 = vmatpush1.xpose.msra.mxu0 0.0
    %2329 = vmatprep.subr.mxu0 0.0
    %2330 = vmatpush1.xpose.msra.mxu0 0.0
    %2331 = vmatprep.subr.mxu0 0.0
    %2332 = vmatpush1.xpose.msra.mxu0 0.0
    %2333 = vmatprep.subr.mxu0 0.0
    %2334 = vmatpush1.xpose.msra.mxu0 0.0
    %2335 = vmatprep.subr.mxu0 0.0
    %2336 = vmatpush1.xpose.msra.mxu0 0.0
    %2337 = vmatprep.subr.mxu0 0.0
    %2338 = vmatpush1.xpose.msra.mxu0 0.0
    %2339 = vmatprep.subr.mxu0 0.0
    %2340 = vmatpush1.xpose.msra.mxu0 0.0
    %2341 = vmatprep.subr.mxu0 0.0
    %2342 = vmatpush1.xpose.msra.mxu0 0.0
    %2343 = vmatprep.subr.mxu0 0.0
    %2344 = vmatpush1.xpose.msra.mxu0 0.0
    %2345 = vmatprep.subr.mxu0 0.0
    %2346 = vmatpush1.xpose.msra.mxu0 0.0
    %2347 = vmatprep.subr.mxu0 0.0
    %2348 = vmatpush1.xpose.msra.mxu0 0.0
    %2349 = vmatprep.subr.mxu0 0.0
    %2350 = vmatpush1.xpose.msra.mxu0 0.0
    %2351 = vmatprep.subr.mxu0 0.0
    %2352 = vmatpush1.xpose.msra.mxu0 0.0
    %2353 = vmatprep.subr.mxu0 0.0
    %2354 = vmatpush1.xpose.msra.mxu0 0.0
    %2355 = vmatprep.subr.mxu0 0.0
    %2356 = vmatpush1.xpose.msra.mxu0 0.0
    %2357 = vmatprep.subr.mxu0 0.0
    %2358 = vmatpush1.xpose.msra.mxu0 0.0
    %2359 = vmatprep.mubr.f32.mxu0 0.0
    %2360 = vmatmul.mubr.f32.gmra.mrb[0].mxu0 %v2293
    %v2361 = vpop.f32.mrb[0].mxu0
    %v2362 = vadd.f32 0.0, %v2361
    %v2363 = vpop.f32.mrb[0].mxu0
    %2364 = vdwg.mxu0
    %2366 = vrot.lane.b32.xlu0 %v2049, 96
    %v2367 = vpop.permute.xlu0 %2366
    %v2369 = vsel %vm65, %v2056, 0
    %v2371 = vsel %vm65, %v2367, 0
    %2373 = vmatprep.subr.mxu0 0.0
    %2374 = vmatpush1.xpose.msra.mxu0 %v2371
    %2375 = vmatprep.subr.mxu0 0.0
    %2376 = vmatpush1.xpose.msra.mxu0 0.0
    %2377 = vmatprep.subr.mxu0 0.0
    %2378 = vmatpush1.xpose.msra.mxu0 0.0
    %2379 = vmatprep.subr.mxu0 0.0
    %2380 = vmatpush1.xpose.msra.mxu0 0.0
    %2381 = vmatprep.subr.mxu0 0.0
    %2382 = vmatpush1.xpose.msra.mxu0 0.0
    %2383 = vmatprep.subr.mxu0 0.0
    %2384 = vmatpush1.xpose.msra.mxu0 0.0
    %2385 = vmatprep.subr.mxu0 0.0
    %2386 = vmatpush1.xpose.msra.mxu0 0.0
    %2387 = vmatprep.subr.mxu0 0.0
    %2388 = vmatpush1.xpose.msra.mxu0 0.0
    %2389 = vmatprep.subr.mxu0 0.0
    %2390 = vmatpush1.xpose.msra.mxu0 0.0
    %2391 = vmatprep.subr.mxu0 0.0
    %2392 = vmatpush1.xpose.msra.mxu0 0.0
    %2393 = vmatprep.subr.mxu0 0.0
    %2394 = vmatpush1.xpose.msra.mxu0 0.0
    %2395 = vmatprep.subr.mxu0 0.0
    %2396 = vmatpush1.xpose.msra.mxu0 0.0
    %2397 = vmatprep.subr.mxu0 0.0
    %2398 = vmatpush1.xpose.msra.mxu0 0.0
    %2399 = vmatprep.subr.mxu0 0.0
    %2400 = vmatpush1.xpose.msra.mxu0 0.0
    %2401 = vmatprep.subr.mxu0 0.0
    %2402 = vmatpush1.xpose.msra.mxu0 0.0
    %2403 = vmatprep.subr.mxu0 0.0
    %2404 = vmatpush1.xpose.msra.mxu0 0.0
    %2405 = vmatprep.subr.mxu0 0.0
    %2406 = vmatpush1.xpose.msra.mxu0 0.0
    %2407 = vmatprep.subr.mxu0 0.0
    %2408 = vmatpush1.xpose.msra.mxu0 0.0
    %2409 = vmatprep.subr.mxu0 0.0
    %2410 = vmatpush1.xpose.msra.mxu0 0.0
    %2411 = vmatprep.subr.mxu0 0.0
    %2412 = vmatpush1.xpose.msra.mxu0 0.0
    %2413 = vmatprep.subr.mxu0 0.0
    %2414 = vmatpush1.xpose.msra.mxu0 0.0
    %2415 = vmatprep.subr.mxu0 0.0
    %2416 = vmatpush1.xpose.msra.mxu0 0.0
    %2417 = vmatprep.subr.mxu0 0.0
    %2418 = vmatpush1.xpose.msra.mxu0 0.0
    %2419 = vmatprep.subr.mxu0 0.0
    %2420 = vmatpush1.xpose.msra.mxu0 0.0
    %2421 = vmatprep.subr.mxu0 0.0
    %2422 = vmatpush1.xpose.msra.mxu0 0.0
    %2423 = vmatprep.subr.mxu0 0.0
    %2424 = vmatpush1.xpose.msra.mxu0 0.0
    %2425 = vmatprep.subr.mxu0 0.0
    %2426 = vmatpush1.xpose.msra.mxu0 0.0
    %2427 = vmatprep.subr.mxu0 0.0
    %2428 = vmatpush1.xpose.msra.mxu0 0.0
    %2429 = vmatprep.subr.mxu0 0.0
    %2430 = vmatpush1.xpose.msra.mxu0 0.0
    %2431 = vmatprep.subr.mxu0 0.0
    %2432 = vmatpush1.xpose.msra.mxu0 0.0
    %2433 = vmatprep.subr.mxu0 0.0
    %2434 = vmatpush1.xpose.msra.mxu0 0.0
    %2435 = vmatprep.subr.mxu0 0.0
    %2436 = vmatpush1.xpose.msra.mxu0 0.0
    %2437 = vmatprep.mubr.f32.mxu0 0.0
    %2438 = vmatmul.mubr.f32.gmra.mrb[0].mxu0 %v2369
    %v2439 = vpop.f32.mrb[0].mxu0
    %v2440 = vadd.f32 0.0, %v2439
    %v2441 = vpop.f32.mrb[0].mxu0
    %2442 = vdwg.mxu0
    %v2444 = vsel %vm65, %v2057, 0
    %2446 = vmatprep.subr.mxu0 0.0
    %2447 = vmatpush1.xpose.msra.mxu0 %v2371
    %2448 = vmatprep.subr.mxu0 0.0
    %2449 = vmatpush1.xpose.msra.mxu0 0.0
    %2450 = vmatprep.subr.mxu0 0.0
    %2451 = vmatpush1.xpose.msra.mxu0 0.0
    %2452 = vmatprep.subr.mxu0 0.0
    %2453 = vmatpush1.xpose.msra.mxu0 0.0
    %2454 = vmatprep.subr.mxu0 0.0
    %2455 = vmatpush1.xpose.msra.mxu0 0.0
    %2456 = vmatprep.subr.mxu0 0.0
    %2457 = vmatpush1.xpose.msra.mxu0 0.0
    %2458 = vmatprep.subr.mxu0 0.0
    %2459 = vmatpush1.xpose.msra.mxu0 0.0
    %2460 = vmatprep.subr.mxu0 0.0
    %2461 = vmatpush1.xpose.msra.mxu0 0.0
    %2462 = vmatprep.subr.mxu0 0.0
    %2463 = vmatpush1.xpose.msra.mxu0 0.0
    %2464 = vmatprep.subr.mxu0 0.0
    %2465 = vmatpush1.xpose.msra.mxu0 0.0
    %2466 = vmatprep.subr.mxu0 0.0
    %2467 = vmatpush1.xpose.msra.mxu0 0.0
    %2468 = vmatprep.subr.mxu0 0.0
    %2469 = vmatpush1.xpose.msra.mxu0 0.0
    %2470 = vmatprep.subr.mxu0 0.0
    %2471 = vmatpush1.xpose.msra.mxu0 0.0
    %2472 = vmatprep.subr.mxu0 0.0
    %2473 = vmatpush1.xpose.msra.mxu0 0.0
    %2474 = vmatprep.subr.mxu0 0.0
    %2475 = vmatpush1.xpose.msra.mxu0 0.0
    %2476 = vmatprep.subr.mxu0 0.0
    %2477 = vmatpush1.xpose.msra.mxu0 0.0
    %2478 = vmatprep.subr.mxu0 0.0
    %2479 = vmatpush1.xpose.msra.mxu0 0.0
    %2480 = vmatprep.subr.mxu0 0.0
    %2481 = vmatpush1.xpose.msra.mxu0 0.0
    %2482 = vmatprep.subr.mxu0 0.0
    %2483 = vmatpush1.xpose.msra.mxu0 0.0
    %2484 = vmatprep.subr.mxu0 0.0
    %2485 = vmatpush1.xpose.msra.mxu0 0.0
    %2486 = vmatprep.subr.mxu0 0.0
    %2487 = vmatpush1.xpose.msra.mxu0 0.0
    %2488 = vmatprep.subr.mxu0 0.0
    %2489 = vmatpush1.xpose.msra.mxu0 0.0
    %2490 = vmatprep.subr.mxu0 0.0
    %2491 = vmatpush1.xpose.msra.mxu0 0.0
    %2492 = vmatprep.subr.mxu0 0.0
    %2493 = vmatpush1.xpose.msra.mxu0 0.0
    %2494 = vmatprep.subr.mxu0 0.0
    %2495 = vmatpush1.xpose.msra.mxu0 0.0
    %2496 = vmatprep.subr.mxu0 0.0
    %2497 = vmatpush1.xpose.msra.mxu0 0.0
    %2498 = vmatprep.subr.mxu0 0.0
    %2499 = vmatpush1.xpose.msra.mxu0 0.0
    %2500 = vmatprep.subr.mxu0 0.0
    %2501 = vmatpush1.xpose.msra.mxu0 0.0
    %2502 = vmatprep.subr.mxu0 0.0
    %2503 = vmatpush1.xpose.msra.mxu0 0.0
    %2504 = vmatprep.subr.mxu0 0.0
    %2505 = vmatpush1.xpose.msra.mxu0 0.0
    %2506 = vmatprep.subr.mxu0 0.0
    %2507 = vmatpush1.xpose.msra.mxu0 0.0
    %2508 = vmatprep.subr.mxu0 0.0
    %2509 = vmatpush1.xpose.msra.mxu0 0.0
    %2510 = vmatprep.mubr.f32.mxu0 0.0
    %2511 = vmatmul.mubr.f32.gmra.mrb[0].mxu0 %v2444
    %v2512 = vpop.f32.mrb[0].mxu0
    %v2513 = vadd.f32 0.0, %v2512
    %v2514 = vpop.f32.mrb[0].mxu0
    %2515 = vdwg.mxu0
    %v2517 = vsel %vm65, %v2058, 0
    %2519 = vmatprep.subr.mxu0 0.0
    %2520 = vmatpush1.xpose.msra.mxu0 %v2371
    %2521 = vmatprep.subr.mxu0 0.0
    %2522 = vmatpush1.xpose.msra.mxu0 0.0
    %2523 = vmatprep.subr.mxu0 0.0
    %2524 = vmatpush1.xpose.msra.mxu0 0.0
    %2525 = vmatprep.subr.mxu0 0.0
    %2526 = vmatpush1.xpose.msra.mxu0 0.0
    %2527 = vmatprep.subr.mxu0 0.0
    %2528 = vmatpush1.xpose.msra.mxu0 0.0
    %2529 = vmatprep.subr.mxu0 0.0
    %2530 = vmatpush1.xpose.msra.mxu0 0.0
    %2531 = vmatprep.subr.mxu0 0.0
    %2532 = vmatpush1.xpose.msra.mxu0 0.0
    %2533 = vmatprep.subr.mxu0 0.0
    %2534 = vmatpush1.xpose.msra.mxu0 0.0
    %2535 = vmatprep.subr.mxu0 0.0
    %2536 = vmatpush1.xpose.msra.mxu0 0.0
    %2537 = vmatprep.subr.mxu0 0.0
    %2538 = vmatpush1.xpose.msra.mxu0 0.0
    %2539 = vmatprep.subr.mxu0 0.0
    %2540 = vmatpush1.xpose.msra.mxu0 0.0
    %2541 = vmatprep.subr.mxu0 0.0
    %2542 = vmatpush1.xpose.msra.mxu0 0.0
    %2543 = vmatprep.subr.mxu0 0.0
    %2544 = vmatpush1.xpose.msra.mxu0 0.0
    %2545 = vmatprep.subr.mxu0 0.0
    %2546 = vmatpush1.xpose.msra.mxu0 0.0
    %2547 = vmatprep.subr.mxu0 0.0
    %2548 = vmatpush1.xpose.msra.mxu0 0.0
    %2549 = vmatprep.subr.mxu0 0.0
    %2550 = vmatpush1.xpose.msra.mxu0 0.0
    %2551 = vmatprep.subr.mxu0 0.0
    %2552 = vmatpush1.xpose.msra.mxu0 0.0
    %2553 = vmatprep.subr.mxu0 0.0
    %2554 = vmatpush1.xpose.msra.mxu0 0.0
    %2555 = vmatprep.subr.mxu0 0.0
    %2556 = vmatpush1.xpose.msra.mxu0 0.0
    %2557 = vmatprep.subr.mxu0 0.0
    %2558 = vmatpush1.xpose.msra.mxu0 0.0
    %2559 = vmatprep.subr.mxu0 0.0
    %2560 = vmatpush1.xpose.msra.mxu0 0.0
    %2561 = vmatprep.subr.mxu0 0.0
    %2562 = vmatpush1.xpose.msra.mxu0 0.0
    %2563 = vmatprep.subr.mxu0 0.0
    %2564 = vmatpush1.xpose.msra.mxu0 0.0
    %2565 = vmatprep.subr.mxu0 0.0
    %2566 = vmatpush1.xpose.msra.mxu0 0.0
    %2567 = vmatprep.subr.mxu0 0.0
    %2568 = vmatpush1.xpose.msra.mxu0 0.0
    %2569 = vmatprep.subr.mxu0 0.0
    %2570 = vmatpush1.xpose.msra.mxu0 0.0
    %2571 = vmatprep.subr.mxu0 0.0
    %2572 = vmatpush1.xpose.msra.mxu0 0.0
    %2573 = vmatprep.subr.mxu0 0.0
    %2574 = vmatpush1.xpose.msra.mxu0 0.0
    %2575 = vmatprep.subr.mxu0 0.0
    %2576 = vmatpush1.xpose.msra.mxu0 0.0
    %2577 = vmatprep.subr.mxu0 0.0
    %2578 = vmatpush1.xpose.msra.mxu0 0.0
    %2579 = vmatprep.subr.mxu0 0.0
    %2580 = vmatpush1.xpose.msra.mxu0 0.0
    %2581 = vmatprep.subr.mxu0 0.0
    %2582 = vmatpush1.xpose.msra.mxu0 0.0
    %2583 = vmatprep.mubr.f32.mxu0 0.0
    %2584 = vmatmul.mubr.f32.gmra.mrb[0].mxu0 %v2517
    %v2585 = vpop.f32.mrb[0].mxu0
    %v2586 = vadd.f32 0.0, %v2585
    %v2587 = vpop.f32.mrb[0].mxu0
    %2588 = vdwg.mxu0
    %v2590 = vsel %vm65, %v2059, 0
    %2592 = vmatprep.subr.mxu0 0.0
    %2593 = vmatpush1.xpose.msra.mxu0 %v2371
    %2594 = vmatprep.subr.mxu0 0.0
    %2595 = vmatpush1.xpose.msra.mxu0 0.0
    %2596 = vmatprep.subr.mxu0 0.0
    %2597 = vmatpush1.xpose.msra.mxu0 0.0
    %2598 = vmatprep.subr.mxu0 0.0
    %2599 = vmatpush1.xpose.msra.mxu0 0.0
    %2600 = vmatprep.subr.mxu0 0.0
    %2601 = vmatpush1.xpose.msra.mxu0 0.0
    %2602 = vmatprep.subr.mxu0 0.0
    %2603 = vmatpush1.xpose.msra.mxu0 0.0
    %2604 = vmatprep.subr.mxu0 0.0
    %2605 = vmatpush1.xpose.msra.mxu0 0.0
    %2606 = vmatprep.subr.mxu0 0.0
    %2607 = vmatpush1.xpose.msra.mxu0 0.0
    %2608 = vmatprep.subr.mxu0 0.0
    %2609 = vmatpush1.xpose.msra.mxu0 0.0
    %2610 = vmatprep.subr.mxu0 0.0
    %2611 = vmatpush1.xpose.msra.mxu0 0.0
    %2612 = vmatprep.subr.mxu0 0.0
    %2613 = vmatpush1.xpose.msra.mxu0 0.0
    %2614 = vmatprep.subr.mxu0 0.0
    %2615 = vmatpush1.xpose.msra.mxu0 0.0
    %2616 = vmatprep.subr.mxu0 0.0
    %2617 = vmatpush1.xpose.msra.mxu0 0.0
    %2618 = vmatprep.subr.mxu0 0.0
    %2619 = vmatpush1.xpose.msra.mxu0 0.0
    %2620 = vmatprep.subr.mxu0 0.0
    %2621 = vmatpush1.xpose.msra.mxu0 0.0
    %2622 = vmatprep.subr.mxu0 0.0
    %2623 = vmatpush1.xpose.msra.mxu0 0.0
    %2624 = vmatprep.subr.mxu0 0.0
    %2625 = vmatpush1.xpose.msra.mxu0 0.0
    %2626 = vmatprep.subr.mxu0 0.0
    %2627 = vmatpush1.xpose.msra.mxu0 0.0
    %2628 = vmatprep.subr.mxu0 0.0
    %2629 = vmatpush1.xpose.msra.mxu0 0.0
    %2630 = vmatprep.subr.mxu0 0.0
    %2631 = vmatpush1.xpose.msra.mxu0 0.0
    %2632 = vmatprep.subr.mxu0 0.0
    %2633 = vmatpush1.xpose.msra.mxu0 0.0
    %2634 = vmatprep.subr.mxu0 0.0
    %2635 = vmatpush1.xpose.msra.mxu0 0.0
    %2636 = vmatprep.subr.mxu0 0.0
    %2637 = vmatpush1.xpose.msra.mxu0 0.0
    %2638 = vmatprep.subr.mxu0 0.0
    %2639 = vmatpush1.xpose.msra.mxu0 0.0
    %2640 = vmatprep.subr.mxu0 0.0
    %2641 = vmatpush1.xpose.msra.mxu0 0.0
    %2642 = vmatprep.subr.mxu0 0.0
    %2643 = vmatpush1.xpose.msra.mxu0 0.0
    %2644 = vmatprep.subr.mxu0 0.0
    %2645 = vmatpush1.xpose.msra.mxu0 0.0
    %2646 = vmatprep.subr.mxu0 0.0
    %2647 = vmatpush1.xpose.msra.mxu0 0.0
    %2648 = vmatprep.subr.mxu0 0.0
    %2649 = vmatpush1.xpose.msra.mxu0 0.0
    %2650 = vmatprep.subr.mxu0 0.0
    %2651 = vmatpush1.xpose.msra.mxu0 0.0
    %2652 = vmatprep.subr.mxu0 0.0
    %2653 = vmatpush1.xpose.msra.mxu0 0.0
    %2654 = vmatprep.subr.mxu0 0.0
    %2655 = vmatpush1.xpose.msra.mxu0 0.0
    %2656 = vmatprep.mubr.f32.mxu0 0.0
    %2657 = vmatmul.mubr.f32.gmra.mrb[0].mxu0 %v2590
    %v2658 = vpop.f32.mrb[0].mxu0
    %v2659 = vadd.f32 0.0, %v2658
    %v2660 = vpop.f32.mrb[0].mxu0
    %2661 = vdwg.mxu0
    %v2662 = vsel %vm813, %v2143, -inf
    %2663 = vmax.xlane.f32.xlu0 %v2662
    %v2664 = vpop.xlane.xlu0 %2663
    %v2665 = vsel %vm813, %v2216, -inf
    %2666 = vmax.xlane.f32.xlu0 %v2665
    %v2667 = vpop.xlane.xlu0 %2666
    %v2668 = vsel %vm813, %v2289, -inf
    %2669 = vmax.xlane.f32.xlu0 %v2668
    %v2670 = vpop.xlane.xlu0 %2669
    %v2671 = vsel %vm813, %v2362, -inf
    %2672 = vmax.xlane.f32.xlu0 %v2671
    %v2673 = vpop.xlane.xlu0 %2672
    %v2674 = vsel %vm813, %v2440, -inf
    %2675 = vmax.xlane.f32.xlu0 %v2674
    %v2676 = vpop.xlane.xlu0 %2675
    %v2677 = vsel %vm813, %v2513, -inf
    %2678 = vmax.xlane.f32.xlu0 %v2677
    %v2679 = vpop.xlane.xlu0 %2678
    %v2680 = vsel %vm813, %v2586, -inf
    %2681 = vmax.xlane.f32.xlu0 %v2680
    %v2682 = vpop.xlane.xlu0 %2681
    %v2683 = vsel %vm813, %v2659, -inf
    %2684 = vmax.xlane.f32.xlu0 %v2683
    %v2685 = vpop.xlane.xlu0 %2684
    %v2686 = vsub.f32 %v2143, %v2664
    %v2687 = vsub.f32 %v2216, %v2667
    %v2688 = vsub.f32 %v2289, %v2670
    %v2689 = vsub.f32 %v2362, %v2673
    %v2690 = vsub.f32 %v2440, %v2676
    %v2691 = vsub.f32 %v2513, %v2679
    %v2692 = vsub.f32 %v2586, %v2682
    %v2693 = vsub.f32 %v2659, %v2685
    %v2694 = vmul.f32 %v2686, 1.442695
    %v2695 = vpow.pop %v2694
    %v2696 = vmul.f32 %v2687, 1.442695
    %v2697 = vpow.pop %v2696
    %v2698 = vmul.f32 %v2688, 1.442695
    %v2699 = vpow.pop %v2698
    %v2700 = vmul.f32 %v2689, 1.442695
    %v2701 = vpow.pop %v2700
    %v2702 = vmul.f32 %v2690, 1.442695
    %v2703 = vpow.pop %v2702
    %v2704 = vmul.f32 %v2691, 1.442695
    %v2705 = vpow.pop %v2704
    %v2706 = vmul.f32 %v2692, 1.442695
    %v2707 = vpow.pop %v2706
    %v2708 = vmul.f32 %v2693, 1.442695
    %v2709 = vpow.pop %v2708
    %v2710 = vsel %vm813, %v2695, 0.0
    %2711 = vadd.xlane.f32.xlu0 %v2710
    %v2712 = vpop.xlane.xlu0 %2711
    %v2713 = vsel %vm813, %v2697, 0.0
    %2714 = vadd.xlane.f32.xlu0 %v2713
    %v2715 = vpop.xlane.xlu0 %2714
    %v2716 = vsel %vm813, %v2699, 0.0
    %2717 = vadd.xlane.f32.xlu0 %v2716
    %v2718 = vpop.xlane.xlu0 %2717
    %v2719 = vsel %vm813, %v2701, 0.0
    %2720 = vadd.xlane.f32.xlu0 %v2719
    %v2721 = vpop.xlane.xlu0 %2720
    %v2722 = vsel %vm813, %v2703, 0.0
    %2723 = vadd.xlane.f32.xlu0 %v2722
    %v2724 = vpop.xlane.xlu0 %2723
    %v2725 = vsel %vm813, %v2705, 0.0
    %2726 = vadd.xlane.f32.xlu0 %v2725
    %v2727 = vpop.xlane.xlu0 %2726
    %v2728 = vsel %vm813, %v2707, 0.0
    %2729 = vadd.xlane.f32.xlu0 %v2728
    %v2730 = vpop.xlane.xlu0 %2729
    %v2731 = vsel %vm813, %v2709, 0.0
    %2732 = vadd.xlane.f32.xlu0 %v2731
    %v2733 = vpop.xlane.xlu0 %2732
    %v2734 = vrcp.pop %v2712
    %v2735 = vrcp.pop %v2715
    %v2736 = vrcp.pop %v2718
    %v2737 = vrcp.pop %v2721
    %v2738 = vrcp.pop %v2724
    %v2739 = vrcp.pop %v2727
    %v2740 = vrcp.pop %v2730
    %v2741 = vrcp.pop %v2733
    %v2742 = vmul.f32 %v2695, %v2734
    %v2743 = vmul.f32 %v2697, %v2735
    %v2744 = vmul.f32 %v2699, %v2736
    %v2745 = vmul.f32 %v2701, %v2737
    %v2746 = vmul.f32 %v2703, %v2738
    %v2747 = vmul.f32 %v2705, %v2739
    %v2748 = vmul.f32 %v2707, %v2740
    %v2749 = vmul.f32 %v2709, %v2741
    %2751 = vrot.lane.b32.xlu0 %v2060, 64
    %v2752 = vpop.permute.xlu0 %2751
    %v2755 = vsel %vm813, %v2742, 0
    %2757 = vmatprep.subr.mxu0 0.0
    %2758 = vmatpush1.msra.mxu0 %v2752
    %2759 = vmatprep.subr.mxu0 0.0
    %2760 = vmatpush1.msra.mxu0 0.0
    %2761 = vmatprep.subr.mxu0 0.0
    %2762 = vmatpush1.msra.mxu0 0.0
    %2763 = vmatprep.subr.mxu0 0.0
    %2764 = vmatpush1.msra.mxu0 0.0
    %2765 = vmatprep.subr.mxu0 0.0
    %2766 = vmatpush1.msra.mxu0 0.0
    %2767 = vmatprep.subr.mxu0 0.0
    %2768 = vmatpush1.msra.mxu0 0.0
    %2769 = vmatprep.subr.mxu0 0.0
    %2770 = vmatpush1.msra.mxu0 0.0
    %2771 = vmatprep.subr.mxu0 0.0
    %2772 = vmatpush1.msra.mxu0 0.0
    %2773 = vmatprep.subr.mxu0 0.0
    %2774 = vmatpush1.msra.mxu0 0.0
    %2775 = vmatprep.subr.mxu0 0.0
    %2776 = vmatpush1.msra.mxu0 0.0
    %2777 = vmatprep.subr.mxu0 0.0
    %2778 = vmatpush1.msra.mxu0 0.0
    %2779 = vmatprep.subr.mxu0 0.0
    %2780 = vmatpush1.msra.mxu0 0.0
    %2781 = vmatprep.subr.mxu0 0.0
    %2782 = vmatpush1.msra.mxu0 0.0
    %2783 = vmatprep.subr.mxu0 0.0
    %2784 = vmatpush1.msra.mxu0 0.0
    %2785 = vmatprep.subr.mxu0 0.0
    %2786 = vmatpush1.msra.mxu0 0.0
    %2787 = vmatprep.subr.mxu0 0.0
    %2788 = vmatpush1.msra.mxu0 0.0
    %2789 = vmatprep.subr.mxu0 0.0
    %2790 = vmatpush1.msra.mxu0 0.0
    %2791 = vmatprep.subr.mxu0 0.0
    %2792 = vmatpush1.msra.mxu0 0.0
    %2793 = vmatprep.subr.mxu0 0.0
    %2794 = vmatpush1.msra.mxu0 0.0
    %2795 = vmatprep.subr.mxu0 0.0
    %2796 = vmatpush1.msra.mxu0 0.0
    %2797 = vmatprep.subr.mxu0 0.0
    %2798 = vmatpush1.msra.mxu0 0.0
    %2799 = vmatprep.subr.mxu0 0.0
    %2800 = vmatpush1.msra.mxu0 0.0
    %2801 = vmatprep.subr.mxu0 0.0
    %2802 = vmatpush1.msra.mxu0 0.0
    %2803 = vmatprep.subr.mxu0 0.0
    %2804 = vmatpush1.msra.mxu0 0.0
    %2805 = vmatprep.subr.mxu0 0.0
    %2806 = vmatpush1.msra.mxu0 0.0
    %2807 = vmatprep.subr.mxu0 0.0
    %2808 = vmatpush1.msra.mxu0 0.0
    %2809 = vmatprep.subr.mxu0 0.0
    %2810 = vmatpush1.msra.mxu0 0.0
    %2811 = vmatprep.subr.mxu0 0.0
    %2812 = vmatpush1.msra.mxu0 0.0
    %2813 = vmatprep.subr.mxu0 0.0
    %2814 = vmatpush1.msra.mxu0 0.0
    %2815 = vmatprep.subr.mxu0 0.0
    %2816 = vmatpush1.msra.mxu0 0.0
    %2817 = vmatprep.subr.mxu0 0.0
    %2818 = vmatpush1.msra.mxu0 0.0
    %2819 = vmatprep.subr.mxu0 0.0
    %2820 = vmatpush1.msra.mxu0 0.0
    %2821 = vmatprep.mubr.f32.mxu0 0.0
    %2822 = vmatmul.mubr.f32.gmra.mrb[0].mxu0 %v2755
    %v2823 = vpop.f32.mrb[0].mxu0
    %v2824 = vadd.f32 0.0, %v2823
    %v2825 = vpop.f32.mrb[0].mxu0
    %2826 = vdwg.mxu0
    %2828 = vrot.lane.b32.xlu0 %v2061, 64
    %v2829 = vpop.permute.xlu0 %2828
    %v2832 = vsel %vm813, %v2743, 0
    %2834 = vmatprep.subr.mxu0 0.0
    %2835 = vmatpush1.msra.mxu0 %v2829
    %2836 = vmatprep.subr.mxu0 0.0
    %2837 = vmatpush1.msra.mxu0 0.0
    %2838 = vmatprep.subr.mxu0 0.0
    %2839 = vmatpush1.msra.mxu0 0.0
    %2840 = vmatprep.subr.mxu0 0.0
    %2841 = vmatpush1.msra.mxu0 0.0
    %2842 = vmatprep.subr.mxu0 0.0
    %2843 = vmatpush1.msra.mxu0 0.0
    %2844 = vmatprep.subr.mxu0 0.0
    %2845 = vmatpush1.msra.mxu0 0.0
    %2846 = vmatprep.subr.mxu0 0.0
    %2847 = vmatpush1.msra.mxu0 0.0
    %2848 = vmatprep.subr.mxu0 0.0
    %2849 = vmatpush1.msra.mxu0 0.0
    %2850 = vmatprep.subr.mxu0 0.0
    %2851 = vmatpush1.msra.mxu0 0.0
    %2852 = vmatprep.subr.mxu0 0.0
    %2853 = vmatpush1.msra.mxu0 0.0
    %2854 = vmatprep.subr.mxu0 0.0
    %2855 = vmatpush1.msra.mxu0 0.0
    %2856 = vmatprep.subr.mxu0 0.0
    %2857 = vmatpush1.msra.mxu0 0.0
    %2858 = vmatprep.subr.mxu0 0.0
    %2859 = vmatpush1.msra.mxu0 0.0
    %2860 = vmatprep.subr.mxu0 0.0
    %2861 = vmatpush1.msra.mxu0 0.0
    %2862 = vmatprep.subr.mxu0 0.0
    %2863 = vmatpush1.msra.mxu0 0.0
    %2864 = vmatprep.subr.mxu0 0.0
    %2865 = vmatpush1.msra.mxu0 0.0
    %2866 = vmatprep.subr.mxu0 0.0
    %2867 = vmatpush1.msra.mxu0 0.0
    %2868 = vmatprep.subr.mxu0 0.0
    %2869 = vmatpush1.msra.mxu0 0.0
    %2870 = vmatprep.subr.mxu0 0.0
    %2871 = vmatpush1.msra.mxu0 0.0
    %2872 = vmatprep.subr.mxu0 0.0
    %2873 = vmatpush1.msra.mxu0 0.0
    %2874 = vmatprep.subr.mxu0 0.0
    %2875 = vmatpush1.msra.mxu0 0.0
    %2876 = vmatprep.subr.mxu0 0.0
    %2877 = vmatpush1.msra.mxu0 0.0
    %2878 = vmatprep.subr.mxu0 0.0
    %2879 = vmatpush1.msra.mxu0 0.0
    %2880 = vmatprep.subr.mxu0 0.0
    %2881 = vmatpush1.msra.mxu0 0.0
    %2882 = vmatprep.subr.mxu0 0.0
    %2883 = vmatpush1.msra.mxu0 0.0
    %2884 = vmatprep.subr.mxu0 0.0
    %2885 = vmatpush1.msra.mxu0 0.0
    %2886 = vmatprep.subr.mxu0 0.0
    %2887 = vmatpush1.msra.mxu0 0.0
    %2888 = vmatprep.subr.mxu0 0.0
    %2889 = vmatpush1.msra.mxu0 0.0
    %2890 = vmatprep.subr.mxu0 0.0
    %2891 = vmatpush1.msra.mxu0 0.0
    %2892 = vmatprep.subr.mxu0 0.0
    %2893 = vmatpush1.msra.mxu0 0.0
    %2894 = vmatprep.subr.mxu0 0.0
    %2895 = vmatpush1.msra.mxu0 0.0
    %2896 = vmatprep.subr.mxu0 0.0
    %2897 = vmatpush1.msra.mxu0 0.0
    %2898 = vmatprep.mubr.f32.mxu0 0.0
    %2899 = vmatmul.mubr.f32.gmra.mrb[0].mxu0 %v2832
    %v2900 = vpop.f32.mrb[0].mxu0
    %v2901 = vadd.f32 0.0, %v2900
    %v2902 = vpop.f32.mrb[0].mxu0
    %2903 = vdwg.mxu0
    %2905 = vrot.lane.b32.xlu0 %v2062, 64
    %v2906 = vpop.permute.xlu0 %2905
    %v2909 = vsel %vm813, %v2744, 0
    %2911 = vmatprep.subr.mxu0 0.0
    %2912 = vmatpush1.msra.mxu0 %v2906
    %2913 = vmatprep.subr.mxu0 0.0
    %2914 = vmatpush1.msra.mxu0 0.0
    %2915 = vmatprep.subr.mxu0 0.0
    %2916 = vmatpush1.msra.mxu0 0.0
    %2917 = vmatprep.subr.mxu0 0.0
    %2918 = vmatpush1.msra.mxu0 0.0
    %2919 = vmatprep.subr.mxu0 0.0
    %2920 = vmatpush1.msra.mxu0 0.0
    %2921 = vmatprep.subr.mxu0 0.0
    %2922 = vmatpush1.msra.mxu0 0.0
    %2923 = vmatprep.subr.mxu0 0.0
    %2924 = vmatpush1.msra.mxu0 0.0
    %2925 = vmatprep.subr.mxu0 0.0
    %2926 = vmatpush1.msra.mxu0 0.0
    %2927 = vmatprep.subr.mxu0 0.0
    %2928 = vmatpush1.msra.mxu0 0.0
    %2929 = vmatprep.subr.mxu0 0.0
    %2930 = vmatpush1.msra.mxu0 0.0
    %2931 = vmatprep.subr.mxu0 0.0
    %2932 = vmatpush1.msra.mxu0 0.0
    %2933 = vmatprep.subr.mxu0 0.0
    %2934 = vmatpush1.msra.mxu0 0.0
    %2935 = vmatprep.subr.mxu0 0.0
    %2936 = vmatpush1.msra.mxu0 0.0
    %2937 = vmatprep.subr.mxu0 0.0
    %2938 = vmatpush1.msra.mxu0 0.0
    %2939 = vmatprep.subr.mxu0 0.0
    %2940 = vmatpush1.msra.mxu0 0.0
    %2941 = vmatprep.subr.mxu0 0.0
    %2942 = vmatpush1.msra.mxu0 0.0
    %2943 = vmatprep.subr.mxu0 0.0
    %2944 = vmatpush1.msra.mxu0 0.0
    %2945 = vmatprep.subr.mxu0 0.0
    %2946 = vmatpush1.msra.mxu0 0.0
    %2947 = vmatprep.subr.mxu0 0.0
    %2948 = vmatpush1.msra.mxu0 0.0
    %2949 = vmatprep.subr.mxu0 0.0
    %2950 = vmatpush1.msra.mxu0 0.0
    %2951 = vmatprep.subr.mxu0 0.0
    %2952 = vmatpush1.msra.mxu0 0.0
    %2953 = vmatprep.subr.mxu0 0.0
    %2954 = vmatpush1.msra.mxu0 0.0
    %2955 = vmatprep.subr.mxu0 0.0
    %2956 = vmatpush1.msra.mxu0 0.0
    %2957 = vmatprep.subr.mxu0 0.0
    %2958 = vmatpush1.msra.mxu0 0.0
    %2959 = vmatprep.subr.mxu0 0.0
    %2960 = vmatpush1.msra.mxu0 0.0
    %2961 = vmatprep.subr.mxu0 0.0
    %2962 = vmatpush1.msra.mxu0 0.0
    %2963 = vmatprep.subr.mxu0 0.0
    %2964 = vmatpush1.msra.mxu0 0.0
    %2965 = vmatprep.subr.mxu0 0.0
    %2966 = vmatpush1.msra.mxu0 0.0
    %2967 = vmatprep.subr.mxu0 0.0
    %2968 = vmatpush1.msra.mxu0 0.0
    %2969 = vmatprep.subr.mxu0 0.0
    %2970 = vmatpush1.msra.mxu0 0.0
    %2971 = vmatprep.subr.mxu0 0.0
    %2972 = vmatpush1.msra.mxu0 0.0
    %2973 = vmatprep.subr.mxu0 0.0
    %2974 = vmatpush1.msra.mxu0 0.0
    %2975 = vmatprep.mubr.f32.mxu0 0.0
    %2976 = vmatmul.mubr.f32.gmra.mrb[0].mxu0 %v2909
    %v2977 = vpop.f32.mrb[0].mxu0
    %v2978 = vadd.f32 0.0, %v2977
    %v2979 = vpop.f32.mrb[0].mxu0
    %2980 = vdwg.mxu0
    %2982 = vrot.lane.b32.xlu0 %v2063, 64
    %v2983 = vpop.permute.xlu0 %2982
    %v2986 = vsel %vm813, %v2745, 0
    %2988 = vmatprep.subr.mxu0 0.0
    %2989 = vmatpush1.msra.mxu0 %v2983
    %2990 = vmatprep.subr.mxu0 0.0
    %2991 = vmatpush1.msra.mxu0 0.0
    %2992 = vmatprep.subr.mxu0 0.0
    %2993 = vmatpush1.msra.mxu0 0.0
    %2994 = vmatprep.subr.mxu0 0.0
    %2995 = vmatpush1.msra.mxu0 0.0
    %2996 = vmatprep.subr.mxu0 0.0
    %2997 = vmatpush1.msra.mxu0 0.0
    %2998 = vmatprep.subr.mxu0 0.0
    %2999 = vmatpush1.msra.mxu0 0.0
    %3000 = vmatprep.subr.mxu0 0.0
    %3001 = vmatpush1.msra.mxu0 0.0
    %3002 = vmatprep.subr.mxu0 0.0
    %3003 = vmatpush1.msra.mxu0 0.0
    %3004 = vmatprep.subr.mxu0 0.0
    %3005 = vmatpush1.msra.mxu0 0.0
    %3006 = vmatprep.subr.mxu0 0.0
    %3007 = vmatpush1.msra.mxu0 0.0
    %3008 = vmatprep.subr.mxu0 0.0
    %3009 = vmatpush1.msra.mxu0 0.0
    %3010 = vmatprep.subr.mxu0 0.0
    %3011 = vmatpush1.msra.mxu0 0.0
    %3012 = vmatprep.subr.mxu0 0.0
    %3013 = vmatpush1.msra.mxu0 0.0
    %3014 = vmatprep.subr.mxu0 0.0
    %3015 = vmatpush1.msra.mxu0 0.0
    %3016 = vmatprep.subr.mxu0 0.0
    %3017 = vmatpush1.msra.mxu0 0.0
    %3018 = vmatprep.subr.mxu0 0.0
    %3019 = vmatpush1.msra.mxu0 0.0
    %3020 = vmatprep.subr.mxu0 0.0
    %3021 = vmatpush1.msra.mxu0 0.0
    %3022 = vmatprep.subr.mxu0 0.0
    %3023 = vmatpush1.msra.mxu0 0.0
    %3024 = vmatprep.subr.mxu0 0.0
    %3025 = vmatpush1.msra.mxu0 0.0
    %3026 = vmatprep.subr.mxu0 0.0
    %3027 = vmatpush1.msra.mxu0 0.0
    %3028 = vmatprep.subr.mxu0 0.0
    %3029 = vmatpush1.msra.mxu0 0.0
    %3030 = vmatprep.subr.mxu0 0.0
    %3031 = vmatpush1.msra.mxu0 0.0
    %3032 = vmatprep.subr.mxu0 0.0
    %3033 = vmatpush1.msra.mxu0 0.0
    %3034 = vmatprep.subr.mxu0 0.0
    %3035 = vmatpush1.msra.mxu0 0.0
    %3036 = vmatprep.subr.mxu0 0.0
    %3037 = vmatpush1.msra.mxu0 0.0
    %3038 = vmatprep.subr.mxu0 0.0
    %3039 = vmatpush1.msra.mxu0 0.0
    %3040 = vmatprep.subr.mxu0 0.0
    %3041 = vmatpush1.msra.mxu0 0.0
    %3042 = vmatprep.subr.mxu0 0.0
    %3043 = vmatpush1.msra.mxu0 0.0
    %3044 = vmatprep.subr.mxu0 0.0
    %3045 = vmatpush1.msra.mxu0 0.0
    %3046 = vmatprep.subr.mxu0 0.0
    %3047 = vmatpush1.msra.mxu0 0.0
    %3048 = vmatprep.subr.mxu0 0.0
    %3049 = vmatpush1.msra.mxu0 0.0
    %3050 = vmatprep.subr.mxu0 0.0
    %3051 = vmatpush1.msra.mxu0 0.0
    %3052 = vmatprep.mubr.f32.mxu0 0.0
    %3053 = vmatmul.mubr.f32.gmra.mrb[0].mxu0 %v2986
    %v3054 = vpop.f32.mrb[0].mxu0
    %v3055 = vadd.f32 0.0, %v3054
    %v3056 = vpop.f32.mrb[0].mxu0
    %3057 = vdwg.mxu0
    %3059 = vrot.lane.b32.xlu0 %v2064, 64
    %v3060 = vpop.permute.xlu0 %3059
    %v3063 = vsel %vm813, %v2746, 0
    %3065 = vmatprep.subr.mxu0 0.0
    %3066 = vmatpush1.msra.mxu0 %v3060
    %3067 = vmatprep.subr.mxu0 0.0
    %3068 = vmatpush1.msra.mxu0 0.0
    %3069 = vmatprep.subr.mxu0 0.0
    %3070 = vmatpush1.msra.mxu0 0.0
    %3071 = vmatprep.subr.mxu0 0.0
    %3072 = vmatpush1.msra.mxu0 0.0
    %3073 = vmatprep.subr.mxu0 0.0
    %3074 = vmatpush1.msra.mxu0 0.0
    %3075 = vmatprep.subr.mxu0 0.0
    %3076 = vmatpush1.msra.mxu0 0.0
    %3077 = vmatprep.subr.mxu0 0.0
    %3078 = vmatpush1.msra.mxu0 0.0
    %3079 = vmatprep.subr.mxu0 0.0
    %3080 = vmatpush1.msra.mxu0 0.0
    %3081 = vmatprep.subr.mxu0 0.0
    %3082 = vmatpush1.msra.mxu0 0.0
    %3083 = vmatprep.subr.mxu0 0.0
    %3084 = vmatpush1.msra.mxu0 0.0
    %3085 = vmatprep.subr.mxu0 0.0
    %3086 = vmatpush1.msra.mxu0 0.0
    %3087 = vmatprep.subr.mxu0 0.0
    %3088 = vmatpush1.msra.mxu0 0.0
    %3089 = vmatprep.subr.mxu0 0.0
    %3090 = vmatpush1.msra.mxu0 0.0
    %3091 = vmatprep.subr.mxu0 0.0
    %3092 = vmatpush1.msra.mxu0 0.0
    %3093 = vmatprep.subr.mxu0 0.0
    %3094 = vmatpush1.msra.mxu0 0.0
    %3095 = vmatprep.subr.mxu0 0.0
    %3096 = vmatpush1.msra.mxu0 0.0
    %3097 = vmatprep.subr.mxu0 0.0
    %3098 = vmatpush1.msra.mxu0 0.0
    %3099 = vmatprep.subr.mxu0 0.0
    %3100 = vmatpush1.msra.mxu0 0.0
    %3101 = vmatprep.subr.mxu0 0.0
    %3102 = vmatpush1.msra.mxu0 0.0
    %3103 = vmatprep.subr.mxu0 0.0
    %3104 = vmatpush1.msra.mxu0 0.0
    %3105 = vmatprep.subr.mxu0 0.0
    %3106 = vmatpush1.msra.mxu0 0.0
    %3107 = vmatprep.subr.mxu0 0.0
    %3108 = vmatpush1.msra.mxu0 0.0
    %3109 = vmatprep.subr.mxu0 0.0
    %3110 = vmatpush1.msra.mxu0 0.0
    %3111 = vmatprep.subr.mxu0 0.0
    %3112 = vmatpush1.msra.mxu0 0.0
    %3113 = vmatprep.subr.mxu0 0.0
    %3114 = vmatpush1.msra.mxu0 0.0
    %3115 = vmatprep.subr.mxu0 0.0
    %3116 = vmatpush1.msra.mxu0 0.0
    %3117 = vmatprep.subr.mxu0 0.0
    %3118 = vmatpush1.msra.mxu0 0.0
    %3119 = vmatprep.subr.mxu0 0.0
    %3120 = vmatpush1.msra.mxu0 0.0
    %3121 = vmatprep.subr.mxu0 0.0
    %3122 = vmatpush1.msra.mxu0 0.0
    %3123 = vmatprep.subr.mxu0 0.0
    %3124 = vmatpush1.msra.mxu0 0.0
    %3125 = vmatprep.subr.mxu0 0.0
    %3126 = vmatpush1.msra.mxu0 0.0
    %3127 = vmatprep.subr.mxu0 0.0
    %3128 = vmatpush1.msra.mxu0 0.0
    %3129 = vmatprep.mubr.f32.mxu0 0.0
    %3130 = vmatmul.mubr.f32.gmra.mrb[0].mxu0 %v3063
    %v3131 = vpop.f32.mrb[0].mxu0
    %v3132 = vadd.f32 0.0, %v3131
    %v3133 = vpop.f32.mrb[0].mxu0
    %3134 = vdwg.mxu0
    %3136 = vrot.lane.b32.xlu0 %v2065, 64
    %v3137 = vpop.permute.xlu0 %3136
    %v3140 = vsel %vm813, %v2747, 0
    %3142 = vmatprep.subr.mxu0 0.0
    %3143 = vmatpush1.msra.mxu0 %v3137
    %3144 = vmatprep.subr.mxu0 0.0
    %3145 = vmatpush1.msra.mxu0 0.0
    %3146 = vmatprep.subr.mxu0 0.0
    %3147 = vmatpush1.msra.mxu0 0.0
    %3148 = vmatprep.subr.mxu0 0.0
    %3149 = vmatpush1.msra.mxu0 0.0
    %3150 = vmatprep.subr.mxu0 0.0
    %3151 = vmatpush1.msra.mxu0 0.0
    %3152 = vmatprep.subr.mxu0 0.0
    %3153 = vmatpush1.msra.mxu0 0.0
    %3154 = vmatprep.subr.mxu0 0.0
    %3155 = vmatpush1.msra.mxu0 0.0
    %3156 = vmatprep.subr.mxu0 0.0
    %3157 = vmatpush1.msra.mxu0 0.0
    %3158 = vmatprep.subr.mxu0 0.0
    %3159 = vmatpush1.msra.mxu0 0.0
    %3160 = vmatprep.subr.mxu0 0.0
    %3161 = vmatpush1.msra.mxu0 0.0
    %3162 = vmatprep.subr.mxu0 0.0
    %3163 = vmatpush1.msra.mxu0 0.0
    %3164 = vmatprep.subr.mxu0 0.0
    %3165 = vmatpush1.msra.mxu0 0.0
    %3166 = vmatprep.subr.mxu0 0.0
    %3167 = vmatpush1.msra.mxu0 0.0
    %3168 = vmatprep.subr.mxu0 0.0
    %3169 = vmatpush1.msra.mxu0 0.0
    %3170 = vmatprep.subr.mxu0 0.0
    %3171 = vmatpush1.msra.mxu0 0.0
    %3172 = vmatprep.subr.mxu0 0.0
    %3173 = vmatpush1.msra.mxu0 0.0
    %3174 = vmatprep.subr.mxu0 0.0
    %3175 = vmatpush1.msra.mxu0 0.0
    %3176 = vmatprep.subr.mxu0 0.0
    %3177 = vmatpush1.msra.mxu0 0.0
    %3178 = vmatprep.subr.mxu0 0.0
    %3179 = vmatpush1.msra.mxu0 0.0
    %3180 = vmatprep.subr.mxu0 0.0
    %3181 = vmatpush1.msra.mxu0 0.0
    %3182 = vmatprep.subr.mxu0 0.0
    %3183 = vmatpush1.msra.mxu0 0.0
    %3184 = vmatprep.subr.mxu0 0.0
    %3185 = vmatpush1.msra.mxu0 0.0
    %3186 = vmatprep.subr.mxu0 0.0
    %3187 = vmatpush1.msra.mxu0 0.0
    %3188 = vmatprep.subr.mxu0 0.0
    %3189 = vmatpush1.msra.mxu0 0.0
    %3190 = vmatprep.subr.mxu0 0.0
    %3191 = vmatpush1.msra.mxu0 0.0
    %3192 = vmatprep.subr.mxu0 0.0
    %3193 = vmatpush1.msra.mxu0 0.0
    %3194 = vmatprep.subr.mxu0 0.0
    %3195 = vmatpush1.msra.mxu0 0.0
    %3196 = vmatprep.subr.mxu0 0.0
    %3197 = vmatpush1.msra.mxu0 0.0
    %3198 = vmatprep.subr.mxu0 0.0
    %3199 = vmatpush1.msra.mxu0 0.0
    %3200 = vmatprep.subr.mxu0 0.0
    %3201 = vmatpush1.msra.mxu0 0.0
    %3202 = vmatprep.subr.mxu0 0.0
    %3203 = vmatpush1.msra.mxu0 0.0
    %3204 = vmatprep.subr.mxu0 0.0
    %3205 = vmatpush1.msra.mxu0 0.0
    %3206 = vmatprep.mubr.f32.mxu0 0.0
    %3207 = vmatmul.mubr.f32.gmra.mrb[0].mxu0 %v3140
    %v3208 = vpop.f32.mrb[0].mxu0
    %v3209 = vadd.f32 0.0, %v3208
    %v3210 = vpop.f32.mrb[0].mxu0
    %3211 = vdwg.mxu0
    %3213 = vrot.lane.b32.xlu0 %v2066, 64
    %v3214 = vpop.permute.xlu0 %3213
    %v3217 = vsel %vm813, %v2748, 0
    %3219 = vmatprep.subr.mxu0 0.0
    %3220 = vmatpush1.msra.mxu0 %v3214
    %3221 = vmatprep.subr.mxu0 0.0
    %3222 = vmatpush1.msra.mxu0 0.0
    %3223 = vmatprep.subr.mxu0 0.0
    %3224 = vmatpush1.msra.mxu0 0.0
    %3225 = vmatprep.subr.mxu0 0.0
    %3226 = vmatpush1.msra.mxu0 0.0
    %3227 = vmatprep.subr.mxu0 0.0
    %3228 = vmatpush1.msra.mxu0 0.0
    %3229 = vmatprep.subr.mxu0 0.0
    %3230 = vmatpush1.msra.mxu0 0.0
    %3231 = vmatprep.subr.mxu0 0.0
    %3232 = vmatpush1.msra.mxu0 0.0
    %3233 = vmatprep.subr.mxu0 0.0
    %3234 = vmatpush1.msra.mxu0 0.0
    %3235 = vmatprep.subr.mxu0 0.0
    %3236 = vmatpush1.msra.mxu0 0.0
    %3237 = vmatprep.subr.mxu0 0.0
    %3238 = vmatpush1.msra.mxu0 0.0
    %3239 = vmatprep.subr.mxu0 0.0
    %3240 = vmatpush1.msra.mxu0 0.0
    %3241 = vmatprep.subr.mxu0 0.0
    %3242 = vmatpush1.msra.mxu0 0.0
    %3243 = vmatprep.subr.mxu0 0.0
    %3244 = vmatpush1.msra.mxu0 0.0
    %3245 = vmatprep.subr.mxu0 0.0
    %3246 = vmatpush1.msra.mxu0 0.0
    %3247 = vmatprep.subr.mxu0 0.0
    %3248 = vmatpush1.msra.mxu0 0.0
    %3249 = vmatprep.subr.mxu0 0.0
    %3250 = vmatpush1.msra.mxu0 0.0
    %3251 = vmatprep.subr.mxu0 0.0
    %3252 = vmatpush1.msra.mxu0 0.0
    %3253 = vmatprep.subr.mxu0 0.0
    %3254 = vmatpush1.msra.mxu0 0.0
    %3255 = vmatprep.subr.mxu0 0.0
    %3256 = vmatpush1.msra.mxu0 0.0
    %3257 = vmatprep.subr.mxu0 0.0
    %3258 = vmatpush1.msra.mxu0 0.0
    %3259 = vmatprep.subr.mxu0 0.0
    %3260 = vmatpush1.msra.mxu0 0.0
    %3261 = vmatprep.subr.mxu0 0.0
    %3262 = vmatpush1.msra.mxu0 0.0
    %3263 = vmatprep.subr.mxu0 0.0
    %3264 = vmatpush1.msra.mxu0 0.0
    %3265 = vmatprep.subr.mxu0 0.0
    %3266 = vmatpush1.msra.mxu0 0.0
    %3267 = vmatprep.subr.mxu0 0.0
    %3268 = vmatpush1.msra.mxu0 0.0
    %3269 = vmatprep.subr.mxu0 0.0
    %3270 = vmatpush1.msra.mxu0 0.0
    %3271 = vmatprep.subr.mxu0 0.0
    %3272 = vmatpush1.msra.mxu0 0.0
    %3273 = vmatprep.subr.mxu0 0.0
    %3274 = vmatpush1.msra.mxu0 0.0
    %3275 = vmatprep.subr.mxu0 0.0
    %3276 = vmatpush1.msra.mxu0 0.0
    %3277 = vmatprep.subr.mxu0 0.0
    %3278 = vmatpush1.msra.mxu0 0.0
    %3279 = vmatprep.subr.mxu0 0.0
    %3280 = vmatpush1.msra.mxu0 0.0
    %3281 = vmatprep.subr.mxu0 0.0
    %3282 = vmatpush1.msra.mxu0 0.0
    %3283 = vmatprep.mubr.f32.mxu0 0.0
    %3284 = vmatmul.mubr.f32.gmra.mrb[0].mxu0 %v3217
    %v3285 = vpop.f32.mrb[0].mxu0
    %v3286 = vadd.f32 0.0, %v3285
    %v3287 = vpop.f32.mrb[0].mxu0
    %3288 = vdwg.mxu0
    %3290 = vrot.lane.b32.xlu0 %v2067, 64
    %v3291 = vpop.permute.xlu0 %3290
    %v3294 = vsel %vm813, %v2749, 0
    %3296 = vmatprep.subr.mxu0 0.0
    %3297 = vmatpush1.msra.mxu0 %v3291
    %3298 = vmatprep.subr.mxu0 0.0
    %3299 = vmatpush1.msra.mxu0 0.0
    %3300 = vmatprep.subr.mxu0 0.0
    %3301 = vmatpush1.msra.mxu0 0.0
    %3302 = vmatprep.subr.mxu0 0.0
    %3303 = vmatpush1.msra.mxu0 0.0
    %3304 = vmatprep.subr.mxu0 0.0
    %3305 = vmatpush1.msra.mxu0 0.0
    %3306 = vmatprep.subr.mxu0 0.0
    %3307 = vmatpush1.msra.mxu0 0.0
    %3308 = vmatprep.subr.mxu0 0.0
    %3309 = vmatpush1.msra.mxu0 0.0
    %3310 = vmatprep.subr.mxu0 0.0
    %3311 = vmatpush1.msra.mxu0 0.0
    %3312 = vmatprep.subr.mxu0 0.0
    %3313 = vmatpush1.msra.mxu0 0.0
    %3314 = vmatprep.subr.mxu0 0.0
    %3315 = vmatpush1.msra.mxu0 0.0
    %3316 = vmatprep.subr.mxu0 0.0
    %3317 = vmatpush1.msra.mxu0 0.0
    %3318 = vmatprep.subr.mxu0 0.0
    %3319 = vmatpush1.msra.mxu0 0.0
    %3320 = vmatprep.subr.mxu0 0.0
    %3321 = vmatpush1.msra.mxu0 0.0
    %3322 = vmatprep.subr.mxu0 0.0
    %3323 = vmatpush1.msra.mxu0 0.0
    %3324 = vmatprep.subr.mxu0 0.0
    %3325 = vmatpush1.msra.mxu0 0.0
    %3326 = vmatprep.subr.mxu0 0.0
    %3327 = vmatpush1.msra.mxu0 0.0
    %3328 = vmatprep.subr.mxu0 0.0
    %3329 = vmatpush1.msra.mxu0 0.0
    %3330 = vmatprep.subr.mxu0 0.0
    %3331 = vmatpush1.msra.mxu0 0.0
    %3332 = vmatprep.subr.mxu0 0.0
    %3333 = vmatpush1.msra.mxu0 0.0
    %3334 = vmatprep.subr.mxu0 0.0
    %3335 = vmatpush1.msra.mxu0 0.0
    %3336 = vmatprep.subr.mxu0 0.0
    %3337 = vmatpush1.msra.mxu0 0.0
    %3338 = vmatprep.subr.mxu0 0.0
    %3339 = vmatpush1.msra.mxu0 0.0
    %3340 = vmatprep.subr.mxu0 0.0
    %3341 = vmatpush1.msra.mxu0 0.0
    %3342 = vmatprep.subr.mxu0 0.0
    %3343 = vmatpush1.msra.mxu0 0.0
    %3344 = vmatprep.subr.mxu0 0.0
    %3345 = vmatpush1.msra.mxu0 0.0
    %3346 = vmatprep.subr.mxu0 0.0
    %3347 = vmatpush1.msra.mxu0 0.0
    %3348 = vmatprep.subr.mxu0 0.0
    %3349 = vmatpush1.msra.mxu0 0.0
    %3350 = vmatprep.subr.mxu0 0.0
    %3351 = vmatpush1.msra.mxu0 0.0
    %3352 = vmatprep.subr.mxu0 0.0
    %3353 = vmatpush1.msra.mxu0 0.0
    %3354 = vmatprep.subr.mxu0 0.0
    %3355 = vmatpush1.msra.mxu0 0.0
    %3356 = vmatprep.subr.mxu0 0.0
    %3357 = vmatpush1.msra.mxu0 0.0
    %3358 = vmatprep.subr.mxu0 0.0
    %3359 = vmatpush1.msra.mxu0 0.0
    %3360 = vmatprep.mubr.f32.mxu0 0.0
    %3361 = vmatmul.mubr.f32.gmra.mrb[0].mxu0 %v3294
    %v3362 = vpop.f32.mrb[0].mxu0
    %v3363 = vadd.f32 0.0, %v3362
    %v3364 = vpop.f32.mrb[0].mxu0
    %3365 = vdwg.mxu0
    %v3366 = vsel %vm65, %v2824, 0.0
    %v3367 = vsel %vm65, %v2901, 0.0
    %v3368 = vadd.f32 %v3366, %v3367
    %v3369 = vsel %vm65, %v2978, 0.0
    %v3370 = vadd.f32 %v3368, %v3369
    %v3371 = vsel %vm65, %v3055, 0.0
    %v3372 = vadd.f32 %v3370, %v3371
    %v3373 = vsel %vm65, %v3132, 0.0
    %v3374 = vsel %vm65, %v3209, 0.0
    %v3375 = vadd.f32 %v3373, %v3374
    %v3376 = vsel %vm65, %v3286, 0.0
    %v3377 = vadd.f32 %v3375, %v3376
    %v3378 = vsel %vm65, %v3363, 0.0
    %v3379 = vadd.f32 %v3377, %v3378
    %3384 = vrot.lane.b32.xlu0 %v1941, 32
    %v3385 = vpop.permute.xlu0 %3384
    %3386 = vrot.lane.b32.xlu0 %v1942, 32
    %v3387 = vpop.permute.xlu0 %3386
    %3388 = vrot.lane.b32.xlu0 %v1943, 32
    %v3389 = vpop.permute.xlu0 %3388
    %3390 = vrot.lane.b32.xlu0 %v1944, 32
    %v3391 = vpop.permute.xlu0 %3390
    %3396 = vrot.lane.b32.xlu0 %v1969, 32
    %v3397 = vpop.permute.xlu0 %3396
    %v3400 = vsel %vm65, %v3372, 0
    %v3403 = vsel %vm65, %v3379, 0
    %3405 = vmatprep.subr.mxu0 0.0
    %3406 = vmatpush1.msra.mxu0 %v3385
    %3407 = vmatprep.subr.mxu0 0.0
    %3408 = vmatpush1.msra.mxu0 %v3387
    %3409 = vmatprep.subr.mxu0 0.0
    %3410 = vmatpush1.msra.mxu0 %v3389
    %3411 = vmatprep.subr.mxu0 0.0
    %3412 = vmatpush1.msra.mxu0 %v3391
    %3413 = vmatprep.subr.mxu0 0.0
    %3414 = vmatpush1.msra.mxu0 0.0
    %3415 = vmatprep.subr.mxu0 0.0
    %3416 = vmatpush1.msra.mxu0 0.0
    %3417 = vmatprep.subr.mxu0 0.0
    %3418 = vmatpush1.msra.mxu0 0.0
    %3419 = vmatprep.subr.mxu0 0.0
    %3420 = vmatpush1.msra.mxu0 0.0
    %3421 = vmatprep.subr.mxu0 0.0
    %3422 = vmatpush1.msra.mxu0 0.0
    %3423 = vmatprep.subr.mxu0 0.0
    %3424 = vmatpush1.msra.mxu0 0.0
    %3425 = vmatprep.subr.mxu0 0.0
    %3426 = vmatpush1.msra.mxu0 0.0
    %3427 = vmatprep.subr.mxu0 0.0
    %3428 = vmatpush1.msra.mxu0 0.0
    %3429 = vmatprep.subr.mxu0 0.0
    %3430 = vmatpush1.msra.mxu0 0.0
    %3431 = vmatprep.subr.mxu0 0.0
    %3432 = vmatpush1.msra.mxu0 0.0
    %3433 = vmatprep.subr.mxu0 0.0
    %3434 = vmatpush1.msra.mxu0 0.0
    %3435 = vmatprep.subr.mxu0 0.0
    %3436 = vmatpush1.msra.mxu0 0.0
    %3437 = vmatprep.subr.mxu0 0.0
    %3438 = vmatpush1.msra.mxu0 0.0
    %3439 = vmatprep.subr.mxu0 0.0
    %3440 = vmatpush1.msra.mxu0 0.0
    %3441 = vmatprep.subr.mxu0 0.0
    %3442 = vmatpush1.msra.mxu0 0.0
    %3443 = vmatprep.subr.mxu0 0.0
    %3444 = vmatpush1.msra.mxu0 0.0
    %3445 = vmatprep.subr.mxu0 0.0
    %3446 = vmatpush1.msra.mxu0 0.0
    %3447 = vmatprep.subr.mxu0 0.0
    %3448 = vmatpush1.msra.mxu0 0.0
    %3449 = vmatprep.subr.mxu0 0.0
    %3450 = vmatpush1.msra.mxu0 0.0
    %3451 = vmatprep.subr.mxu0 0.0
    %3452 = vmatpush1.msra.mxu0 0.0
    %3453 = vmatprep.subr.mxu0 0.0
    %3454 = vmatpush1.msra.mxu0 0.0
    %3455 = vmatprep.subr.mxu0 0.0
    %3456 = vmatpush1.msra.mxu0 0.0
    %3457 = vmatprep.subr.mxu0 0.0
    %3458 = vmatpush1.msra.mxu0 0.0
    %3459 = vmatprep.subr.mxu0 0.0
    %3460 = vmatpush1.msra.mxu0 0.0
    %3461 = vmatprep.subr.mxu0 0.0
    %3462 = vmatpush1.msra.mxu0 0.0
    %3463 = vmatprep.subr.mxu0 0.0
    %3464 = vmatpush1.msra.mxu0 0.0
    %3465 = vmatprep.subr.mxu0 0.0
    %3466 = vmatpush1.msra.mxu0 0.0
    %3467 = vmatprep.subr.mxu0 0.0
    %3468 = vmatpush1.msra.mxu0 0.0
    %3469 = vmatprep.mubr.f32.mxu0 0.0
    %3470 = vmatmul.mubr.f32.gmra.mrb[0].mxu0 %v3400
    %v3471 = vpop.f32.mrb[0].mxu0
    %v3472 = vadd.f32 %v3397, %v3471
    %v3473 = vpop.f32.mrb[0].mxu0
    %3474 = vmatprep.mubr.f32.mxu0 0.0
    %3475 = vmatmul.mubr.f32.gmra.mrb[0].mxu0 %v3403
    %v3476 = vpop.f32.mrb[0].mxu0
    %v3477 = vadd.f32 %v3397, %v3476
    %v3478 = vpop.f32.mrb[0].mxu0
    %3479 = vdwg.mxu0
    %v3480 = vadd.f32 %v3472, %v1938
    %v3481 = vadd.f32 %v3477, %v1939
    %v3482 = vsel %vm65, %v3480, 0.0
    %3483 = vadd.xlane.f32.xlu0 %v3482
    %v3484 = vpop.xlane.xlu0 %3483
    %v3485 = vsel %vm65, %v3481, 0.0
    %3486 = vadd.xlane.f32.xlu0 %v3485
    %v3487 = vpop.xlane.xlu0 %3486
    %v3488 = vmul.f32 %v3484, %v1640
    %v3489 = vmul.f32 %v3487, %v1640
    %v3490 = vsub.f32 %v3480, %v3488
    %v3491 = vsub.f32 %v3481, %v3489
    %v3492 = vmul.f32 %v3490, %v3490
    %v3493 = vmul.f32 %v3491, %v3491
    %v3494 = vsel %vm65, %v3492, 0.0
    %3495 = vadd.xlane.f32.xlu0 %v3494
    %v3496 = vpop.xlane.xlu0 %3495
    %v3497 = vsel %vm65, %v3493, 0.0
    %3498 = vadd.xlane.f32.xlu0 %v3497
    %v3499 = vpop.xlane.xlu0 %3498
    %v3500 = vmul.f32 %v3496, %v1640
    %v3501 = vmul.f32 %v3499, %v1640
    %v3502 = vadd.f32 %v3500, 1e-12
    %v3503 = vadd.f32 %v3501, 1e-12
    %v3504 = vrsqrt.pop %v3502
    %v3505 = vrsqrt.pop %v3503
    %v3506 = vmul.f32 %v3490, %v3504
    %v3507 = vmul.f32 %v3491, %v3505
    %v3508 = vlaneseq
    %v3509 = vshrl.u32 %v3508, 7
    %v3510 = vsub.s32 1, %v3509
    %v3511 = vrot.slane %v1964, %v3510
    %v3512 = vmul.f32 %v3506, %v3511
    %v3513 = vmul.f32 %v3507, %v3511
    %v3514 = vlaneseq
    %v3515 = vshrl.u32 %v3514, 7
    %v3516 = vsub.s32 2, %v3515
    %v3517 = vrot.slane %v1964, %v3516
    %v3518 = vadd.f32 %v3512, %v3517
    %v3519 = vadd.f32 %v3513, %v3517
    %v3521 = vlaneseq
    %v3522 = vshrl.u32 %v3521, 7
    %v3523 = vsub.s32 0, %v3522
    %v3524 = vrot.slane %v1953, %v3523
    %v3527 = vsel %vm65, %v3518, 0
    %v3530 = vsel %vm65, %v3519, 0
    %3532 = vmatprep.subr.mxu0 0.0
    %3533 = vmatpush1.msra.mxu0 %v1948
    %3534 = vmatprep.subr.mxu0 0.0
    %3535 = vmatpush1.msra.mxu0 %v1949
    %3536 = vmatprep.subr.mxu0 0.0
    %3537 = vmatpush1.msra.mxu0 %v1950
    %3538 = vmatprep.subr.mxu0 0.0
    %3539 = vmatpush1.msra.mxu0 %v1951
    %3540 = vmatprep.subr.mxu0 0.0
    %3541 = vmatpush1.msra.mxu0 0.0
    %3542 = vmatprep.subr.mxu0 0.0
    %3543 = vmatpush1.msra.mxu0 0.0
    %3544 = vmatprep.subr.mxu0 0.0
    %3545 = vmatpush1.msra.mxu0 0.0
    %3546 = vmatprep.subr.mxu0 0.0
    %3547 = vmatpush1.msra.mxu0 0.0
    %3548 = vmatprep.subr.mxu0 0.0
    %3549 = vmatpush1.msra.mxu0 0.0
    %3550 = vmatprep.subr.mxu0 0.0
    %3551 = vmatpush1.msra.mxu0 0.0
    %3552 = vmatprep.subr.mxu0 0.0
    %3553 = vmatpush1.msra.mxu0 0.0
    %3554 = vmatprep.subr.mxu0 0.0
    %3555 = vmatpush1.msra.mxu0 0.0
    %3556 = vmatprep.subr.mxu0 0.0
    %3557 = vmatpush1.msra.mxu0 0.0
    %3558 = vmatprep.subr.mxu0 0.0
    %3559 = vmatpush1.msra.mxu0 0.0
    %3560 = vmatprep.subr.mxu0 0.0
    %3561 = vmatpush1.msra.mxu0 0.0
    %3562 = vmatprep.subr.mxu0 0.0
    %3563 = vmatpush1.msra.mxu0 0.0
    %3564 = vmatprep.subr.mxu0 0.0
    %3565 = vmatpush1.msra.mxu0 0.0
    %3566 = vmatprep.subr.mxu0 0.0
    %3567 = vmatpush1.msra.mxu0 0.0
    %3568 = vmatprep.subr.mxu0 0.0
    %3569 = vmatpush1.msra.mxu0 0.0
    %3570 = vmatprep.subr.mxu0 0.0
    %3571 = vmatpush1.msra.mxu0 0.0
    %3572 = vmatprep.subr.mxu0 0.0
    %3573 = vmatpush1.msra.mxu0 0.0
    %3574 = vmatprep.subr.mxu0 0.0
    %3575 = vmatpush1.msra.mxu0 0.0
    %3576 = vmatprep.subr.mxu0 0.0
    %3577 = vmatpush1.msra.mxu0 0.0
    %3578 = vmatprep.subr.mxu0 0.0
    %3579 = vmatpush1.msra.mxu0 0.0
    %3580 = vmatprep.subr.mxu0 0.0
    %3581 = vmatpush1.msra.mxu0 0.0
    %3582 = vmatprep.subr.mxu0 0.0
    %3583 = vmatpush1.msra.mxu0 0.0
    %3584 = vmatprep.subr.mxu0 0.0
    %3585 = vmatpush1.msra.mxu0 0.0
    %3586 = vmatprep.subr.mxu0 0.0
    %3587 = vmatpush1.msra.mxu0 0.0
    %3588 = vmatprep.subr.mxu0 0.0
    %3589 = vmatpush1.msra.mxu0 0.0
    %3590 = vmatprep.subr.mxu0 0.0
    %3591 = vmatpush1.msra.mxu0 0.0
    %3592 = vmatprep.subr.mxu0 0.0
    %3593 = vmatpush1.msra.mxu0 0.0
    %3594 = vmatprep.subr.mxu0 0.0
    %3595 = vmatpush1.msra.mxu0 0.0
    %3596 = vmatprep.mubr.f32.mxu0 0.0
    %3597 = vmatmul.mubr.f32.gmra.mrb[0].mxu0 %v3527
    %v3598 = vpop.f32.mrb[0].mxu0
    %v3599 = vadd.f32 %v3524, %v3598
    %v3600 = vpop.f32.mrb[0].mxu0
    %3601 = vmatprep.mubr.f32.mxu0 0.0
    %3602 = vmatmul.mubr.f32.gmra.mrb[0].mxu0 %v3530
    %v3603 = vpop.f32.mrb[0].mxu0
    %v3604 = vadd.f32 %v3524, %v3603
    %v3605 = vpop.f32.mrb[0].mxu0
    %3606 = vdwg.mxu0
    %v3607 = vmul.f32 %v3599, 0.5
    %v3608 = vmul.f32 %v3604, 0.5
    %v3609 = vmul.f32 %v3599, 0.70710677
    %v3610 = vmul.f32 %v3604, 0.70710677
    %vm3611 = vcmp.ge.f32.partialorder %v3609, 0.0
    %vm3612 = vcmp.ge.f32.partialorder %v3610, 0.0
    %v3613 = vsel %vm3611, 1.0, -1.0
    %v3614 = vsel %vm3612, 1.0, -1.0
    %v3615 = vand.u32 2147483647, %v3609
    %v3616 = vand.u32 2147483647, %v3610
    %v3617 = vmul.f32 %v3615, 0.3275911
    %v3618 = vmul.f32 %v3616, 0.3275911
    %v3619 = vadd.f32 %v3617, 1.0
    %v3620 = vadd.f32 %v3618, 1.0
    %v3621 = vrcp.pop %v3619
    %v3622 = vmul.f32 1.0, %v3621
    %v3623 = vrcp.pop %v3620
    %v3624 = vmul.f32 1.0, %v3623
    %v3625 = vmul.f32 %v3622, 1.0614054
    %v3626 = vmul.f32 %v3624, 1.0614054
    %v3627 = vadd.f32 %v3625, -1.4531521
    %v3628 = vadd.f32 %v3626, -1.4531521
    %v3629 = vmul.f32 %v3627, %v3622
    %v3630 = vmul.f32 %v3628, %v3624
    %v3631 = vadd.f32 %v3629, 1.4214138
    %v3632 = vadd.f32 %v3630, 1.4214138
    %v3633 = vmul.f32 %v3631, %v3622
    %v3634 = vmul.f32 %v3632, %v3624
    %v3635 = vadd.f32 %v3633, -0.28449672
    %v3636 = vadd.f32 %v3634, -0.28449672
    %v3637 = vmul.f32 %v3635, %v3622
    %v3638 = vmul.f32 %v3636, %v3624
    %v3639 = vadd.f32 %v3637, 0.2548296
    %v3640 = vadd.f32 %v3638, 0.2548296
    %v3641 = vmul.f32 %v3639, %v3622
    %v3642 = vmul.f32 %v3640, %v3624
    %v3643 = vsub.f32 0.0, %v3615
    %v3644 = vsub.f32 0.0, %v3616
    %v3645 = vmul.f32 %v3643, %v3615
    %v3646 = vmul.f32 %v3644, %v3616
    %v3647 = vmul.f32 %v3645, 1.442695
    %v3648 = vpow.pop %v3647
    %v3649 = vmul.f32 %v3646, 1.442695
    %v3650 = vpow.pop %v3649
    %v3651 = vmul.f32 %v3641, %v3648
    %v3652 = vmul.f32 %v3642, %v3650
    %v3653 = vsub.f32 1.0, %v3651
    %v3654 = vsub.f32 1.0, %v3652
    %v3655 = vmul.f32 %v3613, %v3653
    %v3656 = vmul.f32 %v3614, %v3654
    %v3657 = vadd.f32 %v3655, 1.0
    %v3658 = vadd.f32 %v3656, 1.0
    %v3659 = vmul.f32 %v3607, %v3657
    %v3660 = vmul.f32 %v3608, %v3658
    %v3661 = vlaneseq
    %v3662 = vshrl.u32 %v3661, 7
    %v3663 = vsub.s32 0, %v3662
    %v3664 = vrot.slane %v1964, %v3663
    %v3666 = vsel %vm1818, %v3659, 0
    %v3669 = vsel %vm1818, %v3660, 0
    %3671 = vmatprep.subr.mxu0 0.0
    %3672 = vmatpush1.msra.mxu0 %v1955
    %3673 = vmatprep.subr.mxu0 0.0
    %3674 = vmatpush1.msra.mxu0 %v1956
    %3675 = vmatprep.subr.mxu0 0.0
    %3676 = vmatpush1.msra.mxu0 %v1957
    %3677 = vmatprep.subr.mxu0 0.0
    %3678 = vmatpush1.msra.mxu0 %v1958
    %3679 = vmatprep.subr.mxu0 0.0
    %3680 = vmatpush1.msra.mxu0 %v1959
    %3681 = vmatprep.subr.mxu0 0.0
    %3682 = vmatpush1.msra.mxu0 %v1960
    %3683 = vmatprep.subr.mxu0 0.0
    %3684 = vmatpush1.msra.mxu0 %v1961
    %3685 = vmatprep.subr.mxu0 0.0
    %3686 = vmatpush1.msra.mxu0 %v1962
    %3687 = vmatprep.subr.mxu0 0.0
    %3688 = vmatpush1.msra.mxu0 0.0
    %3689 = vmatprep.subr.mxu0 0.0
    %3690 = vmatpush1.msra.mxu0 0.0
    %3691 = vmatprep.subr.mxu0 0.0
    %3692 = vmatpush1.msra.mxu0 0.0
    %3693 = vmatprep.subr.mxu0 0.0
    %3694 = vmatpush1.msra.mxu0 0.0
    %3695 = vmatprep.subr.mxu0 0.0
    %3696 = vmatpush1.msra.mxu0 0.0
    %3697 = vmatprep.subr.mxu0 0.0
    %3698 = vmatpush1.msra.mxu0 0.0
    %3699 = vmatprep.subr.mxu0 0.0
    %3700 = vmatpush1.msra.mxu0 0.0
    %3701 = vmatprep.subr.mxu0 0.0
    %3702 = vmatpush1.msra.mxu0 0.0
    %3703 = vmatprep.subr.mxu0 0.0
    %3704 = vmatpush1.msra.mxu0 0.0
    %3705 = vmatprep.subr.mxu0 0.0
    %3706 = vmatpush1.msra.mxu0 0.0
    %3707 = vmatprep.subr.mxu0 0.0
    %3708 = vmatpush1.msra.mxu0 0.0
    %3709 = vmatprep.subr.mxu0 0.0
    %3710 = vmatpush1.msra.mxu0 0.0
    %3711 = vmatprep.subr.mxu0 0.0
    %3712 = vmatpush1.msra.mxu0 0.0
    %3713 = vmatprep.subr.mxu0 0.0
    %3714 = vmatpush1.msra.mxu0 0.0
    %3715 = vmatprep.subr.mxu0 0.0
    %3716 = vmatpush1.msra.mxu0 0.0
    %3717 = vmatprep.subr.mxu0 0.0
    %3718 = vmatpush1.msra.mxu0 0.0
    %3719 = vmatprep.subr.mxu0 0.0
    %3720 = vmatpush1.msra.mxu0 0.0
    %3721 = vmatprep.subr.mxu0 0.0
    %3722 = vmatpush1.msra.mxu0 0.0
    %3723 = vmatprep.subr.mxu0 0.0
    %3724 = vmatpush1.msra.mxu0 0.0
    %3725 = vmatprep.subr.mxu0 0.0
    %3726 = vmatpush1.msra.mxu0 0.0
    %3727 = vmatprep.subr.mxu0 0.0
    %3728 = vmatpush1.msra.mxu0 0.0
    %3729 = vmatprep.subr.mxu0 0.0
    %3730 = vmatpush1.msra.mxu0 0.0
    %3731 = vmatprep.subr.mxu0 0.0
    %3732 = vmatpush1.msra.mxu0 0.0
    %3733 = vmatprep.subr.mxu0 0.0
    %3734 = vmatpush1.msra.mxu0 0.0
    %3735 = vmatprep.mubr.f32.mxu0 0.0
    %3736 = vmatmul.mubr.f32.gmra.mrb[0].mxu0 %v3666
    %v3737 = vpop.f32.mrb[0].mxu0
    %v3738 = vadd.f32 %v3664, %v3737
    %v3739 = vpop.f32.mrb[0].mxu0
    %3740 = vmatprep.mubr.f32.mxu0 0.0
    %3741 = vmatmul.mubr.f32.gmra.mrb[0].mxu0 %v3669
    %v3742 = vpop.f32.mrb[0].mxu0
    %v3743 = vadd.f32 %v3664, %v3742
    %v3744 = vpop.f32.mrb[0].mxu0
    %3745 = vdwg.mxu0
    %v3746 = vadd.f32 %v3738, %v3518
    %v3747 = vadd.f32 %v3743, %v3519
    %v3748 = vsel %vm65, %v3746, 0.0
    %3749 = vadd.xlane.f32.xlu0 %v3748
    %v3750 = vpop.xlane.xlu0 %3749
    %v3751 = vsel %vm65, %v3747, 0.0
    %3752 = vadd.xlane.f32.xlu0 %v3751
    %v3753 = vpop.xlane.xlu0 %3752
    %v3754 = vmul.f32 %v3750, %v1640
    %v3755 = vmul.f32 %v3753, %v1640
    %v3756 = vsub.f32 %v3746, %v3754
    %v3757 = vsub.f32 %v3747, %v3755
    %v3758 = vmul.f32 %v3756, %v3756
    %v3759 = vmul.f32 %v3757, %v3757
    %v3760 = vsel %vm65, %v3758, 0.0
    %3761 = vadd.xlane.f32.xlu0 %v3760
    %v3762 = vpop.xlane.xlu0 %3761
    %v3763 = vsel %vm65, %v3759, 0.0
    %3764 = vadd.xlane.f32.xlu0 %v3763
    %v3765 = vpop.xlane.xlu0 %3764
    %v3766 = vmul.f32 %v3762, %v1640
    %v3767 = vmul.f32 %v3765, %v1640
    %v3768 = vadd.f32 %v3766, 1e-12
    %v3769 = vadd.f32 %v3767, 1e-12
    %v3770 = vrsqrt.pop %v3768
    %v3771 = vrsqrt.pop %v3769
    %v3772 = vmul.f32 %v3756, %v3770
    %v3773 = vmul.f32 %v3757, %v3771
    %v3774 = vlaneseq
    %v3775 = vshrl.u32 %v3774, 7
    %v3776 = vsub.s32 3, %v3775
    %v3777 = vrot.slane %v1964, %v3776
    %v3778 = vmul.f32 %v3772, %v3777
    %v3779 = vmul.f32 %v3773, %v3777
    %v3780 = vlaneseq
    %v3781 = vshrl.u32 %v3780, 7
    %v3782 = vsub.s32 4, %v3781
    %v3783 = vrot.slane %v1964, %v3782
    %v3784 = vadd.f32 %v3778, %v3783
    %v3785 = vadd.f32 %v3779, %v3783
    %3786 = vst.msk [vmem:[#allocation2] sm:$0xff] %vm65, %v3784
    %3787 = vst.msk [vmem:[#allocation2 + $0x8] sm:$0xff] %vm65, %v3785
    // Predicated region
    $region34: #{tpu_custom_call.1} parent=1 // pred_check
      _
    $region35: #{tpu_custom_call.1} parent=1 // pred_check_branch
      %3789 = sbr.rel (0) target = $region37
    $region36: #{tpu_custom_call.1} parent=1 // pred_region
      %s3791 = ssub.s32 256, 256
      %3792 = vsyncadd [#allocation3], %s3791
      %s3793 = sshll.u32 [#allocation2], 4
      %s3794 = int_to_ptr.vmem [resolvable:$true] %s3793
      %3799 = dma.vmem_to_hbm [thread:$0]  %s3794, 256, %s8, [#allocation3], 128, 128, 8
    $region37: #{tpu_custom_call.1} parent=1 // pred_fallthru
      _
    // Predicated region
    $region38: #{tpu_custom_call.1} parent=1 // pred_check
      _
    $region39: #{tpu_custom_call.1} parent=1 // pred_check_branch
      %3801 = sbr.rel (0) target = $region41
    $region40: #{tpu_custom_call.1} parent=1 // pred_region
      %3802 = dma.done [#allocation3], 256
    $region41: #{tpu_custom_call.1} parent=1 // pred_fallthru
      _
    %3803 = vsyncpa [#allocation3], 1

</llo_original>
